<compile_context>
chip_gen: v5e
topology: v5e:2x2
jax: 0.10.0
libtpu: 0.0.40
codegen_flags: <defaults>
</compile_context>

<pallas_src>
import numpy as np
import jax
import jax.numpy as jnp
from jax.experimental import pallas as pl
from jax.experimental.pallas import tpu as pltpu

QUERY_CHANNEL = 3
LATENT_CHANNEL = 192
EMBED_DIM = 48
IN_DIM = QUERY_CHANNEL + LATENT_CHANNEL + EMBED_DIM        # 243
HID = 512
L4_OUT = HID - IN_DIM                                      # 269
QPAD = 8                                                   # x channels padded 3 -> 8
CAT_DIM = QPAD + EMBED_DIM + LATENT_CHANNEL                # 248 (single fused K)
OUT_PAD = 128                                              # l_out 1 -> 128 lanes (lane-dense store)


# ----------------------------------------------------------------------------
# Pallas kernel: full 8-layer weight-normed MLP for one tile of rows.
# ----------------------------------------------------------------------------
def _mlp_kernel(x_ref, z_ref, basis_ref, off_ref,
                w1, b1, w2, b2, w3, b3, w4, b4,
                w5a, w5b, b5, w6, b6, w7, b7, wo, bo,
                out_ref):
    f32 = jnp.float32
    bf16 = jnp.bfloat16

    x = x_ref[...]                                   # (tm, 8)  f32, cols >= 3 are zero
    z = z_ref[...]                                   # (tm, 192) f32

    # pe = [sin(x@basis), cos(x@basis)] via one matmul + one sin:
    # basis2 = [basis | basis], offset = [0 | pi/2], cos(t) = sin(t + pi/2).
    proj = jnp.dot(x, basis_ref[...], preferred_element_type=f32) + off_ref[...]
    pe = jnp.sin(proj)                               # (tm, 48) f32

    # inp = cat(x, pe, z) as a single K=248 bf16 LHS, reused by l1 and the
    # "inp" part of l5.  (W1 / W5b were laid out for this order at prep time.)
    inp = jnp.concatenate([x, pe, z], axis=1).astype(bf16)   # (tm, 248)

    def layer(a, w_ref, b_ref, extra=None):
        acc = jnp.dot(a, w_ref[...], preferred_element_type=f32)
        if extra is not None:
            acc = acc + extra
        # bias + relu + single bf16 cast in the epilogue (activation stays bf16)
        return jnp.maximum(acc + b_ref[...], 0.0).astype(bf16)

    h = layer(inp, w1, b1)                           # (tm, 512)
    h = layer(h, w2, b2)
    h = layer(h, w3, b3)
    h4 = layer(h, w4, b4)                            # (tm, 269)
    # l5: relu(cat(h4, inp) @ W5 + b5) == relu(h4 @ W5[:269] + inp @ W5[269:] + b5)
    inp_contrib = jnp.dot(inp, w5b[...], preferred_element_type=f32)
    h = layer(h4, w5a, b5, extra=inp_contrib)        # (tm, 512)
    h = layer(h, w6, b6)
    h = layer(h, w7, b7)
    # l_out (no relu): lane-dense (tm, 128) f32 store; only column 0 is real.
    out_ref[...] = jnp.dot(h, wo[...], preferred_element_type=f32) + bo[...]


# ----------------------------------------------------------------------------
# Parameter construction (deterministic, mimics nn.Linear init + weight_norm)
# ----------------------------------------------------------------------------
def _make_basis():
    e = (2.0 ** np.arange(EMBED_DIM // 6)).astype(np.float32) * np.pi
    zeros = np.zeros(EMBED_DIM // 6, dtype=np.float32)
    basis = np.stack([
        np.concatenate([e, zeros, zeros]),
        np.concatenate([zeros, e, zeros]),
        np.concatenate([zeros, zeros, e]),
    ])
    return jnp.asarray(basis)                                      # (3, 24)


def _init_weight_norm_linear(key, in_dim, out_dim):
    """PyTorch Linear default init; weight_norm: w = g * v/||v|| (dim=0),
    with g initialized to ||v|| (PyTorch weight_norm default)."""
    kw, kb = jax.random.split(key)
    bound = 1.0 / np.sqrt(in_dim)
    v = jax.random.uniform(kw, (out_dim, in_dim), jnp.float32, -bound, bound)
    b = jax.random.uniform(kb, (out_dim,), jnp.float32, -bound, bound)
    v_norm = jnp.sqrt(jnp.sum(v * v, axis=1, keepdims=True))
    g = v_norm
    w_eff = g * v / v_norm
    return w_eff.T, b.reshape(1, out_dim)                          # (in, out), (1, out)


def init_params(key):
    keys = jax.random.split(key, 8)
    params = {"basis": _make_basis()}
    params["l1"] = _init_weight_norm_linear(keys[0], IN_DIM, HID)
    params["l2"] = _init_weight_norm_linear(keys[1], HID, HID)
    params["l3"] = _init_weight_norm_linear(keys[2], HID, HID)
    params["l4"] = _init_weight_norm_linear(keys[3], HID, L4_OUT)
    params["l5"] = _init_weight_norm_linear(keys[4], HID, HID)   # input = cat(h4[269], inp[243])
    params["l6"] = _init_weight_norm_linear(keys[5], HID, HID)
    params["l7"] = _init_weight_norm_linear(keys[6], HID, HID)
    params["l_out"] = _init_weight_norm_linear(keys[7], HID, 1)
    return params


# ----------------------------------------------------------------------------
# Weight preparation (run ONCE, outside the per-call path):
# split / zero-row insert / bf16-cast for the kernel layout.
# ----------------------------------------------------------------------------
def prepare_weights(params):
    f32, bf16 = jnp.float32, jnp.bfloat16

    basis = params["basis"]                                        # (3, 24)
    basis_p = jnp.zeros((QPAD, EMBED_DIM // 2), f32).at[:QUERY_CHANNEL].set(basis)
    basis2 = jnp.concatenate([basis_p, basis_p], axis=1)           # (8, 48)
    offset = jnp.concatenate([jnp.zeros((1, EMBED_DIM // 2), f32),
                              jnp.full((1, EMBED_DIM // 2), np.pi / 2, f32)], axis=1)

    def expand_rows(w):
        # (243, n) -> (248, n): insert zero rows 3:8 to match inp = [x(3)+pad(5) | pe | z]
        return jnp.concatenate(
            [w[:QUERY_CHANNEL],
             jnp.zeros((QPAD - QUERY_CHANNEL, w.shape[1]), w.dtype),
             w[QUERY_CHANNEL:]], axis=0)

    w1, b1 = params["l1"]                                          # (243, 512)
    w2, b2 = params["l2"]
    w3, b3 = params["l3"]
    w4, b4 = params["l4"]                                          # (512, 269)
    w5, b5 = params["l5"]                                          # (512, 512): rows [h4(269) | inp(243)]
    w6, b6 = params["l6"]
    w7, b7 = params["l7"]
    wo, bo = params["l_out"]                                       # (512, 1)

    w1c = expand_rows(w1)                                          # (248, 512)
    w5a = w5[:L4_OUT]                                              # (269, 512)
    w5bc = expand_rows(w5[L4_OUT:])                                # (248, 512)
    wop = jnp.zeros((HID, OUT_PAD), f32).at[:, :1].set(wo)         # lane-dense output weight
    bop = jnp.zeros((1, OUT_PAD), f32).at[:, :1].set(bo)

    c = lambda a: a.astype(bf16)                                   # weights -> bf16, biases stay f32
    return (basis2, offset,
            c(w1c), b1, c(w2), b2, c(w3), b3, c(w4), b4,
            c(w5a), c(w5bc), b5, c(w6), b6, c(w7), b7, c(wop), bop)


# ----------------------------------------------------------------------------
# Wrapper
# ----------------------------------------------------------------------------
def _round_up(n, m):
    return (n + m - 1) // m * m


def _pick_tile(M, tm_max):
    tm = min(tm_max, _round_up(M, 8))
    # v7x has 2 TensorCores: keep >= 2 "parallel" grid steps when the problem
    # is big enough to be worth splitting across cores.
    if M >= 256 and -(-M // tm) < 2:
        tm = _round_up((M + 1) // 2, 8)
    return tm


def embedding_forward(x, z, prepared, tm_max=1024):
    """x: (B, N, 3), z: (B, N, 192), prepared = prepare_weights(params)."""
    B, N, _ = x.shape
    M = B * N
    tm = _pick_tile(M, tm_max)
    G = -(-M // tm)

    # No full zero-padded row copies: rows are passed with their true count and
    # the last grid block may be partial (masked writeback; garbage tail rows
    # cannot contaminate valid rows in a row-wise MLP).  Only x gets a tiny
    # 3 -> 8 channel pad; z stays f32 (in-kernel bf16 cast hides under MXU and
    # avoids an extra wrapper-side HBM round-trip).
    xf = jnp.pad(x.reshape(M, QUERY_CHANNEL).astype(jnp.float32),
                 ((0, 0), (0, QPAD - QUERY_CHANNEL)))              # (M, 8) f32
    zf = z.reshape(M, LATENT_CHANNEL).astype(jnp.float32)          # (M, 192) f32

    consts = prepared

    def const_spec(a):
        return pl.BlockSpec(a.shape, lambda i: (0, 0))
    # NOTE: constant-index blocks are never re-fetched across grid steps; the
    # double-buffered weight VMEM (~7 MiB) fits comfortably, so Buffered(1) is
    # skipped to keep lowering robust.

    out = pl.pallas_call(
        _mlp_kernel,
        out_shape=jax.ShapeDtypeStruct((M, OUT_PAD), jnp.float32),
        grid_spec=pltpu.PrefetchScalarGridSpec(
            num_scalar_prefetch=0,
            grid=(G,),
            in_specs=[pl.BlockSpec((tm, QPAD), lambda i: (i, 0)),
                      pl.BlockSpec((tm, LATENT_CHANNEL), lambda i: (i, 0))]
                     + [const_spec(a) for a in consts],
            out_specs=pl.BlockSpec((tm, OUT_PAD), lambda i: (i, 0)),
        ),
        compiler_params=pltpu.CompilerParams(
            dimension_semantics=("parallel",),
            vmem_limit_bytes=48 * 1024 * 1024,   # <= 64 MiB/TC on v7x; fine on v5e/v6e
        ),
    )(xf, zf, *consts)

    return out[:, :1].reshape(B, N, 1)


# ----------------------------------------------------------------------------
# Pure-JAX f32 reference (mirrors the PyTorch forward exactly)
# ----------------------------------------------------------------------------
def embedding_reference(x, z, params):
    proj = jnp.einsum("bnd,de->bne", x, params["basis"])
    pe = jnp.concatenate([jnp.sin(proj), jnp.cos(proj)], axis=2)
    inp = jnp.concatenate([x, pe, z], axis=2)

    def lin(p, h):
        w, b = p
        return h @ w + b[0]

    h = jax.nn.relu(lin(params["l1"], inp))
    h = jax.nn.relu(lin(params["l2"], h))
    h = jax.nn.relu(lin(params["l3"], h))
    h = jax.nn.relu(lin(params["l4"], h))
    h = jnp.concatenate([h, inp], axis=2)
    h = jax.nn.relu(lin(params["l5"], h))
    h = jax.nn.relu(lin(params["l6"], h))
    h = jax.nn.relu(lin(params["l7"], h))
    return lin(params["l_out"], h)


if __name__ == "__main__":
    key = jax.random.PRNGKey(0)
    kp, kx, kz, kx2, kz2 = jax.random.split(key, 5)

    params = init_params(kp)
    prepared = prepare_weights(params)          # hoisted: weight prep runs once
    fwd = jax.jit(embedding_forward)

    # Case 1: tiny shape, single exact block.
    B, N = 2, 8
    x = jax.random.uniform(kx, (B, N, QUERY_CHANNEL), jnp.float32, -1.0, 1.0)
    z = jax.random.normal(kz, (B, N, LATENT_CHANNEL), jnp.float32)
    out = jax.block_until_ready(fwd(x, z, prepared))
    ref = embedding_reference(x, z, params)
    assert out.shape == (B, N, 1), out.shape
    # bf16 matmuls with f32 accumulation vs f32 reference -> relaxed tolerance.
    np.testing.assert_allclose(np.asarray(out), np.asarray(ref), rtol=2e-2, atol=1e-2)

    # Case 2: multi-step grid with a ragged (partial) last block, G >= 2.
    B2, N2 = 2, 300                             # M = 600 -> tm = 304, grid = 2
    x2 = jax.random.uniform(kx2, (B2, N2, QUERY_CHANNEL), jnp.float32, -1.0, 1.0)
    z2 = jax.random.normal(kz2, (B2, N2, LATENT_CHANNEL), jnp.float32)
    out2 = jax.block_until_ready(fwd(x2, z2, prepared))
    ref2 = embedding_reference(x2, z2, params)
    assert out2.shape == (B2, N2, 1), out2.shape
    # Max-abs error over 37x more rows -> slightly looser absolute tolerance.
    np.testing.assert_allclose(np.asarray(out2), np.asarray(ref2), rtol=3e-2, atol=2e-2)

    print("KERNEL_OK")
</pallas_src>

<mosaic_0001>
module attributes {stable_mosaic.version = 11 : i64} {
  func.func @_mlp_kernel(%arg0: i32, %arg1: memref<16x8xf32, #tpu.memory_space<vmem>>, %arg2: memref<16x192xf32, #tpu.memory_space<vmem>>, %arg3: memref<8x48xf32, #tpu.memory_space<vmem>>, %arg4: memref<1x48xf32, #tpu.memory_space<vmem>>, %arg5: memref<248x512xbf16, #tpu.memory_space<vmem>>, %arg6: memref<1x512xf32, #tpu.memory_space<vmem>>, %arg7: memref<512x512xbf16, #tpu.memory_space<vmem>>, %arg8: memref<1x512xf32, #tpu.memory_space<vmem>>, %arg9: memref<512x512xbf16, #tpu.memory_space<vmem>>, %arg10: memref<1x512xf32, #tpu.memory_space<vmem>>, %arg11: memref<512x269xbf16, #tpu.memory_space<vmem>>, %arg12: memref<1x269xf32, #tpu.memory_space<vmem>>, %arg13: memref<269x512xbf16, #tpu.memory_space<vmem>>, %arg14: memref<248x512xbf16, #tpu.memory_space<vmem>>, %arg15: memref<1x512xf32, #tpu.memory_space<vmem>>, %arg16: memref<512x512xbf16, #tpu.memory_space<vmem>>, %arg17: memref<1x512xf32, #tpu.memory_space<vmem>>, %arg18: memref<512x512xbf16, #tpu.memory_space<vmem>>, %arg19: memref<1x512xf32, #tpu.memory_space<vmem>>, %arg20: memref<512x128xbf16, #tpu.memory_space<vmem>>, %arg21: memref<1x128xf32, #tpu.memory_space<vmem>>, %arg22: memref<16x128xf32, #tpu.memory_space<vmem>>) attributes {dimension_semantics = [#tpu.dimension_semantics<parallel>], iteration_bounds = array<i64: 1>, scalar_prefetch = 0 : i64, scratch_operands = 0 : i64, tpu.core_type = #tpu.core_type<tc>, window_params = [{transform_indices = @transform_0, window_bounds = array<i64: 16, 8>}, {transform_indices = @transform_1, window_bounds = array<i64: 16, 192>}, {pipeline_mode = #tpu.pipeline_mode<synchronous>, transform_indices = @transform_2, window_bounds = array<i64: 8, 48>}, {pipeline_mode = #tpu.pipeline_mode<synchronous>, transform_indices = @transform_3, window_bounds = array<i64: 1, 48>}, {pipeline_mode = #tpu.pipeline_mode<synchronous>, transform_indices = @transform_4, window_bounds = array<i64: 248, 512>}, {pipeline_mode = #tpu.pipeline_mode<synchronous>, transform_indices = @transform_5, window_bounds = array<i64: 1, 512>}, {pipeline_mode = #tpu.pipeline_mode<synchronous>, transform_indices = @transform_6, window_bounds = array<i64: 512, 512>}, {pipeline_mode = #tpu.pipeline_mode<synchronous>, transform_indices = @transform_7, window_bounds = array<i64: 1, 512>}, {pipeline_mode = #tpu.pipeline_mode<synchronous>, transform_indices = @transform_8, window_bounds = array<i64: 512, 512>}, {pipeline_mode = #tpu.pipeline_mode<synchronous>, transform_indices = @transform_9, window_bounds = array<i64: 1, 512>}, {pipeline_mode = #tpu.pipeline_mode<synchronous>, transform_indices = @transform_10, window_bounds = array<i64: 512, 269>}, {pipeline_mode = #tpu.pipeline_mode<synchronous>, transform_indices = @transform_11, window_bounds = array<i64: 1, 269>}, {pipeline_mode = #tpu.pipeline_mode<synchronous>, transform_indices = @transform_12, window_bounds = array<i64: 269, 512>}, {pipeline_mode = #tpu.pipeline_mode<synchronous>, transform_indices = @transform_13, window_bounds = array<i64: 248, 512>}, {pipeline_mode = #tpu.pipeline_mode<synchronous>, transform_indices = @transform_14, window_bounds = array<i64: 1, 512>}, {pipeline_mode = #tpu.pipeline_mode<synchronous>, transform_indices = @transform_15, window_bounds = array<i64: 512, 512>}, {pipeline_mode = #tpu.pipeline_mode<synchronous>, transform_indices = @transform_16, window_bounds = array<i64: 1, 512>}, {pipeline_mode = #tpu.pipeline_mode<synchronous>, transform_indices = @transform_17, window_bounds = array<i64: 512, 512>}, {pipeline_mode = #tpu.pipeline_mode<synchronous>, transform_indices = @transform_18, window_bounds = array<i64: 1, 512>}, {pipeline_mode = #tpu.pipeline_mode<synchronous>, transform_indices = @transform_19, window_bounds = array<i64: 512, 128>}, {pipeline_mode = #tpu.pipeline_mode<synchronous>, transform_indices = @transform_20, window_bounds = array<i64: 1, 128>}, {transform_indices = @transform_21, window_bounds = array<i64: 16, 128>}]} {
    %c0 = arith.constant 0 : index
    %c0_0 = arith.constant 0 : index
    %0 = vector.load %arg1[%c0, %c0_0] : memref<16x8xf32, #tpu.memory_space<vmem>>, vector<16x8xf32>
    %c0_1 = arith.constant 0 : index
    %c0_2 = arith.constant 0 : index
    %1 = vector.load %arg2[%c0_1, %c0_2] : memref<16x192xf32, #tpu.memory_space<vmem>>, vector<16x192xf32>
    %c0_3 = arith.constant 0 : index
    %c0_4 = arith.constant 0 : index
    %2 = vector.load %arg3[%c0_3, %c0_4] : memref<8x48xf32, #tpu.memory_space<vmem>>, vector<8x48xf32>
    %cst = arith.constant dense<0.000000e+00> : vector<16x48xf32>
    %3 = tpu.matmul %0, %2, %cst {dimension_numbers = #tpu.dot_dimension_numbers<[1], [0], [0], [1], [0, 0, 1, 1], [], []>} : vector<16x8xf32>, vector<8x48xf32>, vector<16x48xf32> -> vector<16x48xf32>
    %c0_5 = arith.constant 0 : index
    %c0_6 = arith.constant 0 : index
    %4 = vector.load %arg4[%c0_5, %c0_6] : memref<1x48xf32, #tpu.memory_space<vmem>>, vector<1x48xf32>
    %5 = vector.broadcast %4 : vector<1x48xf32> to vector<16x48xf32>
    %6 = arith.addf %3, %5 : vector<16x48xf32>
    %7 = math.sin %6 : vector<16x48xf32>
    %8 = tpu.concatenate %0, %7, %1 in 1 : vector<16x8xf32>, vector<16x48xf32>, vector<16x192xf32> -> vector<16x248xf32>
    %9 = arith.truncf %8 : vector<16x248xf32> to vector<16x248xbf16>
    %c0_7 = arith.constant 0 : index
    %c0_8 = arith.constant 0 : index
    %10 = vector.load %arg5[%c0_7, %c0_8] : memref<248x512xbf16, #tpu.memory_space<vmem>>, vector<248x512xbf16>
    %cst_9 = arith.constant dense<0.000000e+00> : vector<16x512xf32>
    %11 = tpu.matmul %9, %10, %cst_9 {dimension_numbers = #tpu.dot_dimension_numbers<[1], [0], [0], [1], [0, 0, 1, 1], [], []>} : vector<16x248xbf16>, vector<248x512xbf16>, vector<16x512xf32> -> vector<16x512xf32>
    %c0_10 = arith.constant 0 : index
    %c0_11 = arith.constant 0 : index
    %12 = vector.load %arg6[%c0_10, %c0_11] : memref<1x512xf32, #tpu.memory_space<vmem>>, vector<1x512xf32>
    %13 = vector.broadcast %12 : vector<1x512xf32> to vector<16x512xf32>
    %14 = arith.addf %11, %13 : vector<16x512xf32>
    %cst_12 = arith.constant 0.000000e+00 : f32
    %15 = vector.broadcast %cst_12 : f32 to vector<16x512xf32>
    %16 = arith.maximumf %14, %15 : vector<16x512xf32>
    %17 = arith.truncf %16 : vector<16x512xf32> to vector<16x512xbf16>
    %c0_13 = arith.constant 0 : index
    %c0_14 = arith.constant 0 : index
    %18 = vector.load %arg7[%c0_13, %c0_14] : memref<512x512xbf16, #tpu.memory_space<vmem>>, vector<512x512xbf16>
    %cst_15 = arith.constant dense<0.000000e+00> : vector<16x512xf32>
    %19 = tpu.matmul %17, %18, %cst_15 {dimension_numbers = #tpu.dot_dimension_numbers<[1], [0], [0], [1], [0, 0, 1, 1], [], []>} : vector<16x512xbf16>, vector<512x512xbf16>, vector<16x512xf32> -> vector<16x512xf32>
    %c0_16 = arith.constant 0 : index
    %c0_17 = arith.constant 0 : index
    %20 = vector.load %arg8[%c0_16, %c0_17] : memref<1x512xf32, #tpu.memory_space<vmem>>, vector<1x512xf32>
    %21 = vector.broadcast %20 : vector<1x512xf32> to vector<16x512xf32>
    %22 = arith.addf %19, %21 : vector<16x512xf32>
    %cst_18 = arith.constant 0.000000e+00 : f32
    %23 = vector.broadcast %cst_18 : f32 to vector<16x512xf32>
    %24 = arith.maximumf %22, %23 : vector<16x512xf32>
    %25 = arith.truncf %24 : vector<16x512xf32> to vector<16x512xbf16>
    %c0_19 = arith.constant 0 : index
    %c0_20 = arith.constant 0 : index
    %26 = vector.load %arg9[%c0_19, %c0_20] : memref<512x512xbf16, #tpu.memory_space<vmem>>, vector<512x512xbf16>
    %cst_21 = arith.constant dense<0.000000e+00> : vector<16x512xf32>
    %27 = tpu.matmul %25, %26, %cst_21 {dimension_numbers = #tpu.dot_dimension_numbers<[1], [0], [0], [1], [0, 0, 1, 1], [], []>} : vector<16x512xbf16>, vector<512x512xbf16>, vector<16x512xf32> -> vector<16x512xf32>
    %c0_22 = arith.constant 0 : index
    %c0_23 = arith.constant 0 : index
    %28 = vector.load %arg10[%c0_22, %c0_23] : memref<1x512xf32, #tpu.memory_space<vmem>>, vector<1x512xf32>
    %29 = vector.broadcast %28 : vector<1x512xf32> to vector<16x512xf32>
    %30 = arith.addf %27, %29 : vector<16x512xf32>
    %cst_24 = arith.constant 0.000000e+00 : f32
    %31 = vector.broadcast %cst_24 : f32 to vector<16x512xf32>
    %32 = arith.maximumf %30, %31 : vector<16x512xf32>
    %33 = arith.truncf %32 : vector<16x512xf32> to vector<16x512xbf16>
    %c0_25 = arith.constant 0 : index
    %c0_26 = arith.constant 0 : index
    %34 = vector.load %arg11[%c0_25, %c0_26] : memref<512x269xbf16, #tpu.memory_space<vmem>>, vector<512x269xbf16>
    %cst_27 = arith.constant dense<0.000000e+00> : vector<16x269xf32>
    %35 = tpu.matmul %33, %34, %cst_27 {dimension_numbers = #tpu.dot_dimension_numbers<[1], [0], [0], [1], [0, 0, 1, 1], [], []>} : vector<16x512xbf16>, vector<512x269xbf16>, vector<16x269xf32> -> vector<16x269xf32>
    %c0_28 = arith.constant 0 : index
    %c0_29 = arith.constant 0 : index
    %36 = vector.load %arg12[%c0_28, %c0_29] : memref<1x269xf32, #tpu.memory_space<vmem>>, vector<1x269xf32>
    %37 = vector.broadcast %36 : vector<1x269xf32> to vector<16x269xf32>
    %38 = arith.addf %35, %37 : vector<16x269xf32>
    %cst_30 = arith.constant 0.000000e+00 : f32
    %39 = vector.broadcast %cst_30 : f32 to vector<16x269xf32>
    %40 = arith.maximumf %38, %39 : vector<16x269xf32>
    %41 = arith.truncf %40 : vector<16x269xf32> to vector<16x269xbf16>
    %c0_31 = arith.constant 0 : index
    %c0_32 = arith.constant 0 : index
    %42 = vector.load %arg14[%c0_31, %c0_32] : memref<248x512xbf16, #tpu.memory_space<vmem>>, vector<248x512xbf16>
    %cst_33 = arith.constant dense<0.000000e+00> : vector<16x512xf32>
    %43 = tpu.matmul %9, %42, %cst_33 {dimension_numbers = #tpu.dot_dimension_numbers<[1], [0], [0], [1], [0, 0, 1, 1], [], []>} : vector<16x248xbf16>, vector<248x512xbf16>, vector<16x512xf32> -> vector<16x512xf32>
    %c0_34 = arith.constant 0 : index
    %c0_35 = arith.constant 0 : index
    %44 = vector.load %arg13[%c0_34, %c0_35] : memref<269x512xbf16, #tpu.memory_space<vmem>>, vector<269x512xbf16>
    %cst_36 = arith.constant dense<0.000000e+00> : vector<16x512xf32>
    %45 = tpu.matmul %41, %44, %cst_36 {dimension_numbers = #tpu.dot_dimension_numbers<[1], [0], [0], [1], [0, 0, 1, 1], [], []>} : vector<16x269xbf16>, vector<269x512xbf16>, vector<16x512xf32> -> vector<16x512xf32>
    %46 = arith.addf %45, %43 : vector<16x512xf32>
    %c0_37 = arith.constant 0 : index
    %c0_38 = arith.constant 0 : index
    %47 = vector.load %arg15[%c0_37, %c0_38] : memref<1x512xf32, #tpu.memory_space<vmem>>, vector<1x512xf32>
    %48 = vector.broadcast %47 : vector<1x512xf32> to vector<16x512xf32>
    %49 = arith.addf %46, %48 : vector<16x512xf32>
    %cst_39 = arith.constant 0.000000e+00 : f32
    %50 = vector.broadcast %cst_39 : f32 to vector<16x512xf32>
    %51 = arith.maximumf %49, %50 : vector<16x512xf32>
    %52 = arith.truncf %51 : vector<16x512xf32> to vector<16x512xbf16>
    %c0_40 = arith.constant 0 : index
    %c0_41 = arith.constant 0 : index
    %53 = vector.load %arg16[%c0_40, %c0_41] : memref<512x512xbf16, #tpu.memory_space<vmem>>, vector<512x512xbf16>
    %cst_42 = arith.constant dense<0.000000e+00> : vector<16x512xf32>
    %54 = tpu.matmul %52, %53, %cst_42 {dimension_numbers = #tpu.dot_dimension_numbers<[1], [0], [0], [1], [0, 0, 1, 1], [], []>} : vector<16x512xbf16>, vector<512x512xbf16>, vector<16x512xf32> -> vector<16x512xf32>
    %c0_43 = arith.constant 0 : index
    %c0_44 = arith.constant 0 : index
    %55 = vector.load %arg17[%c0_43, %c0_44] : memref<1x512xf32, #tpu.memory_space<vmem>>, vector<1x512xf32>
    %56 = vector.broadcast %55 : vector<1x512xf32> to vector<16x512xf32>
    %57 = arith.addf %54, %56 : vector<16x512xf32>
    %cst_45 = arith.constant 0.000000e+00 : f32
    %58 = vector.broadcast %cst_45 : f32 to vector<16x512xf32>
    %59 = arith.maximumf %57, %58 : vector<16x512xf32>
    %60 = arith.truncf %59 : vector<16x512xf32> to vector<16x512xbf16>
    %c0_46 = arith.constant 0 : index
    %c0_47 = arith.constant 0 : index
    %61 = vector.load %arg18[%c0_46, %c0_47] : memref<512x512xbf16, #tpu.memory_space<vmem>>, vector<512x512xbf16>
    %cst_48 = arith.constant dense<0.000000e+00> : vector<16x512xf32>
    %62 = tpu.matmul %60, %61, %cst_48 {dimension_numbers = #tpu.dot_dimension_numbers<[1], [0], [0], [1], [0, 0, 1, 1], [], []>} : vector<16x512xbf16>, vector<512x512xbf16>, vector<16x512xf32> -> vector<16x512xf32>
    %c0_49 = arith.constant 0 : index
    %c0_50 = arith.constant 0 : index
    %63 = vector.load %arg19[%c0_49, %c0_50] : memref<1x512xf32, #tpu.memory_space<vmem>>, vector<1x512xf32>
    %64 = vector.broadcast %63 : vector<1x512xf32> to vector<16x512xf32>
    %65 = arith.addf %62, %64 : vector<16x512xf32>
    %cst_51 = arith.constant 0.000000e+00 : f32
    %66 = vector.broadcast %cst_51 : f32 to vector<16x512xf32>
    %67 = arith.maximumf %65, %66 : vector<16x512xf32>
    %68 = arith.truncf %67 : vector<16x512xf32> to vector<16x512xbf16>
    %c0_52 = arith.constant 0 : index
    %c0_53 = arith.constant 0 : index
    %69 = vector.load %arg20[%c0_52, %c0_53] : memref<512x128xbf16, #tpu.memory_space<vmem>>, vector<512x128xbf16>
    %cst_54 = arith.constant dense<0.000000e+00> : vector<16x128xf32>
    %70 = tpu.matmul %68, %69, %cst_54 {dimension_numbers = #tpu.dot_dimension_numbers<[1], [0], [0], [1], [0, 0, 1, 1], [], []>} : vector<16x512xbf16>, vector<512x128xbf16>, vector<16x128xf32> -> vector<16x128xf32>
    %c0_55 = arith.constant 0 : index
    %c0_56 = arith.constant 0 : index
    %71 = vector.load %arg21[%c0_55, %c0_56] : memref<1x128xf32, #tpu.memory_space<vmem>>, vector<1x128xf32>
    %72 = vector.broadcast %71 : vector<1x128xf32> to vector<16x128xf32>
    %73 = arith.addf %70, %72 : vector<16x128xf32>
    %c0_57 = arith.constant 0 : index
    %c0_58 = arith.constant 0 : index
    %74 = vector.load %arg22[%c0_57, %c0_58] : memref<16x128xf32, #tpu.memory_space<vmem>>, vector<16x128xf32>
    tpu.vector_store %arg22[%c0_57, %c0_58], %73 {strides = array<i32>} : memref<16x128xf32, #tpu.memory_space<vmem>>, vector<16x128xf32>,
    return
  }
  func.func @transform_0(%arg0: i32) -> (i32, i32) {
    %c0_i32 = arith.constant 0 : i32
    %c0_i32_0 = arith.constant 0 : i32
    return %arg0, %c0_i32 : i32, i32
  }
  func.func @transform_1(%arg0: i32) -> (i32, i32) {
    %c0_i32 = arith.constant 0 : i32
    %c0_i32_0 = arith.constant 0 : i32
    return %arg0, %c0_i32 : i32, i32
  }
  func.func @transform_2(%arg0: i32) -> (i32, i32) {
    %c0_i32 = arith.constant 0 : i32
    %c0_i32_0 = arith.constant 0 : i32
    %c0_i32_1 = arith.constant 0 : i32
    return %c0_i32, %c0_i32_0 : i32, i32
  }
  func.func @transform_3(%arg0: i32) -> (i32, i32) {
    %c0_i32 = arith.constant 0 : i32
    %c0_i32_0 = arith.constant 0 : i32
    %c0_i32_1 = arith.constant 0 : i32
    return %c0_i32, %c0_i32_0 : i32, i32
  }
  func.func @transform_4(%arg0: i32) -> (i32, i32) {
    %c0_i32 = arith.constant 0 : i32
    %c0_i32_0 = arith.constant 0 : i32
    %c0_i32_1 = arith.constant 0 : i32
    return %c0_i32, %c0_i32_0 : i32, i32
  }
  func.func @transform_5(%arg0: i32) -> (i32, i32) {
    %c0_i32 = arith.constant 0 : i32
    %c0_i32_0 = arith.constant 0 : i32
    %c0_i32_1 = arith.constant 0 : i32
    return %c0_i32, %c0_i32_0 : i32, i32
  }
  func.func @transform_6(%arg0: i32) -> (i32, i32) {
    %c0_i32 = arith.constant 0 : i32
    %c0_i32_0 = arith.constant 0 : i32
    %c0_i32_1 = arith.constant 0 : i32
    return %c0_i32, %c0_i32_0 : i32, i32
  }
  func.func @transform_7(%arg0: i32) -> (i32, i32) {
    %c0_i32 = arith.constant 0 : i32
    %c0_i32_0 = arith.constant 0 : i32
    %c0_i32_1 = arith.constant 0 : i32
    return %c0_i32, %c0_i32_0 : i32, i32
  }
  func.func @transform_8(%arg0: i32) -> (i32, i32) {
    %c0_i32 = arith.constant 0 : i32
    %c0_i32_0 = arith.constant 0 : i32
    %c0_i32_1 = arith.constant 0 : i32
    return %c0_i32, %c0_i32_0 : i32, i32
  }
  func.func @transform_9(%arg0: i32) -> (i32, i32) {
    %c0_i32 = arith.constant 0 : i32
    %c0_i32_0 = arith.constant 0 : i32
    %c0_i32_1 = arith.constant 0 : i32
    return %c0_i32, %c0_i32_0 : i32, i32
  }
  func.func @transform_10(%arg0: i32) -> (i32, i32) {
    %c0_i32 = arith.constant 0 : i32
    %c0_i32_0 = arith.constant 0 : i32
    %c0_i32_1 = arith.constant 0 : i32
    return %c0_i32, %c0_i32_0 : i32, i32
  }
  func.func @transform_11(%arg0: i32) -> (i32, i32) {
    %c0_i32 = arith.constant 0 : i32
    %c0_i32_0 = arith.constant 0 : i32
    %c0_i32_1 = arith.constant 0 : i32
    return %c0_i32, %c0_i32_0 : i32, i32
  }
  func.func @transform_12(%arg0: i32) -> (i32, i32) {
    %c0_i32 = arith.constant 0 : i32
    %c0_i32_0 = arith.constant 0 : i32
    %c0_i32_1 = arith.constant 0 : i32
    return %c0_i32, %c0_i32_0 : i32, i32
  }
  func.func @transform_13(%arg0: i32) -> (i32, i32) {
    %c0_i32 = arith.constant 0 : i32
    %c0_i32_0 = arith.constant 0 : i32
    %c0_i32_1 = arith.constant 0 : i32
    return %c0_i32, %c0_i32_0 : i32, i32
  }
  func.func @transform_14(%arg0: i32) -> (i32, i32) {
    %c0_i32 = arith.constant 0 : i32
    %c0_i32_0 = arith.constant 0 : i32
    %c0_i32_1 = arith.constant 0 : i32
    return %c0_i32, %c0_i32_0 : i32, i32
  }
  func.func @transform_15(%arg0: i32) -> (i32, i32) {
    %c0_i32 = arith.constant 0 : i32
    %c0_i32_0 = arith.constant 0 : i32
    %c0_i32_1 = arith.constant 0 : i32
    return %c0_i32, %c0_i32_0 : i32, i32
  }
  func.func @transform_16(%arg0: i32) -> (i32, i32) {
    %c0_i32 = arith.constant 0 : i32
    %c0_i32_0 = arith.constant 0 : i32
    %c0_i32_1 = arith.constant 0 : i32
    return %c0_i32, %c0_i32_0 : i32, i32
  }
  func.func @transform_17(%arg0: i32) -> (i32, i32) {
    %c0_i32 = arith.constant 0 : i32
    %c0_i32_0 = arith.constant 0 : i32
    %c0_i32_1 = arith.constant 0 : i32
    return %c0_i32, %c0_i32_0 : i32, i32
  }
  func.func @transform_18(%arg0: i32) -> (i32, i32) {
    %c0_i32 = arith.constant 0 : i32
    %c0_i32_0 = arith.constant 0 : i32
    %c0_i32_1 = arith.constant 0 : i32
    return %c0_i32, %c0_i32_0 : i32, i32
  }
  func.func @transform_19(%arg0: i32) -> (i32, i32) {
    %c0_i32 = arith.constant 0 : i32
    %c0_i32_0 = arith.constant 0 : i32
    %c0_i32_1 = arith.constant 0 : i32
    return %c0_i32, %c0_i32_0 : i32, i32
  }
  func.func @transform_20(%arg0: i32) -> (i32, i32) {
    %c0_i32 = arith.constant 0 : i32
    %c0_i32_0 = arith.constant 0 : i32
    %c0_i32_1 = arith.constant 0 : i32
    return %c0_i32, %c0_i32_0 : i32, i32
  }
  func.func @transform_21(%arg0: i32) -> (i32, i32) {
    %c0_i32 = arith.constant 0 : i32
    %c0_i32_0 = arith.constant 0 : i32
    return %arg0, %c0_i32 : i32, i32
  }
}

</mosaic_0001>

<llo_original>
// kernel: embedding_forward.1
$region0: #{embedding_forward.1}
  #allocation0 [shape = 'u32[]', space=smem, size = 0x4, offset = 0x4, fixed_abs, tag = 'smem constant byte address 0x4 - core index']
  #allocation1 [shape = 'u32[72,128]{1,0:T(1,128)}', space=vmem, size = 0x9000, scoped, tag = 'internal scratch']
  %s0 = inlined_call_operand.vmem [shape: f32[16,8], index: 0, kind: input, shape index: {}]
  %s1 = inlined_call_operand.vmem [shape: f32[16,192], index: 1, kind: input, shape index: {}]
  %s2 = inlined_call_operand.vmem [shape: f32[8,48], index: 2, kind: input, shape index: {}]
  %s3 = inlined_call_operand.vmem [shape: f32[1,48], index: 3, kind: input, shape index: {}]
  %s4 = inlined_call_operand.hbm [shape: bf16[248,512], index: 4, kind: input, shape index: {}]
  %s5 = inlined_call_operand.vmem [shape: f32[1,512], index: 5, kind: input, shape index: {}]
  %s6 = inlined_call_operand.vmem [shape: bf16[512,512], index: 6, kind: input, shape index: {}]
  %s7 = inlined_call_operand.vmem [shape: f32[1,512], index: 7, kind: input, shape index: {}]
  %s8 = inlined_call_operand.hbm [shape: bf16[512,512], index: 8, kind: input, shape index: {}]
  %s9 = inlined_call_operand.vmem [shape: f32[1,512], index: 9, kind: input, shape index: {}]
  %s10 = inlined_call_operand.vmem [shape: bf16[512,269], index: 10, kind: input, shape index: {}]
  %s11 = inlined_call_operand.vmem [shape: f32[1,269], index: 11, kind: input, shape index: {}]
  %s12 = inlined_call_operand.hbm [shape: bf16[269,512], index: 12, kind: input, shape index: {}]
  %s13 = inlined_call_operand.hbm [shape: bf16[248,512], index: 13, kind: input, shape index: {}]
  %s14 = inlined_call_operand.vmem [shape: f32[1,512], index: 14, kind: input, shape index: {}]
  %s15 = inlined_call_operand.hbm [shape: bf16[512,512], index: 15, kind: input, shape index: {}]
  %s16 = inlined_call_operand.vmem [shape: f32[1,512], index: 16, kind: input, shape index: {}]
  %s17 = inlined_call_operand.hbm [shape: bf16[512,512], index: 17, kind: input, shape index: {}]
  %s18 = inlined_call_operand.vmem [shape: f32[1,512], index: 18, kind: input, shape index: {}]
  %s19 = inlined_call_operand.vmem [shape: bf16[512,128], index: 19, kind: input, shape index: {}]
  %s20 = inlined_call_operand.vmem [shape: f32[1,128], index: 20, kind: input, shape index: {}]
  %s21 = inlined_call_operand.vmem [shape: f32[16,128], index: 21, kind: output, shape index: {}]
  %s22 = sld [smem:[#allocation0]]
  $region118: #{embedding_forward.1} parent=0
    _
  %s24 = ssub.s32 1, %s22
  %s25 = scalar_select 0, %s24, %s22
  $region1: #{embedding_forward.1} parent=0
    #allocation2 [shape = 'u8[253952]{0}', space=vmem, size = 0x3e000, scoped, tag = 'input window, operand 4, single buffered']
    #allocation3 [shape = 's32[1]{0}', space=sflag, size = 0x4, scoped, tag = 'scoped memory for embedding_forward.1']
    #allocation4 [shape = 'u8[524288]{0}', space=vmem, size = 0x80000, scoped, tag = 'input window, operand 8, single buffered']
    #allocation5 [shape = 's32[1]{0}', space=sflag, size = 0x4, scoped, tag = 'scoped memory for embedding_forward.1']
    #allocation6 [shape = 'u8[278528]{0}', space=vmem, size = 0x44000, scoped, tag = 'input window, operand 12, single buffered']
    #allocation7 [shape = 'u8[253952]{0}', space=vmem, size = 0x3e000, scoped, tag = 'input window, operand 13, single buffered']
    #allocation8 [shape = 's32[1]{0}', space=sflag, size = 0x4, scoped, tag = 'scoped memory for embedding_forward.1']
    #allocation9 [shape = 'u8[524288]{0}', space=vmem, size = 0x80000, scoped, tag = 'input window, operand 15, single buffered']
    #allocation10 [shape = 'u8[524288]{0}', space=vmem, size = 0x80000, scoped, tag = 'input window, operand 17, single buffered']
    #allocation11 [shape = 's32[1]{0}', space=sflag, size = 0x4, scoped, tag = 'scoped memory for embedding_forward.1']
    %26 = vsyncpa [#allocation3], 0
    %27 = vsyncpa [#allocation5], 0
    %28 = vsyncpa [#allocation8], 0
    %29 = vsyncpa [#allocation11], 0
    // Predicated region
    $region2: #{embedding_forward.1} parent=1 // pred_check
      _
    $region3: #{embedding_forward.1} parent=1 // pred_check_branch
      %31 = sbr.rel (0) target = $region5
    $region4: #{embedding_forward.1} parent=1 // pred_region
      _
    $region5: #{embedding_forward.1} parent=1 // pred_fallthru
      _
    // Predicated region
    $region6: #{embedding_forward.1} parent=1 // pred_check
      _
    $region7: #{embedding_forward.1} parent=1 // pred_check_branch
      %33 = sbr.rel (0) target = $region9
    $region8: #{embedding_forward.1} parent=1 // pred_region
      _
    $region9: #{embedding_forward.1} parent=1 // pred_fallthru
      _
    // Predicated region
    $region10: #{embedding_forward.1} parent=1 // pred_check
      _
    $region11: #{embedding_forward.1} parent=1 // pred_check_branch
      %35 = sbr.rel (0) target = $region13
    $region12: #{embedding_forward.1} parent=1 // pred_region
      _
    $region13: #{embedding_forward.1} parent=1 // pred_fallthru
      _
    // Predicated region
    $region14: #{embedding_forward.1} parent=1 // pred_check
      _
    $region15: #{embedding_forward.1} parent=1 // pred_check_branch
      %37 = sbr.rel (0) target = $region17
    $region16: #{embedding_forward.1} parent=1 // pred_region
      _
    $region17: #{embedding_forward.1} parent=1 // pred_fallthru
      _
    // Predicated region
    $region18: #{embedding_forward.1} parent=1 // pred_check
      _
    $region19: #{embedding_forward.1} parent=1 // pred_check_branch
      %39 = sbr.rel (0) target = $region21
    $region20: #{embedding_forward.1} parent=1 // pred_region
      %41 = vsyncadd [#allocation3], 0
      %s42 = sshll.u32 %s4, 4
      %s43 = int_to_ptr.hbm [resolvable:$true] %s42
      %s44 = sshll.u32 [#allocation2], 4
      %s45 = int_to_ptr.vmem [resolvable:$true] %s44
      %50 = dma.hbm_to_vmem [thread:$0]  %s43, 7936, %s45, [#allocation3], 256, 256, 16
    $region21: #{embedding_forward.1} parent=1 // pred_fallthru
      _
    // Predicated region
    $region22: #{embedding_forward.1} parent=1 // pred_check
      _
    $region23: #{embedding_forward.1} parent=1 // pred_check_branch
      %52 = sbr.rel (0) target = $region25
    $region24: #{embedding_forward.1} parent=1 // pred_region
      _
    $region25: #{embedding_forward.1} parent=1 // pred_fallthru
      _
    // Predicated region
    $region26: #{embedding_forward.1} parent=1 // pred_check
      _
    $region27: #{embedding_forward.1} parent=1 // pred_check_branch
      %54 = sbr.rel (0) target = $region29
    $region28: #{embedding_forward.1} parent=1 // pred_region
      _
    $region29: #{embedding_forward.1} parent=1 // pred_fallthru
      _
    // Predicated region
    $region30: #{embedding_forward.1} parent=1 // pred_check
      _
    $region31: #{embedding_forward.1} parent=1 // pred_check_branch
      %56 = sbr.rel (0) target = $region33
    $region32: #{embedding_forward.1} parent=1 // pred_region
      _
    $region33: #{embedding_forward.1} parent=1 // pred_fallthru
      _
    // Predicated region
    $region34: #{embedding_forward.1} parent=1 // pred_check
      _
    $region35: #{embedding_forward.1} parent=1 // pred_check_branch
      %58 = sbr.rel (0) target = $region37
    $region36: #{embedding_forward.1} parent=1 // pred_region
      %60 = vsyncadd [#allocation5], 0
      %s61 = sshll.u32 %s8, 4
      %s62 = int_to_ptr.hbm [resolvable:$true] %s61
      %s63 = sshll.u32 [#allocation4], 4
      %s64 = int_to_ptr.vmem [resolvable:$true] %s63
      %69 = dma.hbm_to_vmem [thread:$0]  %s62, 16384, %s64, [#allocation5], 256, 256, 16
    $region37: #{embedding_forward.1} parent=1 // pred_fallthru
      _
    // Predicated region
    $region38: #{embedding_forward.1} parent=1 // pred_check
      _
    $region39: #{embedding_forward.1} parent=1 // pred_check_branch
      %71 = sbr.rel (0) target = $region41
    $region40: #{embedding_forward.1} parent=1 // pred_region
      _
    $region41: #{embedding_forward.1} parent=1 // pred_fallthru
      _
    // Predicated region
    $region42: #{embedding_forward.1} parent=1 // pred_check
      _
    $region43: #{embedding_forward.1} parent=1 // pred_check_branch
      %73 = sbr.rel (0) target = $region45
    $region44: #{embedding_forward.1} parent=1 // pred_region
      _
    $region45: #{embedding_forward.1} parent=1 // pred_fallthru
      _
    // Predicated region
    $region46: #{embedding_forward.1} parent=1 // pred_check
      _
    $region47: #{embedding_forward.1} parent=1 // pred_check_branch
      %75 = sbr.rel (0) target = $region49
    $region48: #{embedding_forward.1} parent=1 // pred_region
      _
    $region49: #{embedding_forward.1} parent=1 // pred_fallthru
      _
    // Predicated region
    $region50: #{embedding_forward.1} parent=1 // pred_check
      _
    $region51: #{embedding_forward.1} parent=1 // pred_check_branch
      %77 = sbr.rel (0) target = $region53
    $region52: #{embedding_forward.1} parent=1 // pred_region
      %79 = vsyncadd [#allocation5], 0
      %s80 = sshll.u32 %s12, 4
      %s81 = int_to_ptr.hbm [resolvable:$true] %s80
      %s82 = sshll.u32 [#allocation6], 4
      %s83 = int_to_ptr.vmem [resolvable:$true] %s82
      %88 = dma.hbm_to_vmem [thread:$0]  %s81, 8704, %s83, [#allocation5], 256, 256, 16
    $region53: #{embedding_forward.1} parent=1 // pred_fallthru
      _
    // Predicated region
    $region54: #{embedding_forward.1} parent=1 // pred_check
      _
    $region55: #{embedding_forward.1} parent=1 // pred_check_branch
      %90 = sbr.rel (0) target = $region57
    $region56: #{embedding_forward.1} parent=1 // pred_region
      %92 = vsyncadd [#allocation8], 0
      %s93 = sshll.u32 %s13, 4
      %s94 = int_to_ptr.hbm [resolvable:$true] %s93
      %s95 = sshll.u32 [#allocation7], 4
      %s96 = int_to_ptr.vmem [resolvable:$true] %s95
      %101 = dma.hbm_to_vmem [thread:$0]  %s94, 7936, %s96, [#allocation8], 256, 256, 16
    $region57: #{embedding_forward.1} parent=1 // pred_fallthru
      _
    // Predicated region
    $region58: #{embedding_forward.1} parent=1 // pred_check
      _
    $region59: #{embedding_forward.1} parent=1 // pred_check_branch
      %103 = sbr.rel (0) target = $region61
    $region60: #{embedding_forward.1} parent=1 // pred_region
      _
    $region61: #{embedding_forward.1} parent=1 // pred_fallthru
      _
    // Predicated region
    $region62: #{embedding_forward.1} parent=1 // pred_check
      _
    $region63: #{embedding_forward.1} parent=1 // pred_check_branch
      %105 = sbr.rel (0) target = $region65
    $region64: #{embedding_forward.1} parent=1 // pred_region
      %107 = vsyncadd [#allocation8], 0
      %s108 = sshll.u32 %s15, 4
      %s109 = int_to_ptr.hbm [resolvable:$true] %s108
      %s110 = sshll.u32 [#allocation9], 4
      %s111 = int_to_ptr.vmem [resolvable:$true] %s110
      %116 = dma.hbm_to_vmem [thread:$0]  %s109, 16384, %s111, [#allocation8], 256, 256, 16
    $region65: #{embedding_forward.1} parent=1 // pred_fallthru
      _
    // Predicated region
    $region66: #{embedding_forward.1} parent=1 // pred_check
      _
    $region67: #{embedding_forward.1} parent=1 // pred_check_branch
      %118 = sbr.rel (0) target = $region69
    $region68: #{embedding_forward.1} parent=1 // pred_region
      _
    $region69: #{embedding_forward.1} parent=1 // pred_fallthru
      _
    // Predicated region
    $region70: #{embedding_forward.1} parent=1 // pred_check
      _
    $region71: #{embedding_forward.1} parent=1 // pred_check_branch
      %120 = sbr.rel (0) target = $region73
    $region72: #{embedding_forward.1} parent=1 // pred_region
      %122 = vsyncadd [#allocation11], 0
      %s123 = sshll.u32 %s17, 4
      %s124 = int_to_ptr.hbm [resolvable:$true] %s123
      %s125 = sshll.u32 [#allocation10], 4
      %s126 = int_to_ptr.vmem [resolvable:$true] %s125
      %131 = dma.hbm_to_vmem [thread:$0]  %s124, 16384, %s126, [#allocation11], 256, 256, 16
    $region73: #{embedding_forward.1} parent=1 // pred_fallthru
      _
    // Predicated region
    $region74: #{embedding_forward.1} parent=1 // pred_check
      _
    $region75: #{embedding_forward.1} parent=1 // pred_check_branch
      %133 = sbr.rel (0) target = $region77
    $region76: #{embedding_forward.1} parent=1 // pred_region
      _
    $region77: #{embedding_forward.1} parent=1 // pred_fallthru
      _
    // Predicated region
    $region78: #{embedding_forward.1} parent=1 // pred_check
      _
    $region79: #{embedding_forward.1} parent=1 // pred_check_branch
      %135 = sbr.rel (0) target = $region81
    $region80: #{embedding_forward.1} parent=1 // pred_region
      _
    $region81: #{embedding_forward.1} parent=1 // pred_fallthru
      _
    // Predicated region
    $region82: #{embedding_forward.1} parent=1 // pred_check
      _
    $region83: #{embedding_forward.1} parent=1 // pred_check_branch
      %137 = sbr.rel (0) target = $region85
    $region84: #{embedding_forward.1} parent=1 // pred_region
      _
    $region85: #{embedding_forward.1} parent=1 // pred_fallthru
      _
    // Predicated region
    $region86: #{embedding_forward.1} parent=1 // pred_check
      _
    $region87: #{embedding_forward.1} parent=1 // pred_check_branch
      %139 = sbr.rel (0) target = $region89
    $region88: #{embedding_forward.1} parent=1 // pred_region
      %141 = dma.done [#allocation3], 7936
    $region89: #{embedding_forward.1} parent=1 // pred_fallthru
      _
    // Predicated region
    $region90: #{embedding_forward.1} parent=1 // pred_check
      _
    $region91: #{embedding_forward.1} parent=1 // pred_check_branch
      %143 = sbr.rel (0) target = $region93
    $region92: #{embedding_forward.1} parent=1 // pred_region
      %145 = dma.done [#allocation5], 16384
    $region93: #{embedding_forward.1} parent=1 // pred_fallthru
      _
    // Predicated region
    $region94: #{embedding_forward.1} parent=1 // pred_check
      _
    $region95: #{embedding_forward.1} parent=1 // pred_check_branch
      %147 = sbr.rel (0) target = $region97
    $region96: #{embedding_forward.1} parent=1 // pred_region
      %149 = dma.done [#allocation5], 8704
    $region97: #{embedding_forward.1} parent=1 // pred_fallthru
      _
    // Predicated region
    $region98: #{embedding_forward.1} parent=1 // pred_check
      _
    $region99: #{embedding_forward.1} parent=1 // pred_check_branch
      %151 = sbr.rel (0) target = $region101
    $region100: #{embedding_forward.1} parent=1 // pred_region
      %153 = dma.done [#allocation8], 7936
    $region101: #{embedding_forward.1} parent=1 // pred_fallthru
      _
    // Predicated region
    $region102: #{embedding_forward.1} parent=1 // pred_check
      _
    $region103: #{embedding_forward.1} parent=1 // pred_check_branch
      %155 = sbr.rel (0) target = $region105
    $region104: #{embedding_forward.1} parent=1 // pred_region
      %157 = dma.done [#allocation8], 16384
    $region105: #{embedding_forward.1} parent=1 // pred_fallthru
      _
    // Predicated region
    $region106: #{embedding_forward.1} parent=1 // pred_check
      _
    $region107: #{embedding_forward.1} parent=1 // pred_check_branch
      %159 = sbr.rel (0) target = $region109
    $region108: #{embedding_forward.1} parent=1 // pred_region
      %161 = dma.done [#allocation11], 16384
    $region109: #{embedding_forward.1} parent=1 // pred_fallthru
      _
    %v163 = vld [vmem:[%s0] sm:$0xff]
    %v164 = vld [vmem:[%s0 + $0x8] sm:$0xff]
    %v165 = vld [vmem:[%s1] sm:$0xff]
    %v166 = vld [vmem:[%s1 + $0x8] sm:$0xff]
    %v167 = vld [vmem:[%s1 + $0x10] sm:$0xff]
    %v168 = vld [vmem:[%s1 + $0x18] sm:$0xff]
    %v169 = vld [vmem:[%s2] sm:$0xff]
    %v170 = vld [vmem:[%s3] sm:$0x1]
    %v172 = vperm.slane %v170, 0
    %vm174 = vcmask 64512
    %v176 = vsel %vm174, %v163, 0
    %v179 = vsel %vm174, %v164, 0
    %181 = vmatpush.msra.mxu0 0.0
    %182 = vmatpush.msra.mxu0 0.0
    %183 = vmatpush.msra.mxu0 0.0
    %184 = vmatpush.msra.mxu0 0.0
    %185 = vmatpush.msra.mxu0 0.0
    %186 = vmatpush.msra.mxu0 0.0
    %187 = vmatpush.msra.mxu0 0.0
    %188 = vmatpush.msra.mxu0 0.0
    %189 = vmatpush.msra.mxu0 0.0
    %190 = vmatpush.msra.mxu0 0.0
    %191 = vmatpush.msra.mxu0 0.0
    %192 = vmatpush.msra.mxu0 0.0
    %193 = vmatpush.msra.mxu0 0.0
    %194 = vmatpush.msra.mxu0 0.0
    %195 = vmatpush.msra.mxu0 0.0
    %196 = vmatpush.msra.mxu0 %v169
    %197 = vmatmul.f32.gmra.mxu0 %v176
    %v198 = vpop.f32.mrf.mxu0
    %v199 = vadd.f32 %v172, %v198
    %200 = vmatmul.f32.gmra.mxu0 %v179
    %v201 = vpop.f32.mrf.mxu0
    %v202 = vadd.f32 %v172, %v201
    %203 = vdwg.mxu0
    %v204 = vand.u32 2147483647, %v199
    %vm205 = vcmp.le.f32.partialorder %v204, 0.7853982
    %vm206 = vcmp.lt.s32.totalorder %v199, 0
    %v207 = vand.u32 %v199, 2139095040
    %v208 = vshrl.u32 %v207, 23
    %v209 = vsub.s32 %v208, 127
    %v210 = vand.u32 2147483647, %v199
    %v211 = vand.u32 %v210, 8388607
    %v212 = vor.u32 %v211, 8388608
    %v213 = vsub.s32 0, %v212
    %v214 = vadd.s32 %v209, 1
    %vm215 = vcmp.gt.s32.totalorder %v214, 0
    %v216 = vsel %vm215, %v214, 0
    %v217 = vshrl.u32 %v216, 5
    %v218 = vand.u32 %v216, 31
    %v219 = vsub.s32 32, %v218
    %v220 = vshrl.u32 683565275, %v219
    %v221 = vshll.u32 683565275, %v218
    %v222 = vshrl.u32 2475754826, %v219
    %v223 = vor.u32 %v221, %v222
    %v224 = vshll.u32 2475754826, %v218
    %v225 = vshrl.u32 2131351028, %v219
    %v226 = vor.u32 %v224, %v225
    %v227 = vshll.u32 2131351028, %v218
    %v228 = vshrl.u32 2102212464, %v219
    %v229 = vor.u32 %v227, %v228
    %v230 = vshll.u32 2102212464, %v218
    %v231 = vshrl.u32 920167782, %v219
    %v232 = vor.u32 %v230, %v231
    %v233 = vshll.u32 920167782, %v218
    %v234 = vshrl.u32 1326507024, %v219
    %v235 = vor.u32 %v233, %v234
    %vm236 = vcmp.lt.s32.totalorder %v217, 1
    %vm237 = vcmp.lt.s32.totalorder %v217, 2
    %vm238 = vcmp.lt.s32.totalorder %v217, 3
    %vm239 = vcmp.lt.s32.totalorder %v217, 4
    %v240 = vsel %vm236, %v220, %v223
    %v241 = vsel %vm239, %v229, 2102212464
    %v242 = vsel %vm238, %v226, %v241
    %v243 = vsel %vm237, %v240, %v242
    %v244 = vsel %vm236, %v223, %v226
    %v245 = vsel %vm239, %v232, 920167782
    %v246 = vsel %vm238, %v229, %v245
    %v247 = vsel %vm237, %v244, %v246
    %v248 = vsel %vm236, %v226, %v229
    %v249 = vsel %vm239, %v235, 1326507024
    %v250 = vsel %vm238, %v232, %v249
    %v251 = vsel %vm237, %v248, %v250
    %v252 = vshll.u32 %v212, 8
    %v253 = vand.u32 %v252, 65535
    %v254 = vshrl.u32 %v252, 16
    %v255 = vand.u32 %v251, 65535
    %v256 = vshrl.u32 %v251, 16
    %v257 = vmul.u32 %v253, %v255
    %v258 = vmul.u32 %v253, %v256
    %v259 = vmul.u32 %v254, %v255
    %v260 = vmul.u32 %v254, %v256
    %v261 = vshll.u32 %v258, 16
    %v262 = vshrl.u32 %v258, 16
    %v263 = vshll.u32 %v259, 16
    %v264 = vshrl.u32 %v259, 16
    %vm265 = vc.u32 %v257, %v261
    %v266 = vsel %vm265, 1, 0
    %v267 = vadd.s32 %v257, %v261
    %v268 = vadd.s32 %v260, %v266
    %vm269 = vc.u32 %v267, %v263
    %v270 = vsel %vm269, 1, 0
    %v271 = vadd.s32 %v267, %v263
    %v272 = vadd.s32 %v268, %v270
    %v273 = vadd.s32 %v272, %v262
    %v274 = vadd.s32 %v273, %v264
    %v275 = vand.u32 %v252, 65535
    %v276 = vshrl.u32 %v252, 16
    %v277 = vand.u32 %v247, 65535
    %v278 = vshrl.u32 %v247, 16
    %v279 = vmul.u32 %v275, %v277
    %v280 = vmul.u32 %v275, %v278
    %v281 = vmul.u32 %v276, %v277
    %v282 = vmul.u32 %v276, %v278
    %v283 = vshll.u32 %v280, 16
    %v284 = vshrl.u32 %v280, 16
    %v285 = vshll.u32 %v281, 16
    %v286 = vshrl.u32 %v281, 16
    %vm287 = vc.u32 %v279, %v283
    %v288 = vsel %vm287, 1, 0
    %v289 = vadd.s32 %v279, %v283
    %v290 = vadd.s32 %v282, %v288
    %vm291 = vc.u32 %v289, %v285
    %v292 = vsel %vm291, 1, 0
    %v293 = vadd.s32 %v289, %v285
    %v294 = vadd.s32 %v290, %v292
    %v295 = vadd.s32 %v294, %v284
    %v296 = vadd.s32 %v295, %v286
    %v297 = vmul.u32 %v252, %v243
    %v298 = vadd.s32 %v274, %v293
    %vm299 = vc.u32 %v274, %v293
    %v300 = vadd.s32 %v296, 1
    %v301 = vsel %vm299, %v300, %v296
    %v302 = vadd.s32 %v297, %v301
    %v303 = vadd.s32 %v302, 536870912
    %v304 = vshrl.u32 %v303, 30
    %v305 = vshll.u32 %v304, 30
    %v306 = vsub.s32 %v302, %v305
    %vm307 = vcmp.lt.s32.totalorder %v306, 0
    %v308 = vsub.s32 0, %v306
    %v309 = vsel %vm307, %v308, %v306
    %v310 = vclz %v309
    %v311 = vsub.s32 %v310, 2
    %vm312 = vcmp.gt.s32.totalorder 0, %v311
    %v313 = vsel %vm312, 0, %v311
    %v314 = vsub.s32 32, %v313
    %v315 = vshll.u32 %v306, %v313
    %v316 = vshrl.u32 %v298, %v314
    %v317 = vor.u32 %v315, %v316
    %v318 = vsub.s32 4294967266, %v313
    %v319 = vadd.s32 %v318, 127
    %v320 = vshll.u32 %v319, 23
    %v321 = vor.u32 4788187, %v320
    %v322 = vand.u32 2147483647, %v321
    %v324 = vcvt.s32.f32 %v317
    %v325 = vmul.f32 %v324, %v322
    %v326 = vxor.u32 %v325, 2147483648
    %v327 = vsel %vm206, %v326, %v325
    %v328 = vsub.s32 4, %v304
    %v329 = vsel %vm206, %v328, %v304
    %v330 = vsel %vm205, %v199, %v327
    %v331 = vsel %vm205, 0, %v329
    %v332 = vmul.f32 %v330, %v330
    %v333 = vmul.f32 %v332, -0.001358992
    %v334 = vadd.f32 %v333, 0.041655596
    %v335 = vmul.f32 %v332, %v334
    %v336 = vadd.f32 %v335, -0.4999988
    %v337 = vmul.f32 %v332, %v336
    %v338 = vadd.f32 1.0, %v337
    %v339 = vmul.f32 %v330, %v330
    %v340 = vmul.f32 %v339, -0.00019511016
    %v341 = vadd.f32 %v340, 0.008332121
    %v342 = vmul.f32 %v339, %v341
    %v343 = vadd.f32 %v342, -0.16666654
    %v344 = vmul.f32 %v339, %v343
    %v345 = vadd.f32 %v344, 1.0
    %v346 = vmul.f32 %v345, %v330
    %vm347 = vweird.f32 %v199
    %v348 = vadd.s32 %v331, 3
    %v349 = vand.u32 %v348, 3
    %vm350 = vcmp.lt.s32.totalorder %v349, 2
    %vm351 = vcmp.eq.s32.totalorder %v349, 0
    %v352 = vxor.u32 %v346, 2147483648
    %v353 = vsel %vm351, %v338, %v352
    %vm354 = vcmp.eq.s32.totalorder %v349, 2
    %v355 = vxor.u32 %v338, 2147483648
    %v356 = vsel %vm354, %v355, %v346
    %v357 = vsel %vm350, %v353, %v356
    %v358 = vsel %vm347, nan, %v357
    %v359 = vand.u32 2147483647, %v202
    %vm360 = vcmp.le.f32.partialorder %v359, 0.7853982
    %vm361 = vcmp.lt.s32.totalorder %v202, 0
    %v362 = vand.u32 %v202, 2139095040
    %v363 = vshrl.u32 %v362, 23
    %v364 = vsub.s32 %v363, 127
    %v365 = vand.u32 2147483647, %v202
    %v366 = vand.u32 %v365, 8388607
    %v367 = vor.u32 %v366, 8388608
    %v368 = vsub.s32 0, %v367
    %v369 = vadd.s32 %v364, 1
    %vm370 = vcmp.gt.s32.totalorder %v369, 0
    %v371 = vsel %vm370, %v369, 0
    %v372 = vshrl.u32 %v371, 5
    %v373 = vand.u32 %v371, 31
    %v374 = vsub.s32 32, %v373
    %v375 = vshrl.u32 683565275, %v374
    %v376 = vshll.u32 683565275, %v373
    %v377 = vshrl.u32 2475754826, %v374
    %v378 = vor.u32 %v376, %v377
    %v379 = vshll.u32 2475754826, %v373
    %v380 = vshrl.u32 2131351028, %v374
    %v381 = vor.u32 %v379, %v380
    %v382 = vshll.u32 2131351028, %v373
    %v383 = vshrl.u32 2102212464, %v374
    %v384 = vor.u32 %v382, %v383
    %v385 = vshll.u32 2102212464, %v373
    %v386 = vshrl.u32 920167782, %v374
    %v387 = vor.u32 %v385, %v386
    %v388 = vshll.u32 920167782, %v373
    %v389 = vshrl.u32 1326507024, %v374
    %v390 = vor.u32 %v388, %v389
    %vm391 = vcmp.lt.s32.totalorder %v372, 1
    %vm392 = vcmp.lt.s32.totalorder %v372, 2
    %vm393 = vcmp.lt.s32.totalorder %v372, 3
    %vm394 = vcmp.lt.s32.totalorder %v372, 4
    %v395 = vsel %vm391, %v375, %v378
    %v396 = vsel %vm394, %v384, 2102212464
    %v397 = vsel %vm393, %v381, %v396
    %v398 = vsel %vm392, %v395, %v397
    %v399 = vsel %vm391, %v378, %v381
    %v400 = vsel %vm394, %v387, 920167782
    %v401 = vsel %vm393, %v384, %v400
    %v402 = vsel %vm392, %v399, %v401
    %v403 = vsel %vm391, %v381, %v384
    %v404 = vsel %vm394, %v390, 1326507024
    %v405 = vsel %vm393, %v387, %v404
    %v406 = vsel %vm392, %v403, %v405
    %v407 = vshll.u32 %v367, 8
    %v408 = vand.u32 %v407, 65535
    %v409 = vshrl.u32 %v407, 16
    %v410 = vand.u32 %v406, 65535
    %v411 = vshrl.u32 %v406, 16
    %v412 = vmul.u32 %v408, %v410
    %v413 = vmul.u32 %v408, %v411
    %v414 = vmul.u32 %v409, %v410
    %v415 = vmul.u32 %v409, %v411
    %v416 = vshll.u32 %v413, 16
    %v417 = vshrl.u32 %v413, 16
    %v418 = vshll.u32 %v414, 16
    %v419 = vshrl.u32 %v414, 16
    %vm420 = vc.u32 %v412, %v416
    %v421 = vsel %vm420, 1, 0
    %v422 = vadd.s32 %v412, %v416
    %v423 = vadd.s32 %v415, %v421
    %vm424 = vc.u32 %v422, %v418
    %v425 = vsel %vm424, 1, 0
    %v426 = vadd.s32 %v422, %v418
    %v427 = vadd.s32 %v423, %v425
    %v428 = vadd.s32 %v427, %v417
    %v429 = vadd.s32 %v428, %v419
    %v430 = vand.u32 %v407, 65535
    %v431 = vshrl.u32 %v407, 16
    %v432 = vand.u32 %v402, 65535
    %v433 = vshrl.u32 %v402, 16
    %v434 = vmul.u32 %v430, %v432
    %v435 = vmul.u32 %v430, %v433
    %v436 = vmul.u32 %v431, %v432
    %v437 = vmul.u32 %v431, %v433
    %v438 = vshll.u32 %v435, 16
    %v439 = vshrl.u32 %v435, 16
    %v440 = vshll.u32 %v436, 16
    %v441 = vshrl.u32 %v436, 16
    %vm442 = vc.u32 %v434, %v438
    %v443 = vsel %vm442, 1, 0
    %v444 = vadd.s32 %v434, %v438
    %v445 = vadd.s32 %v437, %v443
    %vm446 = vc.u32 %v444, %v440
    %v447 = vsel %vm446, 1, 0
    %v448 = vadd.s32 %v444, %v440
    %v449 = vadd.s32 %v445, %v447
    %v450 = vadd.s32 %v449, %v439
    %v451 = vadd.s32 %v450, %v441
    %v452 = vmul.u32 %v407, %v398
    %v453 = vadd.s32 %v429, %v448
    %vm454 = vc.u32 %v429, %v448
    %v455 = vadd.s32 %v451, 1
    %v456 = vsel %vm454, %v455, %v451
    %v457 = vadd.s32 %v452, %v456
    %v458 = vadd.s32 %v457, 536870912
    %v459 = vshrl.u32 %v458, 30
    %v460 = vshll.u32 %v459, 30
    %v461 = vsub.s32 %v457, %v460
    %vm462 = vcmp.lt.s32.totalorder %v461, 0
    %v463 = vsub.s32 0, %v461
    %v464 = vsel %vm462, %v463, %v461
    %v465 = vclz %v464
    %v466 = vsub.s32 %v465, 2
    %vm467 = vcmp.gt.s32.totalorder 0, %v466
    %v468 = vsel %vm467, 0, %v466
    %v469 = vsub.s32 32, %v468
    %v470 = vshll.u32 %v461, %v468
    %v471 = vshrl.u32 %v453, %v469
    %v472 = vor.u32 %v470, %v471
    %v473 = vsub.s32 4294967266, %v468
    %v474 = vadd.s32 %v473, 127
    %v475 = vshll.u32 %v474, 23
    %v476 = vor.u32 4788187, %v475
    %v477 = vand.u32 2147483647, %v476
    %v479 = vcvt.s32.f32 %v472
    %v480 = vmul.f32 %v479, %v477
    %v481 = vxor.u32 %v480, 2147483648
    %v482 = vsel %vm361, %v481, %v480
    %v483 = vsub.s32 4, %v459
    %v484 = vsel %vm361, %v483, %v459
    %v485 = vsel %vm360, %v202, %v482
    %v486 = vsel %vm360, 0, %v484
    %v487 = vmul.f32 %v485, %v485
    %v488 = vmul.f32 %v487, -0.001358992
    %v489 = vadd.f32 %v488, 0.041655596
    %v490 = vmul.f32 %v487, %v489
    %v491 = vadd.f32 %v490, -0.4999988
    %v492 = vmul.f32 %v487, %v491
    %v493 = vadd.f32 1.0, %v492
    %v494 = vmul.f32 %v485, %v485
    %v495 = vmul.f32 %v494, -0.00019511016
    %v496 = vadd.f32 %v495, 0.008332121
    %v497 = vmul.f32 %v494, %v496
    %v498 = vadd.f32 %v497, -0.16666654
    %v499 = vmul.f32 %v494, %v498
    %v500 = vadd.f32 %v499, 1.0
    %v501 = vmul.f32 %v500, %v485
    %vm502 = vweird.f32 %v202
    %v503 = vadd.s32 %v486, 3
    %v504 = vand.u32 %v503, 3
    %vm505 = vcmp.lt.s32.totalorder %v504, 2
    %vm506 = vcmp.eq.s32.totalorder %v504, 0
    %v507 = vxor.u32 %v501, 2147483648
    %v508 = vsel %vm506, %v493, %v507
    %vm509 = vcmp.eq.s32.totalorder %v504, 2
    %v510 = vxor.u32 %v493, 2147483648
    %v511 = vsel %vm509, %v510, %v501
    %v512 = vsel %vm505, %v508, %v511
    %v513 = vsel %vm502, nan, %v512
    %516 = vrot.lane.b32.xlu0 %v358, 8
    %v517 = vpop.permute.xlu0 %516
    %518 = vrot.lane.b32.xlu0 %v513, 8
    %v519 = vpop.permute.xlu0 %518
    %526 = vrot.lane.b32.xlu0 %v165, 56
    %v527 = vpop.permute.xlu0 %526
    %528 = vrot.lane.b32.xlu0 %v166, 56
    %v529 = vpop.permute.xlu0 %528
    %530 = vrot.lane.b32.xlu0 %v167, 56
    %v531 = vpop.permute.xlu0 %530
    %532 = vrot.lane.b32.xlu0 %v168, 56
    %v533 = vpop.permute.xlu0 %532
    %vm534 = vcmask 457728
    %v535 = vsel %vm534, %v527, %v529
    %v536 = vsel %vm534, %v531, %v533
    %v541 = vsel %vm174, %v163, %v517
    %v542 = vsel %vm174, %v164, %v519
    %v543 = vsel %vm534, %v541, %v527
    %v544 = vsel %vm534, %v542, %v531
    %v545 = vpack.c.bf16 %v544, %v543
    %v546 = vpack.c.bf16 %v536, %v535
    %v547 = vld [vmem:[#allocation2] sm:$0xff]
    %v548 = vld [vmem:[#allocation2 + $0x8] sm:$0xff]
    %v549 = vld [vmem:[#allocation2 + $0x10] sm:$0xff]
    %v550 = vld [vmem:[#allocation2 + $0x18] sm:$0xff]
    %v551 = vld [vmem:[#allocation2 + $0x20] sm:$0xff]
    %v552 = vld [vmem:[#allocation2 + $0x28] sm:$0xff]
    %v553 = vld [vmem:[#allocation2 + $0x30] sm:$0xff]
    %v554 = vld [vmem:[#allocation2 + $0x38] sm:$0xff]
    %v555 = vld [vmem:[#allocation2 + $0x40] sm:$0xff]
    %v556 = vld [vmem:[#allocation2 + $0x48] sm:$0xff]
    %v557 = vld [vmem:[#allocation2 + $0x50] sm:$0xff]
    %v558 = vld [vmem:[#allocation2 + $0x58] sm:$0xff]
    %v559 = vld [vmem:[#allocation2 + $0x60] sm:$0xff]
    %v560 = vld [vmem:[#allocation2 + $0x68] sm:$0xff]
    %v561 = vld [vmem:[#allocation2 + $0x70] sm:$0xff]
    %v562 = vld [vmem:[#allocation2 + $0x78] sm:$0xff]
    %v563 = vld [vmem:[#allocation2 + $0x80] sm:$0xff]
    %v564 = vld [vmem:[#allocation2 + $0x88] sm:$0xff]
    %v565 = vld [vmem:[#allocation2 + $0x90] sm:$0xff]
    %v566 = vld [vmem:[#allocation2 + $0x98] sm:$0xff]
    %v567 = vld [vmem:[#allocation2 + $0xa0] sm:$0xff]
    %v568 = vld [vmem:[#allocation2 + $0xa8] sm:$0xff]
    %v569 = vld [vmem:[#allocation2 + $0xb0] sm:$0xff]
    %v570 = vld [vmem:[#allocation2 + $0xb8] sm:$0xff]
    %v571 = vld [vmem:[#allocation2 + $0xc0] sm:$0xff]
    %v572 = vld [vmem:[#allocation2 + $0xc8] sm:$0xff]
    %v573 = vld [vmem:[#allocation2 + $0xd0] sm:$0xff]
    %v574 = vld [vmem:[#allocation2 + $0xd8] sm:$0xff]
    %v575 = vld [vmem:[#allocation2 + $0xe0] sm:$0xff]
    %v576 = vld [vmem:[#allocation2 + $0xe8] sm:$0xff]
    %v577 = vld [vmem:[#allocation2 + $0xf0] sm:$0xff]
    %v578 = vld [vmem:[#allocation2 + $0xf8] sm:$0xff]
    %v579 = vld [vmem:[#allocation2 + $0x100] sm:$0xff]
    %v580 = vld [vmem:[#allocation2 + $0x108] sm:$0xff]
    %v581 = vld [vmem:[#allocation2 + $0x110] sm:$0xff]
    %v582 = vld [vmem:[#allocation2 + $0x118] sm:$0xff]
    %v583 = vld [vmem:[#allocation2 + $0x120] sm:$0xff]
    %v584 = vld [vmem:[#allocation2 + $0x128] sm:$0xff]
    %v585 = vld [vmem:[#allocation2 + $0x130] sm:$0xff]
    %v586 = vld [vmem:[#allocation2 + $0x138] sm:$0xff]
    %v587 = vld [vmem:[#allocation2 + $0x140] sm:$0xff]
    %v588 = vld [vmem:[#allocation2 + $0x148] sm:$0xff]
    %v589 = vld [vmem:[#allocation2 + $0x150] sm:$0xff]
    %v590 = vld [vmem:[#allocation2 + $0x158] sm:$0xff]
    %v591 = vld [vmem:[#allocation2 + $0x160] sm:$0xff]
    %v592 = vld [vmem:[#allocation2 + $0x168] sm:$0xff]
    %v593 = vld [vmem:[#allocation2 + $0x170] sm:$0xff]
    %v594 = vld [vmem:[#allocation2 + $0x178] sm:$0xff]
    %v595 = vld [vmem:[#allocation2 + $0x180] sm:$0xff]
    %v596 = vld [vmem:[#allocation2 + $0x188] sm:$0xff]
    %v597 = vld [vmem:[#allocation2 + $0x190] sm:$0xff]
    %v598 = vld [vmem:[#allocation2 + $0x198] sm:$0xff]
    %v599 = vld [vmem:[#allocation2 + $0x1a0] sm:$0xff]
    %v600 = vld [vmem:[#allocation2 + $0x1a8] sm:$0xff]
    %v601 = vld [vmem:[#allocation2 + $0x1b0] sm:$0xff]
    %v602 = vld [vmem:[#allocation2 + $0x1b8] sm:$0xff]
    %v603 = vld [vmem:[#allocation2 + $0x1c0] sm:$0xff]
    %v604 = vld [vmem:[#allocation2 + $0x1c8] sm:$0xff]
    %v605 = vld [vmem:[#allocation2 + $0x1d0] sm:$0xff]
    %v606 = vld [vmem:[#allocation2 + $0x1d8] sm:$0xff]
    %v607 = vld [vmem:[#allocation2 + $0x1e0] sm:$0xff]
    %v608 = vld [vmem:[#allocation2 + $0x1e8] sm:$0xff]
    %v609 = vld [vmem:[%s5] sm:$0xf]
    %v611 = vperm.slane %v609, 0
    %v612 = vperm.slane %v609, 1
    %v613 = vperm.slane %v609, 2
    %v614 = vperm.slane %v609, 3
    %v681 = vunpack.c.l.b16 %v547
    %v682 = vunpack.c.h.b16 %v547
    %v683 = vunpack.c.l.b16 %v548
    %v684 = vunpack.c.h.b16 %v548
    %v685 = vunpack.c.l.b16 %v549
    %v686 = vunpack.c.h.b16 %v549
    %v687 = vunpack.c.l.b16 %v550
    %v688 = vunpack.c.h.b16 %v550
    %v689 = vunpack.c.l.b16 %v551
    %v690 = vunpack.c.h.b16 %v551
    %v691 = vunpack.c.l.b16 %v552
    %v692 = vunpack.c.h.b16 %v552
    %v693 = vunpack.c.l.b16 %v553
    %v694 = vunpack.c.h.b16 %v553
    %v695 = vunpack.c.l.b16 %v554
    %v696 = vunpack.c.h.b16 %v554
    %v697 = vunpack.c.l.b16 %v555
    %v698 = vunpack.c.h.b16 %v555
    %v699 = vunpack.c.l.b16 %v556
    %v700 = vunpack.c.h.b16 %v556
    %v701 = vunpack.c.l.b16 %v557
    %v702 = vunpack.c.h.b16 %v557
    %v703 = vunpack.c.l.b16 %v558
    %v704 = vunpack.c.h.b16 %v558
    %v705 = vunpack.c.l.b16 %v559
    %v706 = vunpack.c.h.b16 %v559
    %v707 = vunpack.c.l.b16 %v560
    %v708 = vunpack.c.h.b16 %v560
    %v709 = vunpack.c.l.b16 %v561
    %v710 = vunpack.c.h.b16 %v561
    %v711 = vunpack.c.l.b16 %v562
    %v712 = vunpack.c.h.b16 %v562
    %v713 = vunpack.c.l.b16 %v563
    %v714 = vunpack.c.h.b16 %v563
    %v715 = vunpack.c.l.b16 %v564
    %v716 = vunpack.c.h.b16 %v564
    %v717 = vunpack.c.l.b16 %v565
    %v718 = vunpack.c.h.b16 %v565
    %v719 = vunpack.c.l.b16 %v566
    %v720 = vunpack.c.h.b16 %v566
    %v721 = vunpack.c.l.b16 %v567
    %v722 = vunpack.c.h.b16 %v567
    %v723 = vunpack.c.l.b16 %v568
    %v724 = vunpack.c.h.b16 %v568
    %v725 = vunpack.c.l.b16 %v569
    %v726 = vunpack.c.h.b16 %v569
    %v727 = vunpack.c.l.b16 %v570
    %v728 = vunpack.c.h.b16 %v570
    %v729 = vunpack.c.l.b16 %v571
    %v730 = vunpack.c.h.b16 %v571
    %v731 = vunpack.c.l.b16 %v572
    %v732 = vunpack.c.h.b16 %v572
    %v733 = vunpack.c.l.b16 %v573
    %v734 = vunpack.c.h.b16 %v573
    %v735 = vunpack.c.l.b16 %v574
    %v736 = vunpack.c.h.b16 %v574
    %v737 = vunpack.c.l.b16 %v575
    %v738 = vunpack.c.h.b16 %v575
    %v739 = vunpack.c.l.b16 %v576
    %v740 = vunpack.c.h.b16 %v576
    %v741 = vunpack.c.l.b16 %v577
    %v742 = vunpack.c.h.b16 %v577
    %v743 = vunpack.c.l.b16 %v578
    %v744 = vunpack.c.h.b16 %v578
    %v745 = vunpack.c.l.b16 %v579
    %v746 = vunpack.c.h.b16 %v579
    %v747 = vunpack.c.l.b16 %v580
    %v748 = vunpack.c.h.b16 %v580
    %v749 = vunpack.c.l.b16 %v581
    %v750 = vunpack.c.h.b16 %v581
    %v751 = vunpack.c.l.b16 %v582
    %v752 = vunpack.c.h.b16 %v582
    %v753 = vunpack.c.l.b16 %v583
    %v754 = vunpack.c.h.b16 %v583
    %v755 = vunpack.c.l.b16 %v584
    %v756 = vunpack.c.h.b16 %v584
    %v757 = vunpack.c.l.b16 %v585
    %v758 = vunpack.c.h.b16 %v585
    %v759 = vunpack.c.l.b16 %v586
    %v760 = vunpack.c.h.b16 %v586
    %v761 = vunpack.c.l.b16 %v587
    %v762 = vunpack.c.h.b16 %v587
    %v763 = vunpack.c.l.b16 %v588
    %v764 = vunpack.c.h.b16 %v588
    %v765 = vunpack.c.l.b16 %v589
    %v766 = vunpack.c.h.b16 %v589
    %v767 = vunpack.c.l.b16 %v590
    %v768 = vunpack.c.h.b16 %v590
    %v769 = vunpack.c.l.b16 %v591
    %v770 = vunpack.c.h.b16 %v591
    %v771 = vunpack.c.l.b16 %v592
    %v772 = vunpack.c.h.b16 %v592
    %v773 = vunpack.c.l.b16 %v593
    %v774 = vunpack.c.h.b16 %v593
    %v775 = vunpack.c.l.b16 %v594
    %v776 = vunpack.c.h.b16 %v594
    %v777 = vunpack.c.l.b16 %v595
    %v778 = vunpack.c.h.b16 %v595
    %v779 = vunpack.c.l.b16 %v596
    %v780 = vunpack.c.h.b16 %v596
    %v781 = vunpack.c.l.b16 %v597
    %v782 = vunpack.c.h.b16 %v597
    %v783 = vunpack.c.l.b16 %v598
    %v784 = vunpack.c.h.b16 %v598
    %v785 = vunpack.c.l.b16 %v599
    %v786 = vunpack.c.h.b16 %v599
    %v787 = vunpack.c.l.b16 %v600
    %v788 = vunpack.c.h.b16 %v600
    %v789 = vunpack.c.l.b16 %v601
    %v790 = vunpack.c.h.b16 %v601
    %v791 = vunpack.c.l.b16 %v602
    %v792 = vunpack.c.h.b16 %v602
    %v793 = vunpack.c.l.b16 %v603
    %v794 = vunpack.c.h.b16 %v603
    %v795 = vunpack.c.l.b16 %v604
    %v796 = vunpack.c.h.b16 %v604
    %v797 = vunpack.c.l.b16 %v605
    %v798 = vunpack.c.h.b16 %v605
    %v799 = vunpack.c.l.b16 %v606
    %v800 = vunpack.c.h.b16 %v606
    %v801 = vunpack.c.l.b16 %v607
    %v802 = vunpack.c.h.b16 %v607
    %v803 = vunpack.c.l.b16 %v608
    %v804 = vunpack.c.h.b16 %v608
    %v805 = vpack.c.b16 %v685, %v681
    %v806 = vpack.c.b16 %v686, %v682
    %v807 = vpack.c.b16 %v687, %v683
    %v808 = vpack.c.b16 %v688, %v684
    %v809 = vpack.c.b16 %v693, %v689
    %v810 = vpack.c.b16 %v694, %v690
    %v811 = vpack.c.b16 %v695, %v691
    %v812 = vpack.c.b16 %v696, %v692
    %v813 = vpack.c.b16 %v701, %v697
    %v814 = vpack.c.b16 %v702, %v698
    %v815 = vpack.c.b16 %v703, %v699
    %v816 = vpack.c.b16 %v704, %v700
    %v817 = vpack.c.b16 %v709, %v705
    %v818 = vpack.c.b16 %v710, %v706
    %v819 = vpack.c.b16 %v711, %v707
    %v820 = vpack.c.b16 %v712, %v708
    %v821 = vpack.c.b16 %v717, %v713
    %v822 = vpack.c.b16 %v718, %v714
    %v823 = vpack.c.b16 %v719, %v715
    %v824 = vpack.c.b16 %v720, %v716
    %v825 = vpack.c.b16 %v725, %v721
    %v826 = vpack.c.b16 %v726, %v722
    %v827 = vpack.c.b16 %v727, %v723
    %v828 = vpack.c.b16 %v728, %v724
    %v829 = vpack.c.b16 %v733, %v729
    %v830 = vpack.c.b16 %v734, %v730
    %v831 = vpack.c.b16 %v735, %v731
    %v832 = vpack.c.b16 %v736, %v732
    %v833 = vpack.c.b16 %v741, %v737
    %v834 = vpack.c.b16 %v742, %v738
    %v835 = vpack.c.b16 %v743, %v739
    %v836 = vpack.c.b16 %v744, %v740
    %v837 = vpack.c.b16 %v749, %v745
    %v838 = vpack.c.b16 %v750, %v746
    %v839 = vpack.c.b16 %v751, %v747
    %v840 = vpack.c.b16 %v752, %v748
    %v841 = vpack.c.b16 %v757, %v753
    %v842 = vpack.c.b16 %v758, %v754
    %v843 = vpack.c.b16 %v759, %v755
    %v844 = vpack.c.b16 %v760, %v756
    %v845 = vpack.c.b16 %v765, %v761
    %v846 = vpack.c.b16 %v766, %v762
    %v847 = vpack.c.b16 %v767, %v763
    %v848 = vpack.c.b16 %v768, %v764
    %v849 = vpack.c.b16 %v773, %v769
    %v850 = vpack.c.b16 %v774, %v770
    %v851 = vpack.c.b16 %v775, %v771
    %v852 = vpack.c.b16 %v776, %v772
    %v853 = vpack.c.b16 %v781, %v777
    %v854 = vpack.c.b16 %v782, %v778
    %v855 = vpack.c.b16 %v783, %v779
    %v856 = vpack.c.b16 %v784, %v780
    %v857 = vpack.c.b16 %v789, %v785
    %v858 = vpack.c.b16 %v790, %v786
    %v859 = vpack.c.b16 %v791, %v787
    %v860 = vpack.c.b16 %v792, %v788
    %v861 = vpack.c.b16 %v797, %v793
    %v862 = vpack.c.b16 %v798, %v794
    %v863 = vpack.c.b16 %v799, %v795
    %v864 = vpack.c.b16 %v800, %v796
    %v865 = vpack.c.b16 %v801, %v801
    %v866 = vpack.c.b16 %v802, %v802
    %v867 = vpack.c.b16 %v803, %v803
    %v868 = vpack.c.b16 %v804, %v804
    %vm929 = vcmask 982016
    %v931 = vsel %vm929, %v546, 0
    %vm933 = vcmask 1043456
    %v935 = vsel %vm933, %v865, 0
    %v938 = vsel %vm933, %v866, 0
    %v941 = vsel %vm933, %v867, 0
    %v944 = vsel %vm933, %v868, 0
    %946 = vmatpush.bf16.msra.mxu0 %v833
    %947 = vmatpush.bf16.msra.mxu0 %v829
    %948 = vmatpush.bf16.msra.mxu0 %v825
    %949 = vmatpush.bf16.msra.mxu0 %v821
    %950 = vmatpush.bf16.msra.mxu0 %v817
    %951 = vmatpush.bf16.msra.mxu0 %v813
    %952 = vmatpush.bf16.msra.mxu0 %v809
    %953 = vmatpush.bf16.msra.mxu0 %v805
    %954 = vmatmul.bf16.gmra.mxu0 %v545
    %v955 = vpop.f32.mrf.mxu0
    %v956 = vadd.f32 %v611, %v955
    %v957 = vpop.f32.mrf.mxu0
    %v958 = vadd.f32 %v611, %v957
    %959 = vdwg.mxu0
    %960 = vmatpush.bf16.msra.mxu0 %v935
    %961 = vmatpush.bf16.msra.mxu0 %v861
    %962 = vmatpush.bf16.msra.mxu0 %v857
    %963 = vmatpush.bf16.msra.mxu0 %v853
    %964 = vmatpush.bf16.msra.mxu0 %v849
    %965 = vmatpush.bf16.msra.mxu0 %v845
    %966 = vmatpush.bf16.msra.mxu0 %v841
    %967 = vmatpush.bf16.msra.mxu0 %v837
    %968 = vmatmul.bf16.gmra.mxu0 %v931
    %v969 = vpop.f32.mrf.mxu0
    %v970 = vadd.f32 %v956, %v969
    %v971 = vpop.f32.mrf.mxu0
    %v972 = vadd.f32 %v958, %v971
    %973 = vdwg.mxu0
    %974 = vmatpush.bf16.msra.mxu0 %v834
    %975 = vmatpush.bf16.msra.mxu0 %v830
    %976 = vmatpush.bf16.msra.mxu0 %v826
    %977 = vmatpush.bf16.msra.mxu0 %v822
    %978 = vmatpush.bf16.msra.mxu0 %v818
    %979 = vmatpush.bf16.msra.mxu0 %v814
    %980 = vmatpush.bf16.msra.mxu0 %v810
    %981 = vmatpush.bf16.msra.mxu0 %v806
    %982 = vmatmul.bf16.gmra.mxu0 %v545
    %v983 = vpop.f32.mrf.mxu0
    %v984 = vadd.f32 %v612, %v983
    %v985 = vpop.f32.mrf.mxu0
    %v986 = vadd.f32 %v612, %v985
    %987 = vdwg.mxu0
    %988 = vmatpush.bf16.msra.mxu0 %v938
    %989 = vmatpush.bf16.msra.mxu0 %v862
    %990 = vmatpush.bf16.msra.mxu0 %v858
    %991 = vmatpush.bf16.msra.mxu0 %v854
    %992 = vmatpush.bf16.msra.mxu0 %v850
    %993 = vmatpush.bf16.msra.mxu0 %v846
    %994 = vmatpush.bf16.msra.mxu0 %v842
    %995 = vmatpush.bf16.msra.mxu0 %v838
    %996 = vmatmul.bf16.gmra.mxu0 %v931
    %v997 = vpop.f32.mrf.mxu0
    %v998 = vadd.f32 %v984, %v997
    %v999 = vpop.f32.mrf.mxu0
    %v1000 = vadd.f32 %v986, %v999
    %1001 = vdwg.mxu0
    %1002 = vmatpush.bf16.msra.mxu0 %v835
    %1003 = vmatpush.bf16.msra.mxu0 %v831
    %1004 = vmatpush.bf16.msra.mxu0 %v827
    %1005 = vmatpush.bf16.msra.mxu0 %v823
    %1006 = vmatpush.bf16.msra.mxu0 %v819
    %1007 = vmatpush.bf16.msra.mxu0 %v815
    %1008 = vmatpush.bf16.msra.mxu0 %v811
    %1009 = vmatpush.bf16.msra.mxu0 %v807
    %1010 = vmatmul.bf16.gmra.mxu0 %v545
    %v1011 = vpop.f32.mrf.mxu0
    %v1012 = vadd.f32 %v613, %v1011
    %v1013 = vpop.f32.mrf.mxu0
    %v1014 = vadd.f32 %v613, %v1013
    %1015 = vdwg.mxu0
    %1016 = vmatpush.bf16.msra.mxu0 %v941
    %1017 = vmatpush.bf16.msra.mxu0 %v863
    %1018 = vmatpush.bf16.msra.mxu0 %v859
    %1019 = vmatpush.bf16.msra.mxu0 %v855
    %1020 = vmatpush.bf16.msra.mxu0 %v851
    %1021 = vmatpush.bf16.msra.mxu0 %v847
    %1022 = vmatpush.bf16.msra.mxu0 %v843
    %1023 = vmatpush.bf16.msra.mxu0 %v839
    %1024 = vmatmul.bf16.gmra.mxu0 %v931
    %v1025 = vpop.f32.mrf.mxu0
    %v1026 = vadd.f32 %v1012, %v1025
    %v1027 = vpop.f32.mrf.mxu0
    %v1028 = vadd.f32 %v1014, %v1027
    %1029 = vdwg.mxu0
    %1030 = vmatpush.bf16.msra.mxu0 %v836
    %1031 = vmatpush.bf16.msra.mxu0 %v832
    %1032 = vmatpush.bf16.msra.mxu0 %v828
    %1033 = vmatpush.bf16.msra.mxu0 %v824
    %1034 = vmatpush.bf16.msra.mxu0 %v820
    %1035 = vmatpush.bf16.msra.mxu0 %v816
    %1036 = vmatpush.bf16.msra.mxu0 %v812
    %1037 = vmatpush.bf16.msra.mxu0 %v808
    %1038 = vmatmul.bf16.gmra.mxu0 %v545
    %v1039 = vpop.f32.mrf.mxu0
    %v1040 = vadd.f32 %v614, %v1039
    %v1041 = vpop.f32.mrf.mxu0
    %v1042 = vadd.f32 %v614, %v1041
    %1043 = vdwg.mxu0
    %1044 = vmatpush.bf16.msra.mxu0 %v944
    %1045 = vmatpush.bf16.msra.mxu0 %v864
    %1046 = vmatpush.bf16.msra.mxu0 %v860
    %1047 = vmatpush.bf16.msra.mxu0 %v856
    %1048 = vmatpush.bf16.msra.mxu0 %v852
    %1049 = vmatpush.bf16.msra.mxu0 %v848
    %1050 = vmatpush.bf16.msra.mxu0 %v844
    %1051 = vmatpush.bf16.msra.mxu0 %v840
    %1052 = vmatmul.bf16.gmra.mxu0 %v931
    %v1053 = vpop.f32.mrf.mxu0
    %v1054 = vadd.f32 %v1040, %v1053
    %v1055 = vpop.f32.mrf.mxu0
    %v1056 = vadd.f32 %v1042, %v1055
    %1057 = vdwg.mxu0
    %v1058 = vmax.f32 %v970, 0.0
    %v1059 = vmax.f32 %v998, 0.0
    %v1060 = vmax.f32 %v1026, 0.0
    %v1061 = vmax.f32 %v1054, 0.0
    %v1062 = vmax.f32 %v972, 0.0
    %v1063 = vmax.f32 %v1000, 0.0
    %v1064 = vmax.f32 %v1028, 0.0
    %v1065 = vmax.f32 %v1056, 0.0
    %v1066 = vpack.c.bf16 %v1062, %v1058
    %v1067 = vpack.c.bf16 %v1063, %v1059
    %v1068 = vpack.c.bf16 %v1064, %v1060
    %v1069 = vpack.c.bf16 %v1065, %v1061
    %v1070 = vld [vmem:[%s6] sm:$0xff]
    %v1071 = vld [vmem:[%s6 + $0x8] sm:$0xff]
    %v1072 = vld [vmem:[%s6 + $0x10] sm:$0xff]
    %v1073 = vld [vmem:[%s6 + $0x18] sm:$0xff]
    %v1074 = vld [vmem:[%s6 + $0x20] sm:$0xff]
    %v1075 = vld [vmem:[%s6 + $0x28] sm:$0xff]
    %v1076 = vld [vmem:[%s6 + $0x30] sm:$0xff]
    %v1077 = vld [vmem:[%s6 + $0x38] sm:$0xff]
    %v1078 = vld [vmem:[%s6 + $0x40] sm:$0xff]
    %v1079 = vld [vmem:[%s6 + $0x48] sm:$0xff]
    %v1080 = vld [vmem:[%s6 + $0x50] sm:$0xff]
    %v1081 = vld [vmem:[%s6 + $0x58] sm:$0xff]
    %v1082 = vld [vmem:[%s6 + $0x60] sm:$0xff]
    %v1083 = vld [vmem:[%s6 + $0x68] sm:$0xff]
    %v1084 = vld [vmem:[%s6 + $0x70] sm:$0xff]
    %v1085 = vld [vmem:[%s6 + $0x78] sm:$0xff]
    %v1086 = vld [vmem:[%s6 + $0x80] sm:$0xff]
    %v1087 = vld [vmem:[%s6 + $0x88] sm:$0xff]
    %v1088 = vld [vmem:[%s6 + $0x90] sm:$0xff]
    %v1089 = vld [vmem:[%s6 + $0x98] sm:$0xff]
    %v1090 = vld [vmem:[%s6 + $0xa0] sm:$0xff]
    %v1091 = vld [vmem:[%s6 + $0xa8] sm:$0xff]
    %v1092 = vld [vmem:[%s6 + $0xb0] sm:$0xff]
    %v1093 = vld [vmem:[%s6 + $0xb8] sm:$0xff]
    %v1094 = vld [vmem:[%s6 + $0xc0] sm:$0xff]
    %v1095 = vld [vmem:[%s6 + $0xc8] sm:$0xff]
    %v1096 = vld [vmem:[%s6 + $0xd0] sm:$0xff]
    %v1097 = vld [vmem:[%s6 + $0xd8] sm:$0xff]
    %v1098 = vld [vmem:[%s6 + $0xe0] sm:$0xff]
    %v1099 = vld [vmem:[%s6 + $0xe8] sm:$0xff]
    %v1100 = vld [vmem:[%s6 + $0xf0] sm:$0xff]
    %v1101 = vld [vmem:[%s6 + $0xf8] sm:$0xff]
    %v1102 = vld [vmem:[%s6 + $0x100] sm:$0xff]
    %v1103 = vld [vmem:[%s6 + $0x108] sm:$0xff]
    %v1104 = vld [vmem:[%s6 + $0x110] sm:$0xff]
    %v1105 = vld [vmem:[%s6 + $0x118] sm:$0xff]
    %v1106 = vld [vmem:[%s6 + $0x120] sm:$0xff]
    %v1107 = vld [vmem:[%s6 + $0x128] sm:$0xff]
    %v1108 = vld [vmem:[%s6 + $0x130] sm:$0xff]
    %v1109 = vld [vmem:[%s6 + $0x138] sm:$0xff]
    %v1110 = vld [vmem:[%s6 + $0x140] sm:$0xff]
    %v1111 = vld [vmem:[%s6 + $0x148] sm:$0xff]
    %v1112 = vld [vmem:[%s6 + $0x150] sm:$0xff]
    %v1113 = vld [vmem:[%s6 + $0x158] sm:$0xff]
    %v1114 = vld [vmem:[%s6 + $0x160] sm:$0xff]
    %v1115 = vld [vmem:[%s6 + $0x168] sm:$0xff]
    %v1116 = vld [vmem:[%s6 + $0x170] sm:$0xff]
    %v1117 = vld [vmem:[%s6 + $0x178] sm:$0xff]
    %v1118 = vld [vmem:[%s6 + $0x180] sm:$0xff]
    %v1119 = vld [vmem:[%s6 + $0x188] sm:$0xff]
    %v1120 = vld [vmem:[%s6 + $0x190] sm:$0xff]
    %v1121 = vld [vmem:[%s6 + $0x198] sm:$0xff]
    %v1122 = vld [vmem:[%s6 + $0x1a0] sm:$0xff]
    %v1123 = vld [vmem:[%s6 + $0x1a8] sm:$0xff]
    %v1124 = vld [vmem:[%s6 + $0x1b0] sm:$0xff]
    %v1125 = vld [vmem:[%s6 + $0x1b8] sm:$0xff]
    %v1126 = vld [vmem:[%s6 + $0x1c0] sm:$0xff]
    %v1127 = vld [vmem:[%s6 + $0x1c8] sm:$0xff]
    %v1128 = vld [vmem:[%s6 + $0x1d0] sm:$0xff]
    %v1129 = vld [vmem:[%s6 + $0x1d8] sm:$0xff]
    %v1130 = vld [vmem:[%s6 + $0x1e0] sm:$0xff]
    %v1131 = vld [vmem:[%s6 + $0x1e8] sm:$0xff]
    %v1132 = vld [vmem:[%s6 + $0x1f0] sm:$0xff]
    %v1133 = vld [vmem:[%s6 + $0x1f8] sm:$0xff]
    %v1134 = vld [vmem:[%s6 + $0x200] sm:$0xff]
    %v1135 = vld [vmem:[%s6 + $0x208] sm:$0xff]
    %v1136 = vld [vmem:[%s6 + $0x210] sm:$0xff]
    %v1137 = vld [vmem:[%s6 + $0x218] sm:$0xff]
    %v1138 = vld [vmem:[%s6 + $0x220] sm:$0xff]
    %v1139 = vld [vmem:[%s6 + $0x228] sm:$0xff]
    %v1140 = vld [vmem:[%s6 + $0x230] sm:$0xff]
    %v1141 = vld [vmem:[%s6 + $0x238] sm:$0xff]
    %v1142 = vld [vmem:[%s6 + $0x240] sm:$0xff]
    %v1143 = vld [vmem:[%s6 + $0x248] sm:$0xff]
    %v1144 = vld [vmem:[%s6 + $0x250] sm:$0xff]
    %v1145 = vld [vmem:[%s6 + $0x258] sm:$0xff]
    %v1146 = vld [vmem:[%s6 + $0x260] sm:$0xff]
    %v1147 = vld [vmem:[%s6 + $0x268] sm:$0xff]
    %v1148 = vld [vmem:[%s6 + $0x270] sm:$0xff]
    %v1149 = vld [vmem:[%s6 + $0x278] sm:$0xff]
    %v1150 = vld [vmem:[%s6 + $0x280] sm:$0xff]
    %v1151 = vld [vmem:[%s6 + $0x288] sm:$0xff]
    %v1152 = vld [vmem:[%s6 + $0x290] sm:$0xff]
    %v1153 = vld [vmem:[%s6 + $0x298] sm:$0xff]
    %v1154 = vld [vmem:[%s6 + $0x2a0] sm:$0xff]
    %v1155 = vld [vmem:[%s6 + $0x2a8] sm:$0xff]
    %v1156 = vld [vmem:[%s6 + $0x2b0] sm:$0xff]
    %v1157 = vld [vmem:[%s6 + $0x2b8] sm:$0xff]
    %v1158 = vld [vmem:[%s6 + $0x2c0] sm:$0xff]
    %v1159 = vld [vmem:[%s6 + $0x2c8] sm:$0xff]
    %v1160 = vld [vmem:[%s6 + $0x2d0] sm:$0xff]
    %v1161 = vld [vmem:[%s6 + $0x2d8] sm:$0xff]
    %v1162 = vld [vmem:[%s6 + $0x2e0] sm:$0xff]
    %v1163 = vld [vmem:[%s6 + $0x2e8] sm:$0xff]
    %v1164 = vld [vmem:[%s6 + $0x2f0] sm:$0xff]
    %v1165 = vld [vmem:[%s6 + $0x2f8] sm:$0xff]
    %v1166 = vld [vmem:[%s6 + $0x300] sm:$0xff]
    %v1167 = vld [vmem:[%s6 + $0x308] sm:$0xff]
    %v1168 = vld [vmem:[%s6 + $0x310] sm:$0xff]
    %v1169 = vld [vmem:[%s6 + $0x318] sm:$0xff]
    %v1170 = vld [vmem:[%s6 + $0x320] sm:$0xff]
    %v1171 = vld [vmem:[%s6 + $0x328] sm:$0xff]
    %v1172 = vld [vmem:[%s6 + $0x330] sm:$0xff]
    %v1173 = vld [vmem:[%s6 + $0x338] sm:$0xff]
    %v1174 = vld [vmem:[%s6 + $0x340] sm:$0xff]
    %v1175 = vld [vmem:[%s6 + $0x348] sm:$0xff]
    %v1176 = vld [vmem:[%s6 + $0x350] sm:$0xff]
    %v1177 = vld [vmem:[%s6 + $0x358] sm:$0xff]
    %v1178 = vld [vmem:[%s6 + $0x360] sm:$0xff]
    %v1179 = vld [vmem:[%s6 + $0x368] sm:$0xff]
    %v1180 = vld [vmem:[%s6 + $0x370] sm:$0xff]
    %v1181 = vld [vmem:[%s6 + $0x378] sm:$0xff]
    %v1182 = vld [vmem:[%s6 + $0x380] sm:$0xff]
    %v1183 = vld [vmem:[%s6 + $0x388] sm:$0xff]
    %v1184 = vld [vmem:[%s6 + $0x390] sm:$0xff]
    %v1185 = vld [vmem:[%s6 + $0x398] sm:$0xff]
    %v1186 = vld [vmem:[%s6 + $0x3a0] sm:$0xff]
    %v1187 = vld [vmem:[%s6 + $0x3a8] sm:$0xff]
    %v1188 = vld [vmem:[%s6 + $0x3b0] sm:$0xff]
    %v1189 = vld [vmem:[%s6 + $0x3b8] sm:$0xff]
    %v1190 = vld [vmem:[%s6 + $0x3c0] sm:$0xff]
    %v1191 = vld [vmem:[%s6 + $0x3c8] sm:$0xff]
    %v1192 = vld [vmem:[%s6 + $0x3d0] sm:$0xff]
    %v1193 = vld [vmem:[%s6 + $0x3d8] sm:$0xff]
    %v1194 = vld [vmem:[%s6 + $0x3e0] sm:$0xff]
    %v1195 = vld [vmem:[%s6 + $0x3e8] sm:$0xff]
    %v1196 = vld [vmem:[%s6 + $0x3f0] sm:$0xff]
    %v1197 = vld [vmem:[%s6 + $0x3f8] sm:$0xff]
    %v1198 = vld [vmem:[%s7] sm:$0xf]
    %v1200 = vperm.slane %v1198, 0
    %v1201 = vperm.slane %v1198, 1
    %v1202 = vperm.slane %v1198, 2
    %v1203 = vperm.slane %v1198, 3
    %v1336 = vunpack.c.l.b16 %v1070
    %v1337 = vunpack.c.h.b16 %v1070
    %v1338 = vunpack.c.l.b16 %v1071
    %v1339 = vunpack.c.h.b16 %v1071
    %v1340 = vunpack.c.l.b16 %v1072
    %v1341 = vunpack.c.h.b16 %v1072
    %v1342 = vunpack.c.l.b16 %v1073
    %v1343 = vunpack.c.h.b16 %v1073
    %v1344 = vunpack.c.l.b16 %v1074
    %v1345 = vunpack.c.h.b16 %v1074
    %v1346 = vunpack.c.l.b16 %v1075
    %v1347 = vunpack.c.h.b16 %v1075
    %v1348 = vunpack.c.l.b16 %v1076
    %v1349 = vunpack.c.h.b16 %v1076
    %v1350 = vunpack.c.l.b16 %v1077
    %v1351 = vunpack.c.h.b16 %v1077
    %v1352 = vunpack.c.l.b16 %v1078
    %v1353 = vunpack.c.h.b16 %v1078
    %v1354 = vunpack.c.l.b16 %v1079
    %v1355 = vunpack.c.h.b16 %v1079
    %v1356 = vunpack.c.l.b16 %v1080
    %v1357 = vunpack.c.h.b16 %v1080
    %v1358 = vunpack.c.l.b16 %v1081
    %v1359 = vunpack.c.h.b16 %v1081
    %v1360 = vunpack.c.l.b16 %v1082
    %v1361 = vunpack.c.h.b16 %v1082
    %v1362 = vunpack.c.l.b16 %v1083
    %v1363 = vunpack.c.h.b16 %v1083
    %v1364 = vunpack.c.l.b16 %v1084
    %v1365 = vunpack.c.h.b16 %v1084
    %v1366 = vunpack.c.l.b16 %v1085
    %v1367 = vunpack.c.h.b16 %v1085
    %v1368 = vunpack.c.l.b16 %v1086
    %v1369 = vunpack.c.h.b16 %v1086
    %v1370 = vunpack.c.l.b16 %v1087
    %v1371 = vunpack.c.h.b16 %v1087
    %v1372 = vunpack.c.l.b16 %v1088
    %v1373 = vunpack.c.h.b16 %v1088
    %v1374 = vunpack.c.l.b16 %v1089
    %v1375 = vunpack.c.h.b16 %v1089
    %v1376 = vunpack.c.l.b16 %v1090
    %v1377 = vunpack.c.h.b16 %v1090
    %v1378 = vunpack.c.l.b16 %v1091
    %v1379 = vunpack.c.h.b16 %v1091
    %v1380 = vunpack.c.l.b16 %v1092
    %v1381 = vunpack.c.h.b16 %v1092
    %v1382 = vunpack.c.l.b16 %v1093
    %v1383 = vunpack.c.h.b16 %v1093
    %v1384 = vunpack.c.l.b16 %v1094
    %v1385 = vunpack.c.h.b16 %v1094
    %v1386 = vunpack.c.l.b16 %v1095
    %v1387 = vunpack.c.h.b16 %v1095
    %v1388 = vunpack.c.l.b16 %v1096
    %v1389 = vunpack.c.h.b16 %v1096
    %v1390 = vunpack.c.l.b16 %v1097
    %v1391 = vunpack.c.h.b16 %v1097
    %v1392 = vunpack.c.l.b16 %v1098
    %v1393 = vunpack.c.h.b16 %v1098
    %v1394 = vunpack.c.l.b16 %v1099
    %v1395 = vunpack.c.h.b16 %v1099
    %v1396 = vunpack.c.l.b16 %v1100
    %v1397 = vunpack.c.h.b16 %v1100
    %v1398 = vunpack.c.l.b16 %v1101
    %v1399 = vunpack.c.h.b16 %v1101
    %v1400 = vunpack.c.l.b16 %v1102
    %v1401 = vunpack.c.h.b16 %v1102
    %v1402 = vunpack.c.l.b16 %v1103
    %v1403 = vunpack.c.h.b16 %v1103
    %v1404 = vunpack.c.l.b16 %v1104
    %v1405 = vunpack.c.h.b16 %v1104
    %v1406 = vunpack.c.l.b16 %v1105
    %v1407 = vunpack.c.h.b16 %v1105
    %v1408 = vunpack.c.l.b16 %v1106
    %v1409 = vunpack.c.h.b16 %v1106
    %v1410 = vunpack.c.l.b16 %v1107
    %v1411 = vunpack.c.h.b16 %v1107
    %v1412 = vunpack.c.l.b16 %v1108
    %v1413 = vunpack.c.h.b16 %v1108
    %v1414 = vunpack.c.l.b16 %v1109
    %v1415 = vunpack.c.h.b16 %v1109
    %v1416 = vunpack.c.l.b16 %v1110
    %v1417 = vunpack.c.h.b16 %v1110
    %v1418 = vunpack.c.l.b16 %v1111
    %v1419 = vunpack.c.h.b16 %v1111
    %v1420 = vunpack.c.l.b16 %v1112
    %v1421 = vunpack.c.h.b16 %v1112
    %v1422 = vunpack.c.l.b16 %v1113
    %v1423 = vunpack.c.h.b16 %v1113
    %v1424 = vunpack.c.l.b16 %v1114
    %v1425 = vunpack.c.h.b16 %v1114
    %v1426 = vunpack.c.l.b16 %v1115
    %v1427 = vunpack.c.h.b16 %v1115
    %v1428 = vunpack.c.l.b16 %v1116
    %v1429 = vunpack.c.h.b16 %v1116
    %v1430 = vunpack.c.l.b16 %v1117
    %v1431 = vunpack.c.h.b16 %v1117
    %v1432 = vunpack.c.l.b16 %v1118
    %v1433 = vunpack.c.h.b16 %v1118
    %v1434 = vunpack.c.l.b16 %v1119
    %v1435 = vunpack.c.h.b16 %v1119
    %v1436 = vunpack.c.l.b16 %v1120
    %v1437 = vunpack.c.h.b16 %v1120
    %v1438 = vunpack.c.l.b16 %v1121
    %v1439 = vunpack.c.h.b16 %v1121
    %v1440 = vunpack.c.l.b16 %v1122
    %v1441 = vunpack.c.h.b16 %v1122
    %v1442 = vunpack.c.l.b16 %v1123
    %v1443 = vunpack.c.h.b16 %v1123
    %v1444 = vunpack.c.l.b16 %v1124
    %v1445 = vunpack.c.h.b16 %v1124
    %v1446 = vunpack.c.l.b16 %v1125
    %v1447 = vunpack.c.h.b16 %v1125
    %v1448 = vunpack.c.l.b16 %v1126
    %v1449 = vunpack.c.h.b16 %v1126
    %v1450 = vunpack.c.l.b16 %v1127
    %v1451 = vunpack.c.h.b16 %v1127
    %v1452 = vunpack.c.l.b16 %v1128
    %v1453 = vunpack.c.h.b16 %v1128
    %v1454 = vunpack.c.l.b16 %v1129
    %v1455 = vunpack.c.h.b16 %v1129
    %v1456 = vunpack.c.l.b16 %v1130
    %v1457 = vunpack.c.h.b16 %v1130
    %v1458 = vunpack.c.l.b16 %v1131
    %v1459 = vunpack.c.h.b16 %v1131
    %v1460 = vunpack.c.l.b16 %v1132
    %v1461 = vunpack.c.h.b16 %v1132
    %v1462 = vunpack.c.l.b16 %v1133
    %v1463 = vunpack.c.h.b16 %v1133
    %v1464 = vunpack.c.l.b16 %v1134
    %v1465 = vunpack.c.h.b16 %v1134
    %v1466 = vunpack.c.l.b16 %v1135
    %v1467 = vunpack.c.h.b16 %v1135
    %v1468 = vunpack.c.l.b16 %v1136
    %v1469 = vunpack.c.h.b16 %v1136
    %v1470 = vunpack.c.l.b16 %v1137
    %v1471 = vunpack.c.h.b16 %v1137
    %v1472 = vunpack.c.l.b16 %v1138
    %v1473 = vunpack.c.h.b16 %v1138
    %v1474 = vunpack.c.l.b16 %v1139
    %v1475 = vunpack.c.h.b16 %v1139
    %v1476 = vunpack.c.l.b16 %v1140
    %v1477 = vunpack.c.h.b16 %v1140
    %v1478 = vunpack.c.l.b16 %v1141
    %v1479 = vunpack.c.h.b16 %v1141
    %v1480 = vunpack.c.l.b16 %v1142
    %v1481 = vunpack.c.h.b16 %v1142
    %v1482 = vunpack.c.l.b16 %v1143
    %v1483 = vunpack.c.h.b16 %v1143
    %v1484 = vunpack.c.l.b16 %v1144
    %v1485 = vunpack.c.h.b16 %v1144
    %v1486 = vunpack.c.l.b16 %v1145
    %v1487 = vunpack.c.h.b16 %v1145
    %v1488 = vunpack.c.l.b16 %v1146
    %v1489 = vunpack.c.h.b16 %v1146
    %v1490 = vunpack.c.l.b16 %v1147
    %v1491 = vunpack.c.h.b16 %v1147
    %v1492 = vunpack.c.l.b16 %v1148
    %v1493 = vunpack.c.h.b16 %v1148
    %v1494 = vunpack.c.l.b16 %v1149
    %v1495 = vunpack.c.h.b16 %v1149
    %v1496 = vunpack.c.l.b16 %v1150
    %v1497 = vunpack.c.h.b16 %v1150
    %v1498 = vunpack.c.l.b16 %v1151
    %v1499 = vunpack.c.h.b16 %v1151
    %v1500 = vunpack.c.l.b16 %v1152
    %v1501 = vunpack.c.h.b16 %v1152
    %v1502 = vunpack.c.l.b16 %v1153
    %v1503 = vunpack.c.h.b16 %v1153
    %v1504 = vunpack.c.l.b16 %v1154
    %v1505 = vunpack.c.h.b16 %v1154
    %v1506 = vunpack.c.l.b16 %v1155
    %v1507 = vunpack.c.h.b16 %v1155
    %v1508 = vunpack.c.l.b16 %v1156
    %v1509 = vunpack.c.h.b16 %v1156
    %v1510 = vunpack.c.l.b16 %v1157
    %v1511 = vunpack.c.h.b16 %v1157
    %v1512 = vunpack.c.l.b16 %v1158
    %v1513 = vunpack.c.h.b16 %v1158
    %v1514 = vunpack.c.l.b16 %v1159
    %v1515 = vunpack.c.h.b16 %v1159
    %v1516 = vunpack.c.l.b16 %v1160
    %v1517 = vunpack.c.h.b16 %v1160
    %v1518 = vunpack.c.l.b16 %v1161
    %v1519 = vunpack.c.h.b16 %v1161
    %v1520 = vunpack.c.l.b16 %v1162
    %v1521 = vunpack.c.h.b16 %v1162
    %v1522 = vunpack.c.l.b16 %v1163
    %v1523 = vunpack.c.h.b16 %v1163
    %v1524 = vunpack.c.l.b16 %v1164
    %v1525 = vunpack.c.h.b16 %v1164
    %v1526 = vunpack.c.l.b16 %v1165
    %v1527 = vunpack.c.h.b16 %v1165
    %v1528 = vunpack.c.l.b16 %v1166
    %v1529 = vunpack.c.h.b16 %v1166
    %v1530 = vunpack.c.l.b16 %v1167
    %v1531 = vunpack.c.h.b16 %v1167
    %v1532 = vunpack.c.l.b16 %v1168
    %v1533 = vunpack.c.h.b16 %v1168
    %v1534 = vunpack.c.l.b16 %v1169
    %v1535 = vunpack.c.h.b16 %v1169
    %v1536 = vunpack.c.l.b16 %v1170
    %v1537 = vunpack.c.h.b16 %v1170
    %v1538 = vunpack.c.l.b16 %v1171
    %v1539 = vunpack.c.h.b16 %v1171
    %v1540 = vunpack.c.l.b16 %v1172
    %v1541 = vunpack.c.h.b16 %v1172
    %v1542 = vunpack.c.l.b16 %v1173
    %v1543 = vunpack.c.h.b16 %v1173
    %v1544 = vunpack.c.l.b16 %v1174
    %v1545 = vunpack.c.h.b16 %v1174
    %v1546 = vunpack.c.l.b16 %v1175
    %v1547 = vunpack.c.h.b16 %v1175
    %v1548 = vunpack.c.l.b16 %v1176
    %v1549 = vunpack.c.h.b16 %v1176
    %v1550 = vunpack.c.l.b16 %v1177
    %v1551 = vunpack.c.h.b16 %v1177
    %v1552 = vunpack.c.l.b16 %v1178
    %v1553 = vunpack.c.h.b16 %v1178
    %v1554 = vunpack.c.l.b16 %v1179
    %v1555 = vunpack.c.h.b16 %v1179
    %v1556 = vunpack.c.l.b16 %v1180
    %v1557 = vunpack.c.h.b16 %v1180
    %v1558 = vunpack.c.l.b16 %v1181
    %v1559 = vunpack.c.h.b16 %v1181
    %v1560 = vunpack.c.l.b16 %v1182
    %v1561 = vunpack.c.h.b16 %v1182
    %v1562 = vunpack.c.l.b16 %v1183
    %v1563 = vunpack.c.h.b16 %v1183
    %v1564 = vunpack.c.l.b16 %v1184
    %v1565 = vunpack.c.h.b16 %v1184
    %v1566 = vunpack.c.l.b16 %v1185
    %v1567 = vunpack.c.h.b16 %v1185
    %v1568 = vunpack.c.l.b16 %v1186
    %v1569 = vunpack.c.h.b16 %v1186
    %v1570 = vunpack.c.l.b16 %v1187
    %v1571 = vunpack.c.h.b16 %v1187
    %v1572 = vunpack.c.l.b16 %v1188
    %v1573 = vunpack.c.h.b16 %v1188
    %v1574 = vunpack.c.l.b16 %v1189
    %v1575 = vunpack.c.h.b16 %v1189
    %v1576 = vunpack.c.l.b16 %v1190
    %v1577 = vunpack.c.h.b16 %v1190
    %v1578 = vunpack.c.l.b16 %v1191
    %v1579 = vunpack.c.h.b16 %v1191
    %v1580 = vunpack.c.l.b16 %v1192
    %v1581 = vunpack.c.h.b16 %v1192
    %v1582 = vunpack.c.l.b16 %v1193
    %v1583 = vunpack.c.h.b16 %v1193
    %v1584 = vunpack.c.l.b16 %v1194
    %v1585 = vunpack.c.h.b16 %v1194
    %v1586 = vunpack.c.l.b16 %v1195
    %v1587 = vunpack.c.h.b16 %v1195
    %v1588 = vunpack.c.l.b16 %v1196
    %v1589 = vunpack.c.h.b16 %v1196
    %v1590 = vunpack.c.l.b16 %v1197
    %v1591 = vunpack.c.h.b16 %v1197
    %v1592 = vpack.c.b16 %v1340, %v1336
    %v1593 = vpack.c.b16 %v1341, %v1337
    %v1594 = vpack.c.b16 %v1342, %v1338
    %v1595 = vpack.c.b16 %v1343, %v1339
    %v1596 = vpack.c.b16 %v1348, %v1344
    %v1597 = vpack.c.b16 %v1349, %v1345
    %v1598 = vpack.c.b16 %v1350, %v1346
    %v1599 = vpack.c.b16 %v1351, %v1347
    %v1600 = vpack.c.b16 %v1356, %v1352
    %v1601 = vpack.c.b16 %v1357, %v1353
    %v1602 = vpack.c.b16 %v1358, %v1354
    %v1603 = vpack.c.b16 %v1359, %v1355
    %v1604 = vpack.c.b16 %v1364, %v1360
    %v1605 = vpack.c.b16 %v1365, %v1361
    %v1606 = vpack.c.b16 %v1366, %v1362
    %v1607 = vpack.c.b16 %v1367, %v1363
    %v1608 = vpack.c.b16 %v1372, %v1368
    %v1609 = vpack.c.b16 %v1373, %v1369
    %v1610 = vpack.c.b16 %v1374, %v1370
    %v1611 = vpack.c.b16 %v1375, %v1371
    %v1612 = vpack.c.b16 %v1380, %v1376
    %v1613 = vpack.c.b16 %v1381, %v1377
    %v1614 = vpack.c.b16 %v1382, %v1378
    %v1615 = vpack.c.b16 %v1383, %v1379
    %v1616 = vpack.c.b16 %v1388, %v1384
    %v1617 = vpack.c.b16 %v1389, %v1385
    %v1618 = vpack.c.b16 %v1390, %v1386
    %v1619 = vpack.c.b16 %v1391, %v1387
    %v1620 = vpack.c.b16 %v1396, %v1392
    %v1621 = vpack.c.b16 %v1397, %v1393
    %v1622 = vpack.c.b16 %v1398, %v1394
    %v1623 = vpack.c.b16 %v1399, %v1395
    %v1624 = vpack.c.b16 %v1404, %v1400
    %v1625 = vpack.c.b16 %v1405, %v1401
    %v1626 = vpack.c.b16 %v1406, %v1402
    %v1627 = vpack.c.b16 %v1407, %v1403
    %v1628 = vpack.c.b16 %v1412, %v1408
    %v1629 = vpack.c.b16 %v1413, %v1409
    %v1630 = vpack.c.b16 %v1414, %v1410
    %v1631 = vpack.c.b16 %v1415, %v1411
    %v1632 = vpack.c.b16 %v1420, %v1416
    %v1633 = vpack.c.b16 %v1421, %v1417
    %v1634 = vpack.c.b16 %v1422, %v1418
    %v1635 = vpack.c.b16 %v1423, %v1419
    %v1636 = vpack.c.b16 %v1428, %v1424
    %v1637 = vpack.c.b16 %v1429, %v1425
    %v1638 = vpack.c.b16 %v1430, %v1426
    %v1639 = vpack.c.b16 %v1431, %v1427
    %v1640 = vpack.c.b16 %v1436, %v1432
    %v1641 = vpack.c.b16 %v1437, %v1433
    %v1642 = vpack.c.b16 %v1438, %v1434
    %v1643 = vpack.c.b16 %v1439, %v1435
    %v1644 = vpack.c.b16 %v1444, %v1440
    %v1645 = vpack.c.b16 %v1445, %v1441
    %v1646 = vpack.c.b16 %v1446, %v1442
    %v1647 = vpack.c.b16 %v1447, %v1443
    %v1648 = vpack.c.b16 %v1452, %v1448
    %v1649 = vpack.c.b16 %v1453, %v1449
    %v1650 = vpack.c.b16 %v1454, %v1450
    %v1651 = vpack.c.b16 %v1455, %v1451
    %v1652 = vpack.c.b16 %v1460, %v1456
    %v1653 = vpack.c.b16 %v1461, %v1457
    %v1654 = vpack.c.b16 %v1462, %v1458
    %v1655 = vpack.c.b16 %v1463, %v1459
    %v1656 = vpack.c.b16 %v1468, %v1464
    %v1657 = vpack.c.b16 %v1469, %v1465
    %v1658 = vpack.c.b16 %v1470, %v1466
    %v1659 = vpack.c.b16 %v1471, %v1467
    %v1660 = vpack.c.b16 %v1476, %v1472
    %v1661 = vpack.c.b16 %v1477, %v1473
    %v1662 = vpack.c.b16 %v1478, %v1474
    %v1663 = vpack.c.b16 %v1479, %v1475
    %v1664 = vpack.c.b16 %v1484, %v1480
    %v1665 = vpack.c.b16 %v1485, %v1481
    %v1666 = vpack.c.b16 %v1486, %v1482
    %v1667 = vpack.c.b16 %v1487, %v1483
    %v1668 = vpack.c.b16 %v1492, %v1488
    %v1669 = vpack.c.b16 %v1493, %v1489
    %v1670 = vpack.c.b16 %v1494, %v1490
    %v1671 = vpack.c.b16 %v1495, %v1491
    %v1672 = vpack.c.b16 %v1500, %v1496
    %v1673 = vpack.c.b16 %v1501, %v1497
    %v1674 = vpack.c.b16 %v1502, %v1498
    %v1675 = vpack.c.b16 %v1503, %v1499
    %v1676 = vpack.c.b16 %v1508, %v1504
    %v1677 = vpack.c.b16 %v1509, %v1505
    %v1678 = vpack.c.b16 %v1510, %v1506
    %v1679 = vpack.c.b16 %v1511, %v1507
    %v1680 = vpack.c.b16 %v1516, %v1512
    %v1681 = vpack.c.b16 %v1517, %v1513
    %v1682 = vpack.c.b16 %v1518, %v1514
    %v1683 = vpack.c.b16 %v1519, %v1515
    %v1684 = vpack.c.b16 %v1524, %v1520
    %v1685 = vpack.c.b16 %v1525, %v1521
    %v1686 = vpack.c.b16 %v1526, %v1522
    %v1687 = vpack.c.b16 %v1527, %v1523
    %v1688 = vpack.c.b16 %v1532, %v1528
    %v1689 = vpack.c.b16 %v1533, %v1529
    %v1690 = vpack.c.b16 %v1534, %v1530
    %v1691 = vpack.c.b16 %v1535, %v1531
    %v1692 = vpack.c.b16 %v1540, %v1536
    %v1693 = vpack.c.b16 %v1541, %v1537
    %v1694 = vpack.c.b16 %v1542, %v1538
    %v1695 = vpack.c.b16 %v1543, %v1539
    %v1696 = vpack.c.b16 %v1548, %v1544
    %v1697 = vpack.c.b16 %v1549, %v1545
    %v1698 = vpack.c.b16 %v1550, %v1546
    %v1699 = vpack.c.b16 %v1551, %v1547
    %v1700 = vpack.c.b16 %v1556, %v1552
    %v1701 = vpack.c.b16 %v1557, %v1553
    %v1702 = vpack.c.b16 %v1558, %v1554
    %v1703 = vpack.c.b16 %v1559, %v1555
    %v1704 = vpack.c.b16 %v1564, %v1560
    %v1705 = vpack.c.b16 %v1565, %v1561
    %v1706 = vpack.c.b16 %v1566, %v1562
    %v1707 = vpack.c.b16 %v1567, %v1563
    %v1708 = vpack.c.b16 %v1572, %v1568
    %v1709 = vpack.c.b16 %v1573, %v1569
    %v1710 = vpack.c.b16 %v1574, %v1570
    %v1711 = vpack.c.b16 %v1575, %v1571
    %v1712 = vpack.c.b16 %v1580, %v1576
    %v1713 = vpack.c.b16 %v1581, %v1577
    %v1714 = vpack.c.b16 %v1582, %v1578
    %v1715 = vpack.c.b16 %v1583, %v1579
    %v1716 = vpack.c.b16 %v1588, %v1584
    %v1717 = vpack.c.b16 %v1589, %v1585
    %v1718 = vpack.c.b16 %v1590, %v1586
    %v1719 = vpack.c.b16 %v1591, %v1587
    %1848 = vmatpush.bf16.msra.mxu0 %v1620
    %1849 = vmatpush.bf16.msra.mxu0 %v1616
    %1850 = vmatpush.bf16.msra.mxu0 %v1612
    %1851 = vmatpush.bf16.msra.mxu0 %v1608
    %1852 = vmatpush.bf16.msra.mxu0 %v1604
    %1853 = vmatpush.bf16.msra.mxu0 %v1600
    %1854 = vmatpush.bf16.msra.mxu0 %v1596
    %1855 = vmatpush.bf16.msra.mxu0 %v1592
    %1856 = vmatmul.bf16.gmra.mxu0 %v1066
    %v1857 = vpop.f32.mrf.mxu0
    %v1858 = vadd.f32 %v1200, %v1857
    %v1859 = vpop.f32.mrf.mxu0
    %v1860 = vadd.f32 %v1200, %v1859
    %1861 = vdwg.mxu0
    %1862 = vmatpush.bf16.msra.mxu0 %v1652
    %1863 = vmatpush.bf16.msra.mxu0 %v1648
    %1864 = vmatpush.bf16.msra.mxu0 %v1644
    %1865 = vmatpush.bf16.msra.mxu0 %v1640
    %1866 = vmatpush.bf16.msra.mxu0 %v1636
    %1867 = vmatpush.bf16.msra.mxu0 %v1632
    %1868 = vmatpush.bf16.msra.mxu0 %v1628
    %1869 = vmatpush.bf16.msra.mxu0 %v1624
    %1870 = vmatmul.bf16.gmra.mxu0 %v1067
    %v1871 = vpop.f32.mrf.mxu0
    %v1872 = vadd.f32 %v1858, %v1871
    %v1873 = vpop.f32.mrf.mxu0
    %v1874 = vadd.f32 %v1860, %v1873
    %1875 = vdwg.mxu0
    %1876 = vmatpush.bf16.msra.mxu0 %v1684
    %1877 = vmatpush.bf16.msra.mxu0 %v1680
    %1878 = vmatpush.bf16.msra.mxu0 %v1676
    %1879 = vmatpush.bf16.msra.mxu0 %v1672
    %1880 = vmatpush.bf16.msra.mxu0 %v1668
    %1881 = vmatpush.bf16.msra.mxu0 %v1664
    %1882 = vmatpush.bf16.msra.mxu0 %v1660
    %1883 = vmatpush.bf16.msra.mxu0 %v1656
    %1884 = vmatmul.bf16.gmra.mxu0 %v1068
    %v1885 = vpop.f32.mrf.mxu0
    %v1886 = vadd.f32 %v1872, %v1885
    %v1887 = vpop.f32.mrf.mxu0
    %v1888 = vadd.f32 %v1874, %v1887
    %1889 = vdwg.mxu0
    %1890 = vmatpush.bf16.msra.mxu0 %v1716
    %1891 = vmatpush.bf16.msra.mxu0 %v1712
    %1892 = vmatpush.bf16.msra.mxu0 %v1708
    %1893 = vmatpush.bf16.msra.mxu0 %v1704
    %1894 = vmatpush.bf16.msra.mxu0 %v1700
    %1895 = vmatpush.bf16.msra.mxu0 %v1696
    %1896 = vmatpush.bf16.msra.mxu0 %v1692
    %1897 = vmatpush.bf16.msra.mxu0 %v1688
    %1898 = vmatmul.bf16.gmra.mxu0 %v1069
    %v1899 = vpop.f32.mrf.mxu0
    %v1900 = vadd.f32 %v1886, %v1899
    %v1901 = vpop.f32.mrf.mxu0
    %v1902 = vadd.f32 %v1888, %v1901
    %1903 = vdwg.mxu0
    %1904 = vmatpush.bf16.msra.mxu0 %v1621
    %1905 = vmatpush.bf16.msra.mxu0 %v1617
    %1906 = vmatpush.bf16.msra.mxu0 %v1613
    %1907 = vmatpush.bf16.msra.mxu0 %v1609
    %1908 = vmatpush.bf16.msra.mxu0 %v1605
    %1909 = vmatpush.bf16.msra.mxu0 %v1601
    %1910 = vmatpush.bf16.msra.mxu0 %v1597
    %1911 = vmatpush.bf16.msra.mxu0 %v1593
    %1912 = vmatmul.bf16.gmra.mxu0 %v1066
    %v1913 = vpop.f32.mrf.mxu0
    %v1914 = vadd.f32 %v1201, %v1913
    %v1915 = vpop.f32.mrf.mxu0
    %v1916 = vadd.f32 %v1201, %v1915
    %1917 = vdwg.mxu0
    %1918 = vmatpush.bf16.msra.mxu0 %v1653
    %1919 = vmatpush.bf16.msra.mxu0 %v1649
    %1920 = vmatpush.bf16.msra.mxu0 %v1645
    %1921 = vmatpush.bf16.msra.mxu0 %v1641
    %1922 = vmatpush.bf16.msra.mxu0 %v1637
    %1923 = vmatpush.bf16.msra.mxu0 %v1633
    %1924 = vmatpush.bf16.msra.mxu0 %v1629
    %1925 = vmatpush.bf16.msra.mxu0 %v1625
    %1926 = vmatmul.bf16.gmra.mxu0 %v1067
    %v1927 = vpop.f32.mrf.mxu0
    %v1928 = vadd.f32 %v1914, %v1927
    %v1929 = vpop.f32.mrf.mxu0
    %v1930 = vadd.f32 %v1916, %v1929
    %1931 = vdwg.mxu0
    %1932 = vmatpush.bf16.msra.mxu0 %v1685
    %1933 = vmatpush.bf16.msra.mxu0 %v1681
    %1934 = vmatpush.bf16.msra.mxu0 %v1677
    %1935 = vmatpush.bf16.msra.mxu0 %v1673
    %1936 = vmatpush.bf16.msra.mxu0 %v1669
    %1937 = vmatpush.bf16.msra.mxu0 %v1665
    %1938 = vmatpush.bf16.msra.mxu0 %v1661
    %1939 = vmatpush.bf16.msra.mxu0 %v1657
    %1940 = vmatmul.bf16.gmra.mxu0 %v1068
    %v1941 = vpop.f32.mrf.mxu0
    %v1942 = vadd.f32 %v1928, %v1941
    %v1943 = vpop.f32.mrf.mxu0
    %v1944 = vadd.f32 %v1930, %v1943
    %1945 = vdwg.mxu0
    %1946 = vmatpush.bf16.msra.mxu0 %v1717
    %1947 = vmatpush.bf16.msra.mxu0 %v1713
    %1948 = vmatpush.bf16.msra.mxu0 %v1709
    %1949 = vmatpush.bf16.msra.mxu0 %v1705
    %1950 = vmatpush.bf16.msra.mxu0 %v1701
    %1951 = vmatpush.bf16.msra.mxu0 %v1697
    %1952 = vmatpush.bf16.msra.mxu0 %v1693
    %1953 = vmatpush.bf16.msra.mxu0 %v1689
    %1954 = vmatmul.bf16.gmra.mxu0 %v1069
    %v1955 = vpop.f32.mrf.mxu0
    %v1956 = vadd.f32 %v1942, %v1955
    %v1957 = vpop.f32.mrf.mxu0
    %v1958 = vadd.f32 %v1944, %v1957
    %1959 = vdwg.mxu0
    %1960 = vmatpush.bf16.msra.mxu0 %v1622
    %1961 = vmatpush.bf16.msra.mxu0 %v1618
    %1962 = vmatpush.bf16.msra.mxu0 %v1614
    %1963 = vmatpush.bf16.msra.mxu0 %v1610
    %1964 = vmatpush.bf16.msra.mxu0 %v1606
    %1965 = vmatpush.bf16.msra.mxu0 %v1602
    %1966 = vmatpush.bf16.msra.mxu0 %v1598
    %1967 = vmatpush.bf16.msra.mxu0 %v1594
    %1968 = vmatmul.bf16.gmra.mxu0 %v1066
    %v1969 = vpop.f32.mrf.mxu0
    %v1970 = vadd.f32 %v1202, %v1969
    %v1971 = vpop.f32.mrf.mxu0
    %v1972 = vadd.f32 %v1202, %v1971
    %1973 = vdwg.mxu0
    %1974 = vmatpush.bf16.msra.mxu0 %v1654
    %1975 = vmatpush.bf16.msra.mxu0 %v1650
    %1976 = vmatpush.bf16.msra.mxu0 %v1646
    %1977 = vmatpush.bf16.msra.mxu0 %v1642
    %1978 = vmatpush.bf16.msra.mxu0 %v1638
    %1979 = vmatpush.bf16.msra.mxu0 %v1634
    %1980 = vmatpush.bf16.msra.mxu0 %v1630
    %1981 = vmatpush.bf16.msra.mxu0 %v1626
    %1982 = vmatmul.bf16.gmra.mxu0 %v1067
    %v1983 = vpop.f32.mrf.mxu0
    %v1984 = vadd.f32 %v1970, %v1983
    %v1985 = vpop.f32.mrf.mxu0
    %v1986 = vadd.f32 %v1972, %v1985
    %1987 = vdwg.mxu0
    %1988 = vmatpush.bf16.msra.mxu0 %v1686
    %1989 = vmatpush.bf16.msra.mxu0 %v1682
    %1990 = vmatpush.bf16.msra.mxu0 %v1678
    %1991 = vmatpush.bf16.msra.mxu0 %v1674
    %1992 = vmatpush.bf16.msra.mxu0 %v1670
    %1993 = vmatpush.bf16.msra.mxu0 %v1666
    %1994 = vmatpush.bf16.msra.mxu0 %v1662
    %1995 = vmatpush.bf16.msra.mxu0 %v1658
    %1996 = vmatmul.bf16.gmra.mxu0 %v1068
    %v1997 = vpop.f32.mrf.mxu0
    %v1998 = vadd.f32 %v1984, %v1997
    %v1999 = vpop.f32.mrf.mxu0
    %v2000 = vadd.f32 %v1986, %v1999
    %2001 = vdwg.mxu0
    %2002 = vmatpush.bf16.msra.mxu0 %v1718
    %2003 = vmatpush.bf16.msra.mxu0 %v1714
    %2004 = vmatpush.bf16.msra.mxu0 %v1710
    %2005 = vmatpush.bf16.msra.mxu0 %v1706
    %2006 = vmatpush.bf16.msra.mxu0 %v1702
    %2007 = vmatpush.bf16.msra.mxu0 %v1698
    %2008 = vmatpush.bf16.msra.mxu0 %v1694
    %2009 = vmatpush.bf16.msra.mxu0 %v1690
    %2010 = vmatmul.bf16.gmra.mxu0 %v1069
    %v2011 = vpop.f32.mrf.mxu0
    %v2012 = vadd.f32 %v1998, %v2011
    %v2013 = vpop.f32.mrf.mxu0
    %v2014 = vadd.f32 %v2000, %v2013
    %2015 = vdwg.mxu0
    %2016 = vmatpush.bf16.msra.mxu0 %v1623
    %2017 = vmatpush.bf16.msra.mxu0 %v1619
    %2018 = vmatpush.bf16.msra.mxu0 %v1615
    %2019 = vmatpush.bf16.msra.mxu0 %v1611
    %2020 = vmatpush.bf16.msra.mxu0 %v1607
    %2021 = vmatpush.bf16.msra.mxu0 %v1603
    %2022 = vmatpush.bf16.msra.mxu0 %v1599
    %2023 = vmatpush.bf16.msra.mxu0 %v1595
    %2024 = vmatmul.bf16.gmra.mxu0 %v1066
    %v2025 = vpop.f32.mrf.mxu0
    %v2026 = vadd.f32 %v1203, %v2025
    %v2027 = vpop.f32.mrf.mxu0
    %v2028 = vadd.f32 %v1203, %v2027
    %2029 = vdwg.mxu0
    %2030 = vmatpush.bf16.msra.mxu0 %v1655
    %2031 = vmatpush.bf16.msra.mxu0 %v1651
    %2032 = vmatpush.bf16.msra.mxu0 %v1647
    %2033 = vmatpush.bf16.msra.mxu0 %v1643
    %2034 = vmatpush.bf16.msra.mxu0 %v1639
    %2035 = vmatpush.bf16.msra.mxu0 %v1635
    %2036 = vmatpush.bf16.msra.mxu0 %v1631
    %2037 = vmatpush.bf16.msra.mxu0 %v1627
    %2038 = vmatmul.bf16.gmra.mxu0 %v1067
    %v2039 = vpop.f32.mrf.mxu0
    %v2040 = vadd.f32 %v2026, %v2039
    %v2041 = vpop.f32.mrf.mxu0
    %v2042 = vadd.f32 %v2028, %v2041
    %2043 = vdwg.mxu0
    %2044 = vmatpush.bf16.msra.mxu0 %v1687
    %2045 = vmatpush.bf16.msra.mxu0 %v1683
    %2046 = vmatpush.bf16.msra.mxu0 %v1679
    %2047 = vmatpush.bf16.msra.mxu0 %v1675
    %2048 = vmatpush.bf16.msra.mxu0 %v1671
    %2049 = vmatpush.bf16.msra.mxu0 %v1667
    %2050 = vmatpush.bf16.msra.mxu0 %v1663
    %2051 = vmatpush.bf16.msra.mxu0 %v1659
    %2052 = vmatmul.bf16.gmra.mxu0 %v1068
    %v2053 = vpop.f32.mrf.mxu0
    %v2054 = vadd.f32 %v2040, %v2053
    %v2055 = vpop.f32.mrf.mxu0
    %v2056 = vadd.f32 %v2042, %v2055
    %2057 = vdwg.mxu0
    %2058 = vmatpush.bf16.msra.mxu0 %v1719
    %2059 = vmatpush.bf16.msra.mxu0 %v1715
    %2060 = vmatpush.bf16.msra.mxu0 %v1711
    %2061 = vmatpush.bf16.msra.mxu0 %v1707
    %2062 = vmatpush.bf16.msra.mxu0 %v1703
    %2063 = vmatpush.bf16.msra.mxu0 %v1699
    %2064 = vmatpush.bf16.msra.mxu0 %v1695
    %2065 = vmatpush.bf16.msra.mxu0 %v1691
    %2066 = vmatmul.bf16.gmra.mxu0 %v1069
    %v2067 = vpop.f32.mrf.mxu0
    %v2068 = vadd.f32 %v2054, %v2067
    %v2069 = vpop.f32.mrf.mxu0
    %v2070 = vadd.f32 %v2056, %v2069
    %2071 = vdwg.mxu0
    %v2072 = vmax.f32 %v1900, 0.0
    %v2073 = vmax.f32 %v1956, 0.0
    %v2074 = vmax.f32 %v2012, 0.0
    %v2075 = vmax.f32 %v2068, 0.0
    %v2076 = vmax.f32 %v1902, 0.0
    %v2077 = vmax.f32 %v1958, 0.0
    %v2078 = vmax.f32 %v2014, 0.0
    %v2079 = vmax.f32 %v2070, 0.0
    %v2080 = vpack.c.bf16 %v2076, %v2072
    %v2081 = vpack.c.bf16 %v2077, %v2073
    %v2082 = vpack.c.bf16 %v2078, %v2074
    %v2083 = vpack.c.bf16 %v2079, %v2075
    %v2084 = vld [vmem:[#allocation4] sm:$0xff]
    %v2085 = vld [vmem:[#allocation4 + $0x8] sm:$0xff]
    %v2086 = vld [vmem:[#allocation4 + $0x10] sm:$0xff]
    %v2087 = vld [vmem:[#allocation4 + $0x18] sm:$0xff]
    %v2088 = vld [vmem:[#allocation4 + $0x20] sm:$0xff]
    %v2089 = vld [vmem:[#allocation4 + $0x28] sm:$0xff]
    %v2090 = vld [vmem:[#allocation4 + $0x30] sm:$0xff]
    %v2091 = vld [vmem:[#allocation4 + $0x38] sm:$0xff]
    %v2092 = vld [vmem:[#allocation4 + $0x40] sm:$0xff]
    %v2093 = vld [vmem:[#allocation4 + $0x48] sm:$0xff]
    %v2094 = vld [vmem:[#allocation4 + $0x50] sm:$0xff]
    %v2095 = vld [vmem:[#allocation4 + $0x58] sm:$0xff]
    %v2096 = vld [vmem:[#allocation4 + $0x60] sm:$0xff]
    %v2097 = vld [vmem:[#allocation4 + $0x68] sm:$0xff]
    %v2098 = vld [vmem:[#allocation4 + $0x70] sm:$0xff]
    %v2099 = vld [vmem:[#allocation4 + $0x78] sm:$0xff]
    %v2100 = vld [vmem:[#allocation4 + $0x80] sm:$0xff]
    %v2101 = vld [vmem:[#allocation4 + $0x88] sm:$0xff]
    %v2102 = vld [vmem:[#allocation4 + $0x90] sm:$0xff]
    %v2103 = vld [vmem:[#allocation4 + $0x98] sm:$0xff]
    %v2104 = vld [vmem:[#allocation4 + $0xa0] sm:$0xff]
    %v2105 = vld [vmem:[#allocation4 + $0xa8] sm:$0xff]
    %v2106 = vld [vmem:[#allocation4 + $0xb0] sm:$0xff]
    %v2107 = vld [vmem:[#allocation4 + $0xb8] sm:$0xff]
    %v2108 = vld [vmem:[#allocation4 + $0xc0] sm:$0xff]
    %v2109 = vld [vmem:[#allocation4 + $0xc8] sm:$0xff]
    %v2110 = vld [vmem:[#allocation4 + $0xd0] sm:$0xff]
    %v2111 = vld [vmem:[#allocation4 + $0xd8] sm:$0xff]
    %v2112 = vld [vmem:[#allocation4 + $0xe0] sm:$0xff]
    %v2113 = vld [vmem:[#allocation4 + $0xe8] sm:$0xff]
    %v2114 = vld [vmem:[#allocation4 + $0xf0] sm:$0xff]
    %v2115 = vld [vmem:[#allocation4 + $0xf8] sm:$0xff]
    %v2116 = vld [vmem:[#allocation4 + $0x100] sm:$0xff]
    %v2117 = vld [vmem:[#allocation4 + $0x108] sm:$0xff]
    %v2118 = vld [vmem:[#allocation4 + $0x110] sm:$0xff]
    %v2119 = vld [vmem:[#allocation4 + $0x118] sm:$0xff]
    %v2120 = vld [vmem:[#allocation4 + $0x120] sm:$0xff]
    %v2121 = vld [vmem:[#allocation4 + $0x128] sm:$0xff]
    %v2122 = vld [vmem:[#allocation4 + $0x130] sm:$0xff]
    %v2123 = vld [vmem:[#allocation4 + $0x138] sm:$0xff]
    %v2124 = vld [vmem:[#allocation4 + $0x140] sm:$0xff]
    %v2125 = vld [vmem:[#allocation4 + $0x148] sm:$0xff]
    %v2126 = vld [vmem:[#allocation4 + $0x150] sm:$0xff]
    %v2127 = vld [vmem:[#allocation4 + $0x158] sm:$0xff]
    %v2128 = vld [vmem:[#allocation4 + $0x160] sm:$0xff]
    %v2129 = vld [vmem:[#allocation4 + $0x168] sm:$0xff]
    %v2130 = vld [vmem:[#allocation4 + $0x170] sm:$0xff]
    %v2131 = vld [vmem:[#allocation4 + $0x178] sm:$0xff]
    %v2132 = vld [vmem:[#allocation4 + $0x180] sm:$0xff]
    %v2133 = vld [vmem:[#allocation4 + $0x188] sm:$0xff]
    %v2134 = vld [vmem:[#allocation4 + $0x190] sm:$0xff]
    %v2135 = vld [vmem:[#allocation4 + $0x198] sm:$0xff]
    %v2136 = vld [vmem:[#allocation4 + $0x1a0] sm:$0xff]
    %v2137 = vld [vmem:[#allocation4 + $0x1a8] sm:$0xff]
    %v2138 = vld [vmem:[#allocation4 + $0x1b0] sm:$0xff]
    %v2139 = vld [vmem:[#allocation4 + $0x1b8] sm:$0xff]
    %v2140 = vld [vmem:[#allocation4 + $0x1c0] sm:$0xff]
    %v2141 = vld [vmem:[#allocation4 + $0x1c8] sm:$0xff]
    %v2142 = vld [vmem:[#allocation4 + $0x1d0] sm:$0xff]
    %v2143 = vld [vmem:[#allocation4 + $0x1d8] sm:$0xff]
    %v2144 = vld [vmem:[#allocation4 + $0x1e0] sm:$0xff]
    %v2145 = vld [vmem:[#allocation4 + $0x1e8] sm:$0xff]
    %v2146 = vld [vmem:[#allocation4 + $0x1f0] sm:$0xff]
    %v2147 = vld [vmem:[#allocation4 + $0x1f8] sm:$0xff]
    %v2148 = vld [vmem:[#allocation4 + $0x200] sm:$0xff]
    %v2149 = vld [vmem:[#allocation4 + $0x208] sm:$0xff]
    %v2150 = vld [vmem:[#allocation4 + $0x210] sm:$0xff]
    %v2151 = vld [vmem:[#allocation4 + $0x218] sm:$0xff]
    %v2152 = vld [vmem:[#allocation4 + $0x220] sm:$0xff]
    %v2153 = vld [vmem:[#allocation4 + $0x228] sm:$0xff]
    %v2154 = vld [vmem:[#allocation4 + $0x230] sm:$0xff]
    %v2155 = vld [vmem:[#allocation4 + $0x238] sm:$0xff]
    %v2156 = vld [vmem:[#allocation4 + $0x240] sm:$0xff]
    %v2157 = vld [vmem:[#allocation4 + $0x248] sm:$0xff]
    %v2158 = vld [vmem:[#allocation4 + $0x250] sm:$0xff]
    %v2159 = vld [vmem:[#allocation4 + $0x258] sm:$0xff]
    %v2160 = vld [vmem:[#allocation4 + $0x260] sm:$0xff]
    %v2161 = vld [vmem:[#allocation4 + $0x268] sm:$0xff]
    %v2162 = vld [vmem:[#allocation4 + $0x270] sm:$0xff]
    %v2163 = vld [vmem:[#allocation4 + $0x278] sm:$0xff]
    %v2164 = vld [vmem:[#allocation4 + $0x280] sm:$0xff]
    %v2165 = vld [vmem:[#allocation4 + $0x288] sm:$0xff]
    %v2166 = vld [vmem:[#allocation4 + $0x290] sm:$0xff]
    %v2167 = vld [vmem:[#allocation4 + $0x298] sm:$0xff]
    %v2168 = vld [vmem:[#allocation4 + $0x2a0] sm:$0xff]
    %v2169 = vld [vmem:[#allocation4 + $0x2a8] sm:$0xff]
    %v2170 = vld [vmem:[#allocation4 + $0x2b0] sm:$0xff]
    %v2171 = vld [vmem:[#allocation4 + $0x2b8] sm:$0xff]
    %v2172 = vld [vmem:[#allocation4 + $0x2c0] sm:$0xff]
    %v2173 = vld [vmem:[#allocation4 + $0x2c8] sm:$0xff]
    %v2174 = vld [vmem:[#allocation4 + $0x2d0] sm:$0xff]
    %v2175 = vld [vmem:[#allocation4 + $0x2d8] sm:$0xff]
    %v2176 = vld [vmem:[#allocation4 + $0x2e0] sm:$0xff]
    %v2177 = vld [vmem:[#allocation4 + $0x2e8] sm:$0xff]
    %v2178 = vld [vmem:[#allocation4 + $0x2f0] sm:$0xff]
    %v2179 = vld [vmem:[#allocation4 + $0x2f8] sm:$0xff]
    %v2180 = vld [vmem:[#allocation4 + $0x300] sm:$0xff]
    %v2181 = vld [vmem:[#allocation4 + $0x308] sm:$0xff]
    %v2182 = vld [vmem:[#allocation4 + $0x310] sm:$0xff]
    %v2183 = vld [vmem:[#allocation4 + $0x318] sm:$0xff]
    %v2184 = vld [vmem:[#allocation4 + $0x320] sm:$0xff]
    %v2185 = vld [vmem:[#allocation4 + $0x328] sm:$0xff]
    %v2186 = vld [vmem:[#allocation4 + $0x330] sm:$0xff]
    %v2187 = vld [vmem:[#allocation4 + $0x338] sm:$0xff]
    %v2188 = vld [vmem:[#allocation4 + $0x340] sm:$0xff]
    %v2189 = vld [vmem:[#allocation4 + $0x348] sm:$0xff]
    %v2190 = vld [vmem:[#allocation4 + $0x350] sm:$0xff]
    %v2191 = vld [vmem:[#allocation4 + $0x358] sm:$0xff]
    %v2192 = vld [vmem:[#allocation4 + $0x360] sm:$0xff]
    %v2193 = vld [vmem:[#allocation4 + $0x368] sm:$0xff]
    %v2194 = vld [vmem:[#allocation4 + $0x370] sm:$0xff]
    %v2195 = vld [vmem:[#allocation4 + $0x378] sm:$0xff]
    %v2196 = vld [vmem:[#allocation4 + $0x380] sm:$0xff]
    %v2197 = vld [vmem:[#allocation4 + $0x388] sm:$0xff]
    %v2198 = vld [vmem:[#allocation4 + $0x390] sm:$0xff]
    %v2199 = vld [vmem:[#allocation4 + $0x398] sm:$0xff]
    %v2200 = vld [vmem:[#allocation4 + $0x3a0] sm:$0xff]
    %v2201 = vld [vmem:[#allocation4 + $0x3a8] sm:$0xff]
    %v2202 = vld [vmem:[#allocation4 + $0x3b0] sm:$0xff]
    %v2203 = vld [vmem:[#allocation4 + $0x3b8] sm:$0xff]
    %v2204 = vld [vmem:[#allocation4 + $0x3c0] sm:$0xff]
    %v2205 = vld [vmem:[#allocation4 + $0x3c8] sm:$0xff]
    %v2206 = vld [vmem:[#allocation4 + $0x3d0] sm:$0xff]
    %v2207 = vld [vmem:[#allocation4 + $0x3d8] sm:$0xff]
    %v2208 = vld [vmem:[#allocation4 + $0x3e0] sm:$0xff]
    %v2209 = vld [vmem:[#allocation4 + $0x3e8] sm:$0xff]
    %v2210 = vld [vmem:[#allocation4 + $0x3f0] sm:$0xff]
    %v2211 = vld [vmem:[#allocation4 + $0x3f8] sm:$0xff]
    %v2212 = vld [vmem:[%s9] sm:$0xf]
    %v2214 = vperm.slane %v2212, 0
    %v2215 = vperm.slane %v2212, 1
    %v2216 = vperm.slane %v2212, 2
    %v2217 = vperm.slane %v2212, 3
    %v2350 = vunpack.c.l.b16 %v2084
    %v2351 = vunpack.c.h.b16 %v2084
    %v2352 = vunpack.c.l.b16 %v2085
    %v2353 = vunpack.c.h.b16 %v2085
    %v2354 = vunpack.c.l.b16 %v2086
    %v2355 = vunpack.c.h.b16 %v2086
    %v2356 = vunpack.c.l.b16 %v2087
    %v2357 = vunpack.c.h.b16 %v2087
    %v2358 = vunpack.c.l.b16 %v2088
    %v2359 = vunpack.c.h.b16 %v2088
    %v2360 = vunpack.c.l.b16 %v2089
    %v2361 = vunpack.c.h.b16 %v2089
    %v2362 = vunpack.c.l.b16 %v2090
    %v2363 = vunpack.c.h.b16 %v2090
    %v2364 = vunpack.c.l.b16 %v2091
    %v2365 = vunpack.c.h.b16 %v2091
    %v2366 = vunpack.c.l.b16 %v2092
    %v2367 = vunpack.c.h.b16 %v2092
    %v2368 = vunpack.c.l.b16 %v2093
    %v2369 = vunpack.c.h.b16 %v2093
    %v2370 = vunpack.c.l.b16 %v2094
    %v2371 = vunpack.c.h.b16 %v2094
    %v2372 = vunpack.c.l.b16 %v2095
    %v2373 = vunpack.c.h.b16 %v2095
    %v2374 = vunpack.c.l.b16 %v2096
    %v2375 = vunpack.c.h.b16 %v2096
    %v2376 = vunpack.c.l.b16 %v2097
    %v2377 = vunpack.c.h.b16 %v2097
    %v2378 = vunpack.c.l.b16 %v2098
    %v2379 = vunpack.c.h.b16 %v2098
    %v2380 = vunpack.c.l.b16 %v2099
    %v2381 = vunpack.c.h.b16 %v2099
    %v2382 = vunpack.c.l.b16 %v2100
    %v2383 = vunpack.c.h.b16 %v2100
    %v2384 = vunpack.c.l.b16 %v2101
    %v2385 = vunpack.c.h.b16 %v2101
    %v2386 = vunpack.c.l.b16 %v2102
    %v2387 = vunpack.c.h.b16 %v2102
    %v2388 = vunpack.c.l.b16 %v2103
    %v2389 = vunpack.c.h.b16 %v2103
    %v2390 = vunpack.c.l.b16 %v2104
    %v2391 = vunpack.c.h.b16 %v2104
    %v2392 = vunpack.c.l.b16 %v2105
    %v2393 = vunpack.c.h.b16 %v2105
    %v2394 = vunpack.c.l.b16 %v2106
    %v2395 = vunpack.c.h.b16 %v2106
    %v2396 = vunpack.c.l.b16 %v2107
    %v2397 = vunpack.c.h.b16 %v2107
    %v2398 = vunpack.c.l.b16 %v2108
    %v2399 = vunpack.c.h.b16 %v2108
    %v2400 = vunpack.c.l.b16 %v2109
    %v2401 = vunpack.c.h.b16 %v2109
    %v2402 = vunpack.c.l.b16 %v2110
    %v2403 = vunpack.c.h.b16 %v2110
    %v2404 = vunpack.c.l.b16 %v2111
    %v2405 = vunpack.c.h.b16 %v2111
    %v2406 = vunpack.c.l.b16 %v2112
    %v2407 = vunpack.c.h.b16 %v2112
    %v2408 = vunpack.c.l.b16 %v2113
    %v2409 = vunpack.c.h.b16 %v2113
    %v2410 = vunpack.c.l.b16 %v2114
    %v2411 = vunpack.c.h.b16 %v2114
    %v2412 = vunpack.c.l.b16 %v2115
    %v2413 = vunpack.c.h.b16 %v2115
    %v2414 = vunpack.c.l.b16 %v2116
    %v2415 = vunpack.c.h.b16 %v2116
    %v2416 = vunpack.c.l.b16 %v2117
    %v2417 = vunpack.c.h.b16 %v2117
    %v2418 = vunpack.c.l.b16 %v2118
    %v2419 = vunpack.c.h.b16 %v2118
    %v2420 = vunpack.c.l.b16 %v2119
    %v2421 = vunpack.c.h.b16 %v2119
    %v2422 = vunpack.c.l.b16 %v2120
    %v2423 = vunpack.c.h.b16 %v2120
    %v2424 = vunpack.c.l.b16 %v2121
    %v2425 = vunpack.c.h.b16 %v2121
    %v2426 = vunpack.c.l.b16 %v2122
    %v2427 = vunpack.c.h.b16 %v2122
    %v2428 = vunpack.c.l.b16 %v2123
    %v2429 = vunpack.c.h.b16 %v2123
    %v2430 = vunpack.c.l.b16 %v2124
    %v2431 = vunpack.c.h.b16 %v2124
    %v2432 = vunpack.c.l.b16 %v2125
    %v2433 = vunpack.c.h.b16 %v2125
    %v2434 = vunpack.c.l.b16 %v2126
    %v2435 = vunpack.c.h.b16 %v2126
    %v2436 = vunpack.c.l.b16 %v2127
    %v2437 = vunpack.c.h.b16 %v2127
    %v2438 = vunpack.c.l.b16 %v2128
    %v2439 = vunpack.c.h.b16 %v2128
    %v2440 = vunpack.c.l.b16 %v2129
    %v2441 = vunpack.c.h.b16 %v2129
    %v2442 = vunpack.c.l.b16 %v2130
    %v2443 = vunpack.c.h.b16 %v2130
    %v2444 = vunpack.c.l.b16 %v2131
    %v2445 = vunpack.c.h.b16 %v2131
    %v2446 = vunpack.c.l.b16 %v2132
    %v2447 = vunpack.c.h.b16 %v2132
    %v2448 = vunpack.c.l.b16 %v2133
    %v2449 = vunpack.c.h.b16 %v2133
    %v2450 = vunpack.c.l.b16 %v2134
    %v2451 = vunpack.c.h.b16 %v2134
    %v2452 = vunpack.c.l.b16 %v2135
    %v2453 = vunpack.c.h.b16 %v2135
    %v2454 = vunpack.c.l.b16 %v2136
    %v2455 = vunpack.c.h.b16 %v2136
    %v2456 = vunpack.c.l.b16 %v2137
    %v2457 = vunpack.c.h.b16 %v2137
    %v2458 = vunpack.c.l.b16 %v2138
    %v2459 = vunpack.c.h.b16 %v2138
    %v2460 = vunpack.c.l.b16 %v2139
    %v2461 = vunpack.c.h.b16 %v2139
    %v2462 = vunpack.c.l.b16 %v2140
    %v2463 = vunpack.c.h.b16 %v2140
    %v2464 = vunpack.c.l.b16 %v2141
    %v2465 = vunpack.c.h.b16 %v2141
    %v2466 = vunpack.c.l.b16 %v2142
    %v2467 = vunpack.c.h.b16 %v2142
    %v2468 = vunpack.c.l.b16 %v2143
    %v2469 = vunpack.c.h.b16 %v2143
    %v2470 = vunpack.c.l.b16 %v2144
    %v2471 = vunpack.c.h.b16 %v2144
    %v2472 = vunpack.c.l.b16 %v2145
    %v2473 = vunpack.c.h.b16 %v2145
    %v2474 = vunpack.c.l.b16 %v2146
    %v2475 = vunpack.c.h.b16 %v2146
    %v2476 = vunpack.c.l.b16 %v2147
    %v2477 = vunpack.c.h.b16 %v2147
    %v2478 = vunpack.c.l.b16 %v2148
    %v2479 = vunpack.c.h.b16 %v2148
    %v2480 = vunpack.c.l.b16 %v2149
    %v2481 = vunpack.c.h.b16 %v2149
    %v2482 = vunpack.c.l.b16 %v2150
    %v2483 = vunpack.c.h.b16 %v2150
    %v2484 = vunpack.c.l.b16 %v2151
    %v2485 = vunpack.c.h.b16 %v2151
    %v2486 = vunpack.c.l.b16 %v2152
    %v2487 = vunpack.c.h.b16 %v2152
    %v2488 = vunpack.c.l.b16 %v2153
    %v2489 = vunpack.c.h.b16 %v2153
    %v2490 = vunpack.c.l.b16 %v2154
    %v2491 = vunpack.c.h.b16 %v2154
    %v2492 = vunpack.c.l.b16 %v2155
    %v2493 = vunpack.c.h.b16 %v2155
    %v2494 = vunpack.c.l.b16 %v2156
    %v2495 = vunpack.c.h.b16 %v2156
    %v2496 = vunpack.c.l.b16 %v2157
    %v2497 = vunpack.c.h.b16 %v2157
    %v2498 = vunpack.c.l.b16 %v2158
    %v2499 = vunpack.c.h.b16 %v2158
    %v2500 = vunpack.c.l.b16 %v2159
    %v2501 = vunpack.c.h.b16 %v2159
    %v2502 = vunpack.c.l.b16 %v2160
    %v2503 = vunpack.c.h.b16 %v2160
    %v2504 = vunpack.c.l.b16 %v2161
    %v2505 = vunpack.c.h.b16 %v2161
    %v2506 = vunpack.c.l.b16 %v2162
    %v2507 = vunpack.c.h.b16 %v2162
    %v2508 = vunpack.c.l.b16 %v2163
    %v2509 = vunpack.c.h.b16 %v2163
    %v2510 = vunpack.c.l.b16 %v2164
    %v2511 = vunpack.c.h.b16 %v2164
    %v2512 = vunpack.c.l.b16 %v2165
    %v2513 = vunpack.c.h.b16 %v2165
    %v2514 = vunpack.c.l.b16 %v2166
    %v2515 = vunpack.c.h.b16 %v2166
    %v2516 = vunpack.c.l.b16 %v2167
    %v2517 = vunpack.c.h.b16 %v2167
    %v2518 = vunpack.c.l.b16 %v2168
    %v2519 = vunpack.c.h.b16 %v2168
    %v2520 = vunpack.c.l.b16 %v2169
    %v2521 = vunpack.c.h.b16 %v2169
    %v2522 = vunpack.c.l.b16 %v2170
    %v2523 = vunpack.c.h.b16 %v2170
    %v2524 = vunpack.c.l.b16 %v2171
    %v2525 = vunpack.c.h.b16 %v2171
    %v2526 = vunpack.c.l.b16 %v2172
    %v2527 = vunpack.c.h.b16 %v2172
    %v2528 = vunpack.c.l.b16 %v2173
    %v2529 = vunpack.c.h.b16 %v2173
    %v2530 = vunpack.c.l.b16 %v2174
    %v2531 = vunpack.c.h.b16 %v2174
    %v2532 = vunpack.c.l.b16 %v2175
    %v2533 = vunpack.c.h.b16 %v2175
    %v2534 = vunpack.c.l.b16 %v2176
    %v2535 = vunpack.c.h.b16 %v2176
    %v2536 = vunpack.c.l.b16 %v2177
    %v2537 = vunpack.c.h.b16 %v2177
    %v2538 = vunpack.c.l.b16 %v2178
    %v2539 = vunpack.c.h.b16 %v2178
    %v2540 = vunpack.c.l.b16 %v2179
    %v2541 = vunpack.c.h.b16 %v2179
    %v2542 = vunpack.c.l.b16 %v2180
    %v2543 = vunpack.c.h.b16 %v2180
    %v2544 = vunpack.c.l.b16 %v2181
    %v2545 = vunpack.c.h.b16 %v2181
    %v2546 = vunpack.c.l.b16 %v2182
    %v2547 = vunpack.c.h.b16 %v2182
    %v2548 = vunpack.c.l.b16 %v2183
    %v2549 = vunpack.c.h.b16 %v2183
    %v2550 = vunpack.c.l.b16 %v2184
    %v2551 = vunpack.c.h.b16 %v2184
    %v2552 = vunpack.c.l.b16 %v2185
    %v2553 = vunpack.c.h.b16 %v2185
    %v2554 = vunpack.c.l.b16 %v2186
    %v2555 = vunpack.c.h.b16 %v2186
    %v2556 = vunpack.c.l.b16 %v2187
    %v2557 = vunpack.c.h.b16 %v2187
    %v2558 = vunpack.c.l.b16 %v2188
    %v2559 = vunpack.c.h.b16 %v2188
    %v2560 = vunpack.c.l.b16 %v2189
    %v2561 = vunpack.c.h.b16 %v2189
    %v2562 = vunpack.c.l.b16 %v2190
    %v2563 = vunpack.c.h.b16 %v2190
    %v2564 = vunpack.c.l.b16 %v2191
    %v2565 = vunpack.c.h.b16 %v2191
    %v2566 = vunpack.c.l.b16 %v2192
    %v2567 = vunpack.c.h.b16 %v2192
    %v2568 = vunpack.c.l.b16 %v2193
    %v2569 = vunpack.c.h.b16 %v2193
    %v2570 = vunpack.c.l.b16 %v2194
    %v2571 = vunpack.c.h.b16 %v2194
    %v2572 = vunpack.c.l.b16 %v2195
    %v2573 = vunpack.c.h.b16 %v2195
    %v2574 = vunpack.c.l.b16 %v2196
    %v2575 = vunpack.c.h.b16 %v2196
    %v2576 = vunpack.c.l.b16 %v2197
    %v2577 = vunpack.c.h.b16 %v2197
    %v2578 = vunpack.c.l.b16 %v2198
    %v2579 = vunpack.c.h.b16 %v2198
    %v2580 = vunpack.c.l.b16 %v2199
    %v2581 = vunpack.c.h.b16 %v2199
    %v2582 = vunpack.c.l.b16 %v2200
    %v2583 = vunpack.c.h.b16 %v2200
    %v2584 = vunpack.c.l.b16 %v2201
    %v2585 = vunpack.c.h.b16 %v2201
    %v2586 = vunpack.c.l.b16 %v2202
    %v2587 = vunpack.c.h.b16 %v2202
    %v2588 = vunpack.c.l.b16 %v2203
    %v2589 = vunpack.c.h.b16 %v2203
    %v2590 = vunpack.c.l.b16 %v2204
    %v2591 = vunpack.c.h.b16 %v2204
    %v2592 = vunpack.c.l.b16 %v2205
    %v2593 = vunpack.c.h.b16 %v2205
    %v2594 = vunpack.c.l.b16 %v2206
    %v2595 = vunpack.c.h.b16 %v2206
    %v2596 = vunpack.c.l.b16 %v2207
    %v2597 = vunpack.c.h.b16 %v2207
    %v2598 = vunpack.c.l.b16 %v2208
    %v2599 = vunpack.c.h.b16 %v2208
    %v2600 = vunpack.c.l.b16 %v2209
    %v2601 = vunpack.c.h.b16 %v2209
    %v2602 = vunpack.c.l.b16 %v2210
    %v2603 = vunpack.c.h.b16 %v2210
    %v2604 = vunpack.c.l.b16 %v2211
    %v2605 = vunpack.c.h.b16 %v2211
    %v2606 = vpack.c.b16 %v2354, %v2350
    %v2607 = vpack.c.b16 %v2355, %v2351
    %v2608 = vpack.c.b16 %v2356, %v2352
    %v2609 = vpack.c.b16 %v2357, %v2353
    %v2610 = vpack.c.b16 %v2362, %v2358
    %v2611 = vpack.c.b16 %v2363, %v2359
    %v2612 = vpack.c.b16 %v2364, %v2360
    %v2613 = vpack.c.b16 %v2365, %v2361
    %v2614 = vpack.c.b16 %v2370, %v2366
    %v2615 = vpack.c.b16 %v2371, %v2367
    %v2616 = vpack.c.b16 %v2372, %v2368
    %v2617 = vpack.c.b16 %v2373, %v2369
    %v2618 = vpack.c.b16 %v2378, %v2374
    %v2619 = vpack.c.b16 %v2379, %v2375
    %v2620 = vpack.c.b16 %v2380, %v2376
    %v2621 = vpack.c.b16 %v2381, %v2377
    %v2622 = vpack.c.b16 %v2386, %v2382
    %v2623 = vpack.c.b16 %v2387, %v2383
    %v2624 = vpack.c.b16 %v2388, %v2384
    %v2625 = vpack.c.b16 %v2389, %v2385
    %v2626 = vpack.c.b16 %v2394, %v2390
    %v2627 = vpack.c.b16 %v2395, %v2391
    %v2628 = vpack.c.b16 %v2396, %v2392
    %v2629 = vpack.c.b16 %v2397, %v2393
    %v2630 = vpack.c.b16 %v2402, %v2398
    %v2631 = vpack.c.b16 %v2403, %v2399
    %v2632 = vpack.c.b16 %v2404, %v2400
    %v2633 = vpack.c.b16 %v2405, %v2401
    %v2634 = vpack.c.b16 %v2410, %v2406
    %v2635 = vpack.c.b16 %v2411, %v2407
    %v2636 = vpack.c.b16 %v2412, %v2408
    %v2637 = vpack.c.b16 %v2413, %v2409
    %v2638 = vpack.c.b16 %v2418, %v2414
    %v2639 = vpack.c.b16 %v2419, %v2415
    %v2640 = vpack.c.b16 %v2420, %v2416
    %v2641 = vpack.c.b16 %v2421, %v2417
    %v2642 = vpack.c.b16 %v2426, %v2422
    %v2643 = vpack.c.b16 %v2427, %v2423
    %v2644 = vpack.c.b16 %v2428, %v2424
    %v2645 = vpack.c.b16 %v2429, %v2425
    %v2646 = vpack.c.b16 %v2434, %v2430
    %v2647 = vpack.c.b16 %v2435, %v2431
    %v2648 = vpack.c.b16 %v2436, %v2432
    %v2649 = vpack.c.b16 %v2437, %v2433
    %v2650 = vpack.c.b16 %v2442, %v2438
    %v2651 = vpack.c.b16 %v2443, %v2439
    %v2652 = vpack.c.b16 %v2444, %v2440
    %v2653 = vpack.c.b16 %v2445, %v2441
    %v2654 = vpack.c.b16 %v2450, %v2446
    %v2655 = vpack.c.b16 %v2451, %v2447
    %v2656 = vpack.c.b16 %v2452, %v2448
    %v2657 = vpack.c.b16 %v2453, %v2449
    %v2658 = vpack.c.b16 %v2458, %v2454
    %v2659 = vpack.c.b16 %v2459, %v2455
    %v2660 = vpack.c.b16 %v2460, %v2456
    %v2661 = vpack.c.b16 %v2461, %v2457
    %v2662 = vpack.c.b16 %v2466, %v2462
    %v2663 = vpack.c.b16 %v2467, %v2463
    %v2664 = vpack.c.b16 %v2468, %v2464
    %v2665 = vpack.c.b16 %v2469, %v2465
    %v2666 = vpack.c.b16 %v2474, %v2470
    %v2667 = vpack.c.b16 %v2475, %v2471
    %v2668 = vpack.c.b16 %v2476, %v2472
    %v2669 = vpack.c.b16 %v2477, %v2473
    %v2670 = vpack.c.b16 %v2482, %v2478
    %v2671 = vpack.c.b16 %v2483, %v2479
    %v2672 = vpack.c.b16 %v2484, %v2480
    %v2673 = vpack.c.b16 %v2485, %v2481
    %v2674 = vpack.c.b16 %v2490, %v2486
    %v2675 = vpack.c.b16 %v2491, %v2487
    %v2676 = vpack.c.b16 %v2492, %v2488
    %v2677 = vpack.c.b16 %v2493, %v2489
    %v2678 = vpack.c.b16 %v2498, %v2494
    %v2679 = vpack.c.b16 %v2499, %v2495
    %v2680 = vpack.c.b16 %v2500, %v2496
    %v2681 = vpack.c.b16 %v2501, %v2497
    %v2682 = vpack.c.b16 %v2506, %v2502
    %v2683 = vpack.c.b16 %v2507, %v2503
    %v2684 = vpack.c.b16 %v2508, %v2504
    %v2685 = vpack.c.b16 %v2509, %v2505
    %v2686 = vpack.c.b16 %v2514, %v2510
    %v2687 = vpack.c.b16 %v2515, %v2511
    %v2688 = vpack.c.b16 %v2516, %v2512
    %v2689 = vpack.c.b16 %v2517, %v2513
    %v2690 = vpack.c.b16 %v2522, %v2518
    %v2691 = vpack.c.b16 %v2523, %v2519
    %v2692 = vpack.c.b16 %v2524, %v2520
    %v2693 = vpack.c.b16 %v2525, %v2521
    %v2694 = vpack.c.b16 %v2530, %v2526
    %v2695 = vpack.c.b16 %v2531, %v2527
    %v2696 = vpack.c.b16 %v2532, %v2528
    %v2697 = vpack.c.b16 %v2533, %v2529
    %v2698 = vpack.c.b16 %v2538, %v2534
    %v2699 = vpack.c.b16 %v2539, %v2535
    %v2700 = vpack.c.b16 %v2540, %v2536
    %v2701 = vpack.c.b16 %v2541, %v2537
    %v2702 = vpack.c.b16 %v2546, %v2542
    %v2703 = vpack.c.b16 %v2547, %v2543
    %v2704 = vpack.c.b16 %v2548, %v2544
    %v2705 = vpack.c.b16 %v2549, %v2545
    %v2706 = vpack.c.b16 %v2554, %v2550
    %v2707 = vpack.c.b16 %v2555, %v2551
    %v2708 = vpack.c.b16 %v2556, %v2552
    %v2709 = vpack.c.b16 %v2557, %v2553
    %v2710 = vpack.c.b16 %v2562, %v2558
    %v2711 = vpack.c.b16 %v2563, %v2559
    %v2712 = vpack.c.b16 %v2564, %v2560
    %v2713 = vpack.c.b16 %v2565, %v2561
    %v2714 = vpack.c.b16 %v2570, %v2566
    %v2715 = vpack.c.b16 %v2571, %v2567
    %v2716 = vpack.c.b16 %v2572, %v2568
    %v2717 = vpack.c.b16 %v2573, %v2569
    %v2718 = vpack.c.b16 %v2578, %v2574
    %v2719 = vpack.c.b16 %v2579, %v2575
    %v2720 = vpack.c.b16 %v2580, %v2576
    %v2721 = vpack.c.b16 %v2581, %v2577
    %v2722 = vpack.c.b16 %v2586, %v2582
    %v2723 = vpack.c.b16 %v2587, %v2583
    %v2724 = vpack.c.b16 %v2588, %v2584
    %v2725 = vpack.c.b16 %v2589, %v2585
    %v2726 = vpack.c.b16 %v2594, %v2590
    %v2727 = vpack.c.b16 %v2595, %v2591
    %v2728 = vpack.c.b16 %v2596, %v2592
    %v2729 = vpack.c.b16 %v2597, %v2593
    %v2730 = vpack.c.b16 %v2602, %v2598
    %v2731 = vpack.c.b16 %v2603, %v2599
    %v2732 = vpack.c.b16 %v2604, %v2600
    %v2733 = vpack.c.b16 %v2605, %v2601
    %2862 = vmatpush.bf16.msra.mxu0 %v2634
    %2863 = vmatpush.bf16.msra.mxu0 %v2630
    %2864 = vmatpush.bf16.msra.mxu0 %v2626
    %2865 = vmatpush.bf16.msra.mxu0 %v2622
    %2866 = vmatpush.bf16.msra.mxu0 %v2618
    %2867 = vmatpush.bf16.msra.mxu0 %v2614
    %2868 = vmatpush.bf16.msra.mxu0 %v2610
    %2869 = vmatpush.bf16.msra.mxu0 %v2606
    %2870 = vmatmul.bf16.gmra.mxu0 %v2080
    %v2871 = vpop.f32.mrf.mxu0
    %v2872 = vadd.f32 %v2214, %v2871
    %v2873 = vpop.f32.mrf.mxu0
    %v2874 = vadd.f32 %v2214, %v2873
    %2875 = vdwg.mxu0
    %2876 = vmatpush.bf16.msra.mxu0 %v2666
    %2877 = vmatpush.bf16.msra.mxu0 %v2662
    %2878 = vmatpush.bf16.msra.mxu0 %v2658
    %2879 = vmatpush.bf16.msra.mxu0 %v2654
    %2880 = vmatpush.bf16.msra.mxu0 %v2650
    %2881 = vmatpush.bf16.msra.mxu0 %v2646
    %2882 = vmatpush.bf16.msra.mxu0 %v2642
    %2883 = vmatpush.bf16.msra.mxu0 %v2638
    %2884 = vmatmul.bf16.gmra.mxu0 %v2081
    %v2885 = vpop.f32.mrf.mxu0
    %v2886 = vadd.f32 %v2872, %v2885
    %v2887 = vpop.f32.mrf.mxu0
    %v2888 = vadd.f32 %v2874, %v2887
    %2889 = vdwg.mxu0
    %2890 = vmatpush.bf16.msra.mxu0 %v2698
    %2891 = vmatpush.bf16.msra.mxu0 %v2694
    %2892 = vmatpush.bf16.msra.mxu0 %v2690
    %2893 = vmatpush.bf16.msra.mxu0 %v2686
    %2894 = vmatpush.bf16.msra.mxu0 %v2682
    %2895 = vmatpush.bf16.msra.mxu0 %v2678
    %2896 = vmatpush.bf16.msra.mxu0 %v2674
    %2897 = vmatpush.bf16.msra.mxu0 %v2670
    %2898 = vmatmul.bf16.gmra.mxu0 %v2082
    %v2899 = vpop.f32.mrf.mxu0
    %v2900 = vadd.f32 %v2886, %v2899
    %v2901 = vpop.f32.mrf.mxu0
    %v2902 = vadd.f32 %v2888, %v2901
    %2903 = vdwg.mxu0
    %2904 = vmatpush.bf16.msra.mxu0 %v2730
    %2905 = vmatpush.bf16.msra.mxu0 %v2726
    %2906 = vmatpush.bf16.msra.mxu0 %v2722
    %2907 = vmatpush.bf16.msra.mxu0 %v2718
    %2908 = vmatpush.bf16.msra.mxu0 %v2714
    %2909 = vmatpush.bf16.msra.mxu0 %v2710
    %2910 = vmatpush.bf16.msra.mxu0 %v2706
    %2911 = vmatpush.bf16.msra.mxu0 %v2702
    %2912 = vmatmul.bf16.gmra.mxu0 %v2083
    %v2913 = vpop.f32.mrf.mxu0
    %v2914 = vadd.f32 %v2900, %v2913
    %v2915 = vpop.f32.mrf.mxu0
    %v2916 = vadd.f32 %v2902, %v2915
    %2917 = vdwg.mxu0
    %2918 = vmatpush.bf16.msra.mxu0 %v2635
    %2919 = vmatpush.bf16.msra.mxu0 %v2631
    %2920 = vmatpush.bf16.msra.mxu0 %v2627
    %2921 = vmatpush.bf16.msra.mxu0 %v2623
    %2922 = vmatpush.bf16.msra.mxu0 %v2619
    %2923 = vmatpush.bf16.msra.mxu0 %v2615
    %2924 = vmatpush.bf16.msra.mxu0 %v2611
    %2925 = vmatpush.bf16.msra.mxu0 %v2607
    %2926 = vmatmul.bf16.gmra.mxu0 %v2080
    %v2927 = vpop.f32.mrf.mxu0
    %v2928 = vadd.f32 %v2215, %v2927
    %v2929 = vpop.f32.mrf.mxu0
    %v2930 = vadd.f32 %v2215, %v2929
    %2931 = vdwg.mxu0
    %2932 = vmatpush.bf16.msra.mxu0 %v2667
    %2933 = vmatpush.bf16.msra.mxu0 %v2663
    %2934 = vmatpush.bf16.msra.mxu0 %v2659
    %2935 = vmatpush.bf16.msra.mxu0 %v2655
    %2936 = vmatpush.bf16.msra.mxu0 %v2651
    %2937 = vmatpush.bf16.msra.mxu0 %v2647
    %2938 = vmatpush.bf16.msra.mxu0 %v2643
    %2939 = vmatpush.bf16.msra.mxu0 %v2639
    %2940 = vmatmul.bf16.gmra.mxu0 %v2081
    %v2941 = vpop.f32.mrf.mxu0
    %v2942 = vadd.f32 %v2928, %v2941
    %v2943 = vpop.f32.mrf.mxu0
    %v2944 = vadd.f32 %v2930, %v2943
    %2945 = vdwg.mxu0
    %2946 = vmatpush.bf16.msra.mxu0 %v2699
    %2947 = vmatpush.bf16.msra.mxu0 %v2695
    %2948 = vmatpush.bf16.msra.mxu0 %v2691
    %2949 = vmatpush.bf16.msra.mxu0 %v2687
    %2950 = vmatpush.bf16.msra.mxu0 %v2683
    %2951 = vmatpush.bf16.msra.mxu0 %v2679
    %2952 = vmatpush.bf16.msra.mxu0 %v2675
    %2953 = vmatpush.bf16.msra.mxu0 %v2671
    %2954 = vmatmul.bf16.gmra.mxu0 %v2082
    %v2955 = vpop.f32.mrf.mxu0
    %v2956 = vadd.f32 %v2942, %v2955
    %v2957 = vpop.f32.mrf.mxu0
    %v2958 = vadd.f32 %v2944, %v2957
    %2959 = vdwg.mxu0
    %2960 = vmatpush.bf16.msra.mxu0 %v2731
    %2961 = vmatpush.bf16.msra.mxu0 %v2727
    %2962 = vmatpush.bf16.msra.mxu0 %v2723
    %2963 = vmatpush.bf16.msra.mxu0 %v2719
    %2964 = vmatpush.bf16.msra.mxu0 %v2715
    %2965 = vmatpush.bf16.msra.mxu0 %v2711
    %2966 = vmatpush.bf16.msra.mxu0 %v2707
    %2967 = vmatpush.bf16.msra.mxu0 %v2703
    %2968 = vmatmul.bf16.gmra.mxu0 %v2083
    %v2969 = vpop.f32.mrf.mxu0
    %v2970 = vadd.f32 %v2956, %v2969
    %v2971 = vpop.f32.mrf.mxu0
    %v2972 = vadd.f32 %v2958, %v2971
    %2973 = vdwg.mxu0
    %2974 = vmatpush.bf16.msra.mxu0 %v2636
    %2975 = vmatpush.bf16.msra.mxu0 %v2632
    %2976 = vmatpush.bf16.msra.mxu0 %v2628
    %2977 = vmatpush.bf16.msra.mxu0 %v2624
    %2978 = vmatpush.bf16.msra.mxu0 %v2620
    %2979 = vmatpush.bf16.msra.mxu0 %v2616
    %2980 = vmatpush.bf16.msra.mxu0 %v2612
    %2981 = vmatpush.bf16.msra.mxu0 %v2608
    %2982 = vmatmul.bf16.gmra.mxu0 %v2080
    %v2983 = vpop.f32.mrf.mxu0
    %v2984 = vadd.f32 %v2216, %v2983
    %v2985 = vpop.f32.mrf.mxu0
    %v2986 = vadd.f32 %v2216, %v2985
    %2987 = vdwg.mxu0
    %2988 = vmatpush.bf16.msra.mxu0 %v2668
    %2989 = vmatpush.bf16.msra.mxu0 %v2664
    %2990 = vmatpush.bf16.msra.mxu0 %v2660
    %2991 = vmatpush.bf16.msra.mxu0 %v2656
    %2992 = vmatpush.bf16.msra.mxu0 %v2652
    %2993 = vmatpush.bf16.msra.mxu0 %v2648
    %2994 = vmatpush.bf16.msra.mxu0 %v2644
    %2995 = vmatpush.bf16.msra.mxu0 %v2640
    %2996 = vmatmul.bf16.gmra.mxu0 %v2081
    %v2997 = vpop.f32.mrf.mxu0
    %v2998 = vadd.f32 %v2984, %v2997
    %v2999 = vpop.f32.mrf.mxu0
    %v3000 = vadd.f32 %v2986, %v2999
    %3001 = vdwg.mxu0
    %3002 = vmatpush.bf16.msra.mxu0 %v2700
    %3003 = vmatpush.bf16.msra.mxu0 %v2696
    %3004 = vmatpush.bf16.msra.mxu0 %v2692
    %3005 = vmatpush.bf16.msra.mxu0 %v2688
    %3006 = vmatpush.bf16.msra.mxu0 %v2684
    %3007 = vmatpush.bf16.msra.mxu0 %v2680
    %3008 = vmatpush.bf16.msra.mxu0 %v2676
    %3009 = vmatpush.bf16.msra.mxu0 %v2672
    %3010 = vmatmul.bf16.gmra.mxu0 %v2082
    %v3011 = vpop.f32.mrf.mxu0
    %v3012 = vadd.f32 %v2998, %v3011
    %v3013 = vpop.f32.mrf.mxu0
    %v3014 = vadd.f32 %v3000, %v3013
    %3015 = vdwg.mxu0
    %3016 = vmatpush.bf16.msra.mxu0 %v2732
    %3017 = vmatpush.bf16.msra.mxu0 %v2728
    %3018 = vmatpush.bf16.msra.mxu0 %v2724
    %3019 = vmatpush.bf16.msra.mxu0 %v2720
    %3020 = vmatpush.bf16.msra.mxu0 %v2716
    %3021 = vmatpush.bf16.msra.mxu0 %v2712
    %3022 = vmatpush.bf16.msra.mxu0 %v2708
    %3023 = vmatpush.bf16.msra.mxu0 %v2704
    %3024 = vmatmul.bf16.gmra.mxu0 %v2083
    %v3025 = vpop.f32.mrf.mxu0
    %v3026 = vadd.f32 %v3012, %v3025
    %v3027 = vpop.f32.mrf.mxu0
    %v3028 = vadd.f32 %v3014, %v3027
    %3029 = vdwg.mxu0
    %3030 = vmatpush.bf16.msra.mxu0 %v2637
    %3031 = vmatpush.bf16.msra.mxu0 %v2633
    %3032 = vmatpush.bf16.msra.mxu0 %v2629
    %3033 = vmatpush.bf16.msra.mxu0 %v2625
    %3034 = vmatpush.bf16.msra.mxu0 %v2621
    %3035 = vmatpush.bf16.msra.mxu0 %v2617
    %3036 = vmatpush.bf16.msra.mxu0 %v2613
    %3037 = vmatpush.bf16.msra.mxu0 %v2609
    %3038 = vmatmul.bf16.gmra.mxu0 %v2080
    %v3039 = vpop.f32.mrf.mxu0
    %v3040 = vadd.f32 %v2217, %v3039
    %v3041 = vpop.f32.mrf.mxu0
    %v3042 = vadd.f32 %v2217, %v3041
    %3043 = vdwg.mxu0
    %3044 = vmatpush.bf16.msra.mxu0 %v2669
    %3045 = vmatpush.bf16.msra.mxu0 %v2665
    %3046 = vmatpush.bf16.msra.mxu0 %v2661
    %3047 = vmatpush.bf16.msra.mxu0 %v2657
    %3048 = vmatpush.bf16.msra.mxu0 %v2653
    %3049 = vmatpush.bf16.msra.mxu0 %v2649
    %3050 = vmatpush.bf16.msra.mxu0 %v2645
    %3051 = vmatpush.bf16.msra.mxu0 %v2641
    %3052 = vmatmul.bf16.gmra.mxu0 %v2081
    %v3053 = vpop.f32.mrf.mxu0
    %v3054 = vadd.f32 %v3040, %v3053
    %v3055 = vpop.f32.mrf.mxu0
    %v3056 = vadd.f32 %v3042, %v3055
    %3057 = vdwg.mxu0
    %3058 = vmatpush.bf16.msra.mxu0 %v2701
    %3059 = vmatpush.bf16.msra.mxu0 %v2697
    %3060 = vmatpush.bf16.msra.mxu0 %v2693
    %3061 = vmatpush.bf16.msra.mxu0 %v2689
    %3062 = vmatpush.bf16.msra.mxu0 %v2685
    %3063 = vmatpush.bf16.msra.mxu0 %v2681
    %3064 = vmatpush.bf16.msra.mxu0 %v2677
    %3065 = vmatpush.bf16.msra.mxu0 %v2673
    %3066 = vmatmul.bf16.gmra.mxu0 %v2082
    %v3067 = vpop.f32.mrf.mxu0
    %v3068 = vadd.f32 %v3054, %v3067
    %v3069 = vpop.f32.mrf.mxu0
    %v3070 = vadd.f32 %v3056, %v3069
    %3071 = vdwg.mxu0
    %3072 = vmatpush.bf16.msra.mxu0 %v2733
    %3073 = vmatpush.bf16.msra.mxu0 %v2729
    %3074 = vmatpush.bf16.msra.mxu0 %v2725
    %3075 = vmatpush.bf16.msra.mxu0 %v2721
    %3076 = vmatpush.bf16.msra.mxu0 %v2717
    %3077 = vmatpush.bf16.msra.mxu0 %v2713
    %3078 = vmatpush.bf16.msra.mxu0 %v2709
    %3079 = vmatpush.bf16.msra.mxu0 %v2705
    %3080 = vmatmul.bf16.gmra.mxu0 %v2083
    %v3081 = vpop.f32.mrf.mxu0
    %v3082 = vadd.f32 %v3068, %v3081
    %v3083 = vpop.f32.mrf.mxu0
    %v3084 = vadd.f32 %v3070, %v3083
    %3085 = vdwg.mxu0
    %v3086 = vmax.f32 %v2914, 0.0
    %v3087 = vmax.f32 %v2970, 0.0
    %v3088 = vmax.f32 %v3026, 0.0
    %v3089 = vmax.f32 %v3082, 0.0
    %v3090 = vmax.f32 %v2916, 0.0
    %v3091 = vmax.f32 %v2972, 0.0
    %v3092 = vmax.f32 %v3028, 0.0
    %v3093 = vmax.f32 %v3084, 0.0
    %v3094 = vpack.c.bf16 %v3090, %v3086
    %v3095 = vpack.c.bf16 %v3091, %v3087
    %v3096 = vpack.c.bf16 %v3092, %v3088
    %v3097 = vpack.c.bf16 %v3093, %v3089
    %v3098 = vld [vmem:[%s10] sm:$0xff]
    %v3099 = vld [vmem:[%s10 + $0x8] sm:$0xf]
    %v3100 = vld [vmem:[%s10 + $0xc] sm:$0xff]
    %v3101 = vld [vmem:[%s10 + $0x14] sm:$0xf]
    %v3102 = vld [vmem:[%s10 + $0x18] sm:$0xff]
    %v3103 = vld [vmem:[%s10 + $0x20] sm:$0xf]
    %v3104 = vld [vmem:[%s10 + $0x24] sm:$0xff]
    %v3105 = vld [vmem:[%s10 + $0x2c] sm:$0xf]
    %v3106 = vld [vmem:[%s10 + $0x30] sm:$0xff]
    %v3107 = vld [vmem:[%s10 + $0x38] sm:$0xf]
    %v3108 = vld [vmem:[%s10 + $0x3c] sm:$0xff]
    %v3109 = vld [vmem:[%s10 + $0x44] sm:$0xf]
    %v3110 = vld [vmem:[%s10 + $0x48] sm:$0xff]
    %v3111 = vld [vmem:[%s10 + $0x50] sm:$0xf]
    %v3112 = vld [vmem:[%s10 + $0x54] sm:$0xff]
    %v3113 = vld [vmem:[%s10 + $0x5c] sm:$0xf]
    %v3114 = vld [vmem:[%s10 + $0x60] sm:$0xff]
    %v3115 = vld [vmem:[%s10 + $0x68] sm:$0xf]
    %v3116 = vld [vmem:[%s10 + $0x6c] sm:$0xff]
    %v3117 = vld [vmem:[%s10 + $0x74] sm:$0xf]
    %v3118 = vld [vmem:[%s10 + $0x78] sm:$0xff]
    %v3119 = vld [vmem:[%s10 + $0x80] sm:$0xf]
    %v3120 = vld [vmem:[%s10 + $0x84] sm:$0xff]
    %v3121 = vld [vmem:[%s10 + $0x8c] sm:$0xf]
    %v3122 = vld [vmem:[%s10 + $0x90] sm:$0xff]
    %v3123 = vld [vmem:[%s10 + $0x98] sm:$0xf]
    %v3124 = vld [vmem:[%s10 + $0x9c] sm:$0xff]
    %v3125 = vld [vmem:[%s10 + $0xa4] sm:$0xf]
    %v3126 = vld [vmem:[%s10 + $0xa8] sm:$0xff]
    %v3127 = vld [vmem:[%s10 + $0xb0] sm:$0xf]
    %v3128 = vld [vmem:[%s10 + $0xb4] sm:$0xff]
    %v3129 = vld [vmem:[%s10 + $0xbc] sm:$0xf]
    %v3130 = vld [vmem:[%s10 + $0xc0] sm:$0xff]
    %v3131 = vld [vmem:[%s10 + $0xc8] sm:$0xf]
    %v3132 = vld [vmem:[%s10 + $0xcc] sm:$0xff]
    %v3133 = vld [vmem:[%s10 + $0xd4] sm:$0xf]
    %v3134 = vld [vmem:[%s10 + $0xd8] sm:$0xff]
    %v3135 = vld [vmem:[%s10 + $0xe0] sm:$0xf]
    %v3136 = vld [vmem:[%s10 + $0xe4] sm:$0xff]
    %v3137 = vld [vmem:[%s10 + $0xec] sm:$0xf]
    %v3138 = vld [vmem:[%s10 + $0xf0] sm:$0xff]
    %v3139 = vld [vmem:[%s10 + $0xf8] sm:$0xf]
    %v3140 = vld [vmem:[%s10 + $0xfc] sm:$0xff]
    %v3141 = vld [vmem:[%s10 + $0x104] sm:$0xf]
    %v3142 = vld [vmem:[%s10 + $0x108] sm:$0xff]
    %v3143 = vld [vmem:[%s10 + $0x110] sm:$0xf]
    %v3144 = vld [vmem:[%s10 + $0x114] sm:$0xff]
    %v3145 = vld [vmem:[%s10 + $0x11c] sm:$0xf]
    %v3146 = vld [vmem:[%s10 + $0x120] sm:$0xff]
    %v3147 = vld [vmem:[%s10 + $0x128] sm:$0xf]
    %v3148 = vld [vmem:[%s10 + $0x12c] sm:$0xff]
    %v3149 = vld [vmem:[%s10 + $0x134] sm:$0xf]
    %v3150 = vld [vmem:[%s10 + $0x138] sm:$0xff]
    %v3151 = vld [vmem:[%s10 + $0x140] sm:$0xf]
    %v3152 = vld [vmem:[%s10 + $0x144] sm:$0xff]
    %v3153 = vld [vmem:[%s10 + $0x14c] sm:$0xf]
    %v3154 = vld [vmem:[%s10 + $0x150] sm:$0xff]
    %v3155 = vld [vmem:[%s10 + $0x158] sm:$0xf]
    %v3156 = vld [vmem:[%s10 + $0x15c] sm:$0xff]
    %v3157 = vld [vmem:[%s10 + $0x164] sm:$0xf]
    %v3158 = vld [vmem:[%s10 + $0x168] sm:$0xff]
    %v3159 = vld [vmem:[%s10 + $0x170] sm:$0xf]
    %v3160 = vld [vmem:[%s10 + $0x174] sm:$0xff]
    %v3161 = vld [vmem:[%s10 + $0x17c] sm:$0xf]
    %v3162 = vld [vmem:[%s10 + $0x180] sm:$0xff]
    %v3163 = vld [vmem:[%s10 + $0x188] sm:$0xf]
    %v3164 = vld [vmem:[%s10 + $0x18c] sm:$0xff]
    %v3165 = vld [vmem:[%s10 + $0x194] sm:$0xf]
    %v3166 = vld [vmem:[%s10 + $0x198] sm:$0xff]
    %v3167 = vld [vmem:[%s10 + $0x1a0] sm:$0xf]
    %v3168 = vld [vmem:[%s10 + $0x1a4] sm:$0xff]
    %v3169 = vld [vmem:[%s10 + $0x1ac] sm:$0xf]
    %v3170 = vld [vmem:[%s10 + $0x1b0] sm:$0xff]
    %v3171 = vld [vmem:[%s10 + $0x1b8] sm:$0xf]
    %v3172 = vld [vmem:[%s10 + $0x1bc] sm:$0xff]
    %v3173 = vld [vmem:[%s10 + $0x1c4] sm:$0xf]
    %v3174 = vld [vmem:[%s10 + $0x1c8] sm:$0xff]
    %v3175 = vld [vmem:[%s10 + $0x1d0] sm:$0xf]
    %v3176 = vld [vmem:[%s10 + $0x1d4] sm:$0xff]
    %v3177 = vld [vmem:[%s10 + $0x1dc] sm:$0xf]
    %v3178 = vld [vmem:[%s10 + $0x1e0] sm:$0xff]
    %v3179 = vld [vmem:[%s10 + $0x1e8] sm:$0xf]
    %v3180 = vld [vmem:[%s10 + $0x1ec] sm:$0xff]
    %v3181 = vld [vmem:[%s10 + $0x1f4] sm:$0xf]
    %v3182 = vld [vmem:[%s10 + $0x1f8] sm:$0xff]
    %v3183 = vld [vmem:[%s10 + $0x200] sm:$0xf]
    %v3184 = vld [vmem:[%s10 + $0x204] sm:$0xff]
    %v3185 = vld [vmem:[%s10 + $0x20c] sm:$0xf]
    %v3186 = vld [vmem:[%s10 + $0x210] sm:$0xff]
    %v3187 = vld [vmem:[%s10 + $0x218] sm:$0xf]
    %v3188 = vld [vmem:[%s10 + $0x21c] sm:$0xff]
    %v3189 = vld [vmem:[%s10 + $0x224] sm:$0xf]
    %v3190 = vld [vmem:[%s10 + $0x228] sm:$0xff]
    %v3191 = vld [vmem:[%s10 + $0x230] sm:$0xf]
    %v3192 = vld [vmem:[%s10 + $0x234] sm:$0xff]
    %v3193 = vld [vmem:[%s10 + $0x23c] sm:$0xf]
    %v3194 = vld [vmem:[%s10 + $0x240] sm:$0xff]
    %v3195 = vld [vmem:[%s10 + $0x248] sm:$0xf]
    %v3196 = vld [vmem:[%s10 + $0x24c] sm:$0xff]
    %v3197 = vld [vmem:[%s10 + $0x254] sm:$0xf]
    %v3198 = vld [vmem:[%s10 + $0x258] sm:$0xff]
    %v3199 = vld [vmem:[%s10 + $0x260] sm:$0xf]
    %v3200 = vld [vmem:[%s10 + $0x264] sm:$0xff]
    %v3201 = vld [vmem:[%s10 + $0x26c] sm:$0xf]
    %v3202 = vld [vmem:[%s10 + $0x270] sm:$0xff]
    %v3203 = vld [vmem:[%s10 + $0x278] sm:$0xf]
    %v3204 = vld [vmem:[%s10 + $0x27c] sm:$0xff]
    %v3205 = vld [vmem:[%s10 + $0x284] sm:$0xf]
    %v3206 = vld [vmem:[%s10 + $0x288] sm:$0xff]
    %v3207 = vld [vmem:[%s10 + $0x290] sm:$0xf]
    %v3208 = vld [vmem:[%s10 + $0x294] sm:$0xff]
    %v3209 = vld [vmem:[%s10 + $0x29c] sm:$0xf]
    %v3210 = vld [vmem:[%s10 + $0x2a0] sm:$0xff]
    %v3211 = vld [vmem:[%s10 + $0x2a8] sm:$0xf]
    %v3212 = vld [vmem:[%s10 + $0x2ac] sm:$0xff]
    %v3213 = vld [vmem:[%s10 + $0x2b4] sm:$0xf]
    %v3214 = vld [vmem:[%s10 + $0x2b8] sm:$0xff]
    %v3215 = vld [vmem:[%s10 + $0x2c0] sm:$0xf]
    %v3216 = vld [vmem:[%s10 + $0x2c4] sm:$0xff]
    %v3217 = vld [vmem:[%s10 + $0x2cc] sm:$0xf]
    %v3218 = vld [vmem:[%s10 + $0x2d0] sm:$0xff]
    %v3219 = vld [vmem:[%s10 + $0x2d8] sm:$0xf]
    %v3220 = vld [vmem:[%s10 + $0x2dc] sm:$0xff]
    %v3221 = vld [vmem:[%s10 + $0x2e4] sm:$0xf]
    %v3222 = vld [vmem:[%s10 + $0x2e8] sm:$0xff]
    %v3223 = vld [vmem:[%s10 + $0x2f0] sm:$0xf]
    %v3224 = vld [vmem:[%s10 + $0x2f4] sm:$0xff]
    %v3225 = vld [vmem:[%s10 + $0x2fc] sm:$0xf]
    %v3226 = vld [vmem:[%s11] sm:$0x7]
    %v3228 = vperm.slane %v3226, 0
    %v3229 = vperm.slane %v3226, 1
    %v3230 = vperm.slane %v3226, 2
    %v3362 = vunpack.c.l.b16 %v3098
    %v3363 = vunpack.c.h.b16 %v3098
    %v3364 = vunpack.c.l.b16 %v3099
    %v3365 = vunpack.c.l.b16 %v3100
    %v3366 = vunpack.c.h.b16 %v3100
    %v3367 = vunpack.c.l.b16 %v3101
    %v3368 = vunpack.c.l.b16 %v3102
    %v3369 = vunpack.c.h.b16 %v3102
    %v3370 = vunpack.c.l.b16 %v3103
    %v3371 = vunpack.c.l.b16 %v3104
    %v3372 = vunpack.c.h.b16 %v3104
    %v3373 = vunpack.c.l.b16 %v3105
    %v3374 = vunpack.c.l.b16 %v3106
    %v3375 = vunpack.c.h.b16 %v3106
    %v3376 = vunpack.c.l.b16 %v3107
    %v3377 = vunpack.c.l.b16 %v3108
    %v3378 = vunpack.c.h.b16 %v3108
    %v3379 = vunpack.c.l.b16 %v3109
    %v3380 = vunpack.c.l.b16 %v3110
    %v3381 = vunpack.c.h.b16 %v3110
    %v3382 = vunpack.c.l.b16 %v3111
    %v3383 = vunpack.c.l.b16 %v3112
    %v3384 = vunpack.c.h.b16 %v3112
    %v3385 = vunpack.c.l.b16 %v3113
    %v3386 = vunpack.c.l.b16 %v3114
    %v3387 = vunpack.c.h.b16 %v3114
    %v3388 = vunpack.c.l.b16 %v3115
    %v3389 = vunpack.c.l.b16 %v3116
    %v3390 = vunpack.c.h.b16 %v3116
    %v3391 = vunpack.c.l.b16 %v3117
    %v3392 = vunpack.c.l.b16 %v3118
    %v3393 = vunpack.c.h.b16 %v3118
    %v3394 = vunpack.c.l.b16 %v3119
    %v3395 = vunpack.c.l.b16 %v3120
    %v3396 = vunpack.c.h.b16 %v3120
    %v3397 = vunpack.c.l.b16 %v3121
    %v3398 = vunpack.c.l.b16 %v3122
    %v3399 = vunpack.c.h.b16 %v3122
    %v3400 = vunpack.c.l.b16 %v3123
    %v3401 = vunpack.c.l.b16 %v3124
    %v3402 = vunpack.c.h.b16 %v3124
    %v3403 = vunpack.c.l.b16 %v3125
    %v3404 = vunpack.c.l.b16 %v3126
    %v3405 = vunpack.c.h.b16 %v3126
    %v3406 = vunpack.c.l.b16 %v3127
    %v3407 = vunpack.c.l.b16 %v3128
    %v3408 = vunpack.c.h.b16 %v3128
    %v3409 = vunpack.c.l.b16 %v3129
    %v3410 = vunpack.c.l.b16 %v3130
    %v3411 = vunpack.c.h.b16 %v3130
    %v3412 = vunpack.c.l.b16 %v3131
    %v3413 = vunpack.c.l.b16 %v3132
    %v3414 = vunpack.c.h.b16 %v3132
    %v3415 = vunpack.c.l.b16 %v3133
    %v3416 = vunpack.c.l.b16 %v3134
    %v3417 = vunpack.c.h.b16 %v3134
    %v3418 = vunpack.c.l.b16 %v3135
    %v3419 = vunpack.c.l.b16 %v3136
    %v3420 = vunpack.c.h.b16 %v3136
    %v3421 = vunpack.c.l.b16 %v3137
    %v3422 = vunpack.c.l.b16 %v3138
    %v3423 = vunpack.c.h.b16 %v3138
    %v3424 = vunpack.c.l.b16 %v3139
    %v3425 = vunpack.c.l.b16 %v3140
    %v3426 = vunpack.c.h.b16 %v3140
    %v3427 = vunpack.c.l.b16 %v3141
    %v3428 = vunpack.c.l.b16 %v3142
    %v3429 = vunpack.c.h.b16 %v3142
    %v3430 = vunpack.c.l.b16 %v3143
    %v3431 = vunpack.c.l.b16 %v3144
    %v3432 = vunpack.c.h.b16 %v3144
    %v3433 = vunpack.c.l.b16 %v3145
    %v3434 = vunpack.c.l.b16 %v3146
    %v3435 = vunpack.c.h.b16 %v3146
    %v3436 = vunpack.c.l.b16 %v3147
    %v3437 = vunpack.c.l.b16 %v3148
    %v3438 = vunpack.c.h.b16 %v3148
    %v3439 = vunpack.c.l.b16 %v3149
    %v3440 = vunpack.c.l.b16 %v3150
    %v3441 = vunpack.c.h.b16 %v3150
    %v3442 = vunpack.c.l.b16 %v3151
    %v3443 = vunpack.c.l.b16 %v3152
    %v3444 = vunpack.c.h.b16 %v3152
    %v3445 = vunpack.c.l.b16 %v3153
    %v3446 = vunpack.c.l.b16 %v3154
    %v3447 = vunpack.c.h.b16 %v3154
    %v3448 = vunpack.c.l.b16 %v3155
    %v3449 = vunpack.c.l.b16 %v3156
    %v3450 = vunpack.c.h.b16 %v3156
    %v3451 = vunpack.c.l.b16 %v3157
    %v3452 = vunpack.c.l.b16 %v3158
    %v3453 = vunpack.c.h.b16 %v3158
    %v3454 = vunpack.c.l.b16 %v3159
    %v3455 = vunpack.c.l.b16 %v3160
    %v3456 = vunpack.c.h.b16 %v3160
    %v3457 = vunpack.c.l.b16 %v3161
    %v3458 = vunpack.c.l.b16 %v3162
    %v3459 = vunpack.c.h.b16 %v3162
    %v3460 = vunpack.c.l.b16 %v3163
    %v3461 = vunpack.c.l.b16 %v3164
    %v3462 = vunpack.c.h.b16 %v3164
    %v3463 = vunpack.c.l.b16 %v3165
    %v3464 = vunpack.c.l.b16 %v3166
    %v3465 = vunpack.c.h.b16 %v3166
    %v3466 = vunpack.c.l.b16 %v3167
    %v3467 = vunpack.c.l.b16 %v3168
    %v3468 = vunpack.c.h.b16 %v3168
    %v3469 = vunpack.c.l.b16 %v3169
    %v3470 = vunpack.c.l.b16 %v3170
    %v3471 = vunpack.c.h.b16 %v3170
    %v3472 = vunpack.c.l.b16 %v3171
    %v3473 = vunpack.c.l.b16 %v3172
    %v3474 = vunpack.c.h.b16 %v3172
    %v3475 = vunpack.c.l.b16 %v3173
    %v3476 = vunpack.c.l.b16 %v3174
    %v3477 = vunpack.c.h.b16 %v3174
    %v3478 = vunpack.c.l.b16 %v3175
    %v3479 = vunpack.c.l.b16 %v3176
    %v3480 = vunpack.c.h.b16 %v3176
    %v3481 = vunpack.c.l.b16 %v3177
    %v3482 = vunpack.c.l.b16 %v3178
    %v3483 = vunpack.c.h.b16 %v3178
    %v3484 = vunpack.c.l.b16 %v3179
    %v3485 = vunpack.c.l.b16 %v3180
    %v3486 = vunpack.c.h.b16 %v3180
    %v3487 = vunpack.c.l.b16 %v3181
    %v3488 = vunpack.c.l.b16 %v3182
    %v3489 = vunpack.c.h.b16 %v3182
    %v3490 = vunpack.c.l.b16 %v3183
    %v3491 = vunpack.c.l.b16 %v3184
    %v3492 = vunpack.c.h.b16 %v3184
    %v3493 = vunpack.c.l.b16 %v3185
    %v3494 = vunpack.c.l.b16 %v3186
    %v3495 = vunpack.c.h.b16 %v3186
    %v3496 = vunpack.c.l.b16 %v3187
    %v3497 = vunpack.c.l.b16 %v3188
    %v3498 = vunpack.c.h.b16 %v3188
    %v3499 = vunpack.c.l.b16 %v3189
    %v3500 = vunpack.c.l.b16 %v3190
    %v3501 = vunpack.c.h.b16 %v3190
    %v3502 = vunpack.c.l.b16 %v3191
    %v3503 = vunpack.c.l.b16 %v3192
    %v3504 = vunpack.c.h.b16 %v3192
    %v3505 = vunpack.c.l.b16 %v3193
    %v3506 = vunpack.c.l.b16 %v3194
    %v3507 = vunpack.c.h.b16 %v3194
    %v3508 = vunpack.c.l.b16 %v3195
    %v3509 = vunpack.c.l.b16 %v3196
    %v3510 = vunpack.c.h.b16 %v3196
    %v3511 = vunpack.c.l.b16 %v3197
    %v3512 = vunpack.c.l.b16 %v3198
    %v3513 = vunpack.c.h.b16 %v3198
    %v3514 = vunpack.c.l.b16 %v3199
    %v3515 = vunpack.c.l.b16 %v3200
    %v3516 = vunpack.c.h.b16 %v3200
    %v3517 = vunpack.c.l.b16 %v3201
    %v3518 = vunpack.c.l.b16 %v3202
    %v3519 = vunpack.c.h.b16 %v3202
    %v3520 = vunpack.c.l.b16 %v3203
    %v3521 = vunpack.c.l.b16 %v3204
    %v3522 = vunpack.c.h.b16 %v3204
    %v3523 = vunpack.c.l.b16 %v3205
    %v3524 = vunpack.c.l.b16 %v3206
    %v3525 = vunpack.c.h.b16 %v3206
    %v3526 = vunpack.c.l.b16 %v3207
    %v3527 = vunpack.c.l.b16 %v3208
    %v3528 = vunpack.c.h.b16 %v3208
    %v3529 = vunpack.c.l.b16 %v3209
    %v3530 = vunpack.c.l.b16 %v3210
    %v3531 = vunpack.c.h.b16 %v3210
    %v3532 = vunpack.c.l.b16 %v3211
    %v3533 = vunpack.c.l.b16 %v3212
    %v3534 = vunpack.c.h.b16 %v3212
    %v3535 = vunpack.c.l.b16 %v3213
    %v3536 = vunpack.c.l.b16 %v3214
    %v3537 = vunpack.c.h.b16 %v3214
    %v3538 = vunpack.c.l.b16 %v3215
    %v3539 = vunpack.c.l.b16 %v3216
    %v3540 = vunpack.c.h.b16 %v3216
    %v3541 = vunpack.c.l.b16 %v3217
    %v3542 = vunpack.c.l.b16 %v3218
    %v3543 = vunpack.c.h.b16 %v3218
    %v3544 = vunpack.c.l.b16 %v3219
    %v3545 = vunpack.c.l.b16 %v3220
    %v3546 = vunpack.c.h.b16 %v3220
    %v3547 = vunpack.c.l.b16 %v3221
    %v3548 = vunpack.c.l.b16 %v3222
    %v3549 = vunpack.c.h.b16 %v3222
    %v3550 = vunpack.c.l.b16 %v3223
    %v3551 = vunpack.c.l.b16 %v3224
    %v3552 = vunpack.c.h.b16 %v3224
    %v3553 = vunpack.c.l.b16 %v3225
    %v3554 = vpack.c.b16 %v3365, %v3362
    %v3555 = vpack.c.b16 %v3366, %v3363
    %v3556 = vpack.c.b16 %v3367, %v3364
    %v3557 = vpack.c.b16 %v3371, %v3368
    %v3558 = vpack.c.b16 %v3372, %v3369
    %v3559 = vpack.c.b16 %v3373, %v3370
    %v3560 = vpack.c.b16 %v3377, %v3374
    %v3561 = vpack.c.b16 %v3378, %v3375
    %v3562 = vpack.c.b16 %v3379, %v3376
    %v3563 = vpack.c.b16 %v3383, %v3380
    %v3564 = vpack.c.b16 %v3384, %v3381
    %v3565 = vpack.c.b16 %v3385, %v3382
    %v3566 = vpack.c.b16 %v3389, %v3386
    %v3567 = vpack.c.b16 %v3390, %v3387
    %v3568 = vpack.c.b16 %v3391, %v3388
    %v3569 = vpack.c.b16 %v3395, %v3392
    %v3570 = vpack.c.b16 %v3396, %v3393
    %v3571 = vpack.c.b16 %v3397, %v3394
    %v3572 = vpack.c.b16 %v3401, %v3398
    %v3573 = vpack.c.b16 %v3402, %v3399
    %v3574 = vpack.c.b16 %v3403, %v3400
    %v3575 = vpack.c.b16 %v3407, %v3404
    %v3576 = vpack.c.b16 %v3408, %v3405
    %v3577 = vpack.c.b16 %v3409, %v3406
    %v3578 = vpack.c.b16 %v3413, %v3410
    %v3579 = vpack.c.b16 %v3414, %v3411
    %v3580 = vpack.c.b16 %v3415, %v3412
    %v3581 = vpack.c.b16 %v3419, %v3416
    %v3582 = vpack.c.b16 %v3420, %v3417
    %v3583 = vpack.c.b16 %v3421, %v3418
    %v3584 = vpack.c.b16 %v3425, %v3422
    %v3585 = vpack.c.b16 %v3426, %v3423
    %v3586 = vpack.c.b16 %v3427, %v3424
    %v3587 = vpack.c.b16 %v3431, %v3428
    %v3588 = vpack.c.b16 %v3432, %v3429
    %v3589 = vpack.c.b16 %v3433, %v3430
    %v3590 = vpack.c.b16 %v3437, %v3434
    %v3591 = vpack.c.b16 %v3438, %v3435
    %v3592 = vpack.c.b16 %v3439, %v3436
    %v3593 = vpack.c.b16 %v3443, %v3440
    %v3594 = vpack.c.b16 %v3444, %v3441
    %v3595 = vpack.c.b16 %v3445, %v3442
    %v3596 = vpack.c.b16 %v3449, %v3446
    %v3597 = vpack.c.b16 %v3450, %v3447
    %v3598 = vpack.c.b16 %v3451, %v3448
    %v3599 = vpack.c.b16 %v3455, %v3452
    %v3600 = vpack.c.b16 %v3456, %v3453
    %v3601 = vpack.c.b16 %v3457, %v3454
    %v3602 = vpack.c.b16 %v3461, %v3458
    %v3603 = vpack.c.b16 %v3462, %v3459
    %v3604 = vpack.c.b16 %v3463, %v3460
    %v3605 = vpack.c.b16 %v3467, %v3464
    %v3606 = vpack.c.b16 %v3468, %v3465
    %v3607 = vpack.c.b16 %v3469, %v3466
    %v3608 = vpack.c.b16 %v3473, %v3470
    %v3609 = vpack.c.b16 %v3474, %v3471
    %v3610 = vpack.c.b16 %v3475, %v3472
    %v3611 = vpack.c.b16 %v3479, %v3476
    %v3612 = vpack.c.b16 %v3480, %v3477
    %v3613 = vpack.c.b16 %v3481, %v3478
    %v3614 = vpack.c.b16 %v3485, %v3482
    %v3615 = vpack.c.b16 %v3486, %v3483
    %v3616 = vpack.c.b16 %v3487, %v3484
    %v3617 = vpack.c.b16 %v3491, %v3488
    %v3618 = vpack.c.b16 %v3492, %v3489
    %v3619 = vpack.c.b16 %v3493, %v3490
    %v3620 = vpack.c.b16 %v3497, %v3494
    %v3621 = vpack.c.b16 %v3498, %v3495
    %v3622 = vpack.c.b16 %v3499, %v3496
    %v3623 = vpack.c.b16 %v3503, %v3500
    %v3624 = vpack.c.b16 %v3504, %v3501
    %v3625 = vpack.c.b16 %v3505, %v3502
    %v3626 = vpack.c.b16 %v3509, %v3506
    %v3627 = vpack.c.b16 %v3510, %v3507
    %v3628 = vpack.c.b16 %v3511, %v3508
    %v3629 = vpack.c.b16 %v3515, %v3512
    %v3630 = vpack.c.b16 %v3516, %v3513
    %v3631 = vpack.c.b16 %v3517, %v3514
    %v3632 = vpack.c.b16 %v3521, %v3518
    %v3633 = vpack.c.b16 %v3522, %v3519
    %v3634 = vpack.c.b16 %v3523, %v3520
    %v3635 = vpack.c.b16 %v3527, %v3524
    %v3636 = vpack.c.b16 %v3528, %v3525
    %v3637 = vpack.c.b16 %v3529, %v3526
    %v3638 = vpack.c.b16 %v3533, %v3530
    %v3639 = vpack.c.b16 %v3534, %v3531
    %v3640 = vpack.c.b16 %v3535, %v3532
    %v3641 = vpack.c.b16 %v3539, %v3536
    %v3642 = vpack.c.b16 %v3540, %v3537
    %v3643 = vpack.c.b16 %v3541, %v3538
    %v3644 = vpack.c.b16 %v3545, %v3542
    %v3645 = vpack.c.b16 %v3546, %v3543
    %v3646 = vpack.c.b16 %v3547, %v3544
    %v3647 = vpack.c.b16 %v3551, %v3548
    %v3648 = vpack.c.b16 %v3552, %v3549
    %v3649 = vpack.c.b16 %v3553, %v3550
    %3746 = vmatpush.bf16.msra.mxu0 %v3575
    %3747 = vmatpush.bf16.msra.mxu0 %v3572
    %3748 = vmatpush.bf16.msra.mxu0 %v3569
    %3749 = vmatpush.bf16.msra.mxu0 %v3566
    %3750 = vmatpush.bf16.msra.mxu0 %v3563
    %3751 = vmatpush.bf16.msra.mxu0 %v3560
    %3752 = vmatpush.bf16.msra.mxu0 %v3557
    %3753 = vmatpush.bf16.msra.mxu0 %v3554
    %3754 = vmatmul.bf16.gmra.mxu0 %v3094
    %v3755 = vpop.f32.mrf.mxu0
    %v3756 = vadd.f32 %v3228, %v3755
    %v3757 = vpop.f32.mrf.mxu0
    %v3758 = vadd.f32 %v3228, %v3757
    %3759 = vdwg.mxu0
    %3760 = vmatpush.bf16.msra.mxu0 %v3599
    %3761 = vmatpush.bf16.msra.mxu0 %v3596
    %3762 = vmatpush.bf16.msra.mxu0 %v3593
    %3763 = vmatpush.bf16.msra.mxu0 %v3590
    %3764 = vmatpush.bf16.msra.mxu0 %v3587
    %3765 = vmatpush.bf16.msra.mxu0 %v3584
    %3766 = vmatpush.bf16.msra.mxu0 %v3581
    %3767 = vmatpush.bf16.msra.mxu0 %v3578
    %3768 = vmatmul.bf16.gmra.mxu0 %v3095
    %v3769 = vpop.f32.mrf.mxu0
    %v3770 = vadd.f32 %v3756, %v3769
    %v3771 = vpop.f32.mrf.mxu0
    %v3772 = vadd.f32 %v3758, %v3771
    %3773 = vdwg.mxu0
    %3774 = vmatpush.bf16.msra.mxu0 %v3623
    %3775 = vmatpush.bf16.msra.mxu0 %v3620
    %3776 = vmatpush.bf16.msra.mxu0 %v3617
    %3777 = vmatpush.bf16.msra.mxu0 %v3614
    %3778 = vmatpush.bf16.msra.mxu0 %v3611
    %3779 = vmatpush.bf16.msra.mxu0 %v3608
    %3780 = vmatpush.bf16.msra.mxu0 %v3605
    %3781 = vmatpush.bf16.msra.mxu0 %v3602
    %3782 = vmatmul.bf16.gmra.mxu0 %v3096
    %v3783 = vpop.f32.mrf.mxu0
    %v3784 = vadd.f32 %v3770, %v3783
    %v3785 = vpop.f32.mrf.mxu0
    %v3786 = vadd.f32 %v3772, %v3785
    %3787 = vdwg.mxu0
    %3788 = vmatpush.bf16.msra.mxu0 %v3647
    %3789 = vmatpush.bf16.msra.mxu0 %v3644
    %3790 = vmatpush.bf16.msra.mxu0 %v3641
    %3791 = vmatpush.bf16.msra.mxu0 %v3638
    %3792 = vmatpush.bf16.msra.mxu0 %v3635
    %3793 = vmatpush.bf16.msra.mxu0 %v3632
    %3794 = vmatpush.bf16.msra.mxu0 %v3629
    %3795 = vmatpush.bf16.msra.mxu0 %v3626
    %3796 = vmatmul.bf16.gmra.mxu0 %v3097
    %v3797 = vpop.f32.mrf.mxu0
    %v3798 = vadd.f32 %v3784, %v3797
    %v3799 = vpop.f32.mrf.mxu0
    %v3800 = vadd.f32 %v3786, %v3799
    %3801 = vdwg.mxu0
    %3802 = vmatpush.bf16.msra.mxu0 %v3576
    %3803 = vmatpush.bf16.msra.mxu0 %v3573
    %3804 = vmatpush.bf16.msra.mxu0 %v3570
    %3805 = vmatpush.bf16.msra.mxu0 %v3567
    %3806 = vmatpush.bf16.msra.mxu0 %v3564
    %3807 = vmatpush.bf16.msra.mxu0 %v3561
    %3808 = vmatpush.bf16.msra.mxu0 %v3558
    %3809 = vmatpush.bf16.msra.mxu0 %v3555
    %3810 = vmatmul.bf16.gmra.mxu0 %v3094
    %v3811 = vpop.f32.mrf.mxu0
    %v3812 = vadd.f32 %v3229, %v3811
    %v3813 = vpop.f32.mrf.mxu0
    %v3814 = vadd.f32 %v3229, %v3813
    %3815 = vdwg.mxu0
    %3816 = vmatpush.bf16.msra.mxu0 %v3600
    %3817 = vmatpush.bf16.msra.mxu0 %v3597
    %3818 = vmatpush.bf16.msra.mxu0 %v3594
    %3819 = vmatpush.bf16.msra.mxu0 %v3591
    %3820 = vmatpush.bf16.msra.mxu0 %v3588
    %3821 = vmatpush.bf16.msra.mxu0 %v3585
    %3822 = vmatpush.bf16.msra.mxu0 %v3582
    %3823 = vmatpush.bf16.msra.mxu0 %v3579
    %3824 = vmatmul.bf16.gmra.mxu0 %v3095
    %v3825 = vpop.f32.mrf.mxu0
    %v3826 = vadd.f32 %v3812, %v3825
    %v3827 = vpop.f32.mrf.mxu0
    %v3828 = vadd.f32 %v3814, %v3827
    %3829 = vdwg.mxu0
    %3830 = vmatpush.bf16.msra.mxu0 %v3624
    %3831 = vmatpush.bf16.msra.mxu0 %v3621
    %3832 = vmatpush.bf16.msra.mxu0 %v3618
    %3833 = vmatpush.bf16.msra.mxu0 %v3615
    %3834 = vmatpush.bf16.msra.mxu0 %v3612
    %3835 = vmatpush.bf16.msra.mxu0 %v3609
    %3836 = vmatpush.bf16.msra.mxu0 %v3606
    %3837 = vmatpush.bf16.msra.mxu0 %v3603
    %3838 = vmatmul.bf16.gmra.mxu0 %v3096
    %v3839 = vpop.f32.mrf.mxu0
    %v3840 = vadd.f32 %v3826, %v3839
    %v3841 = vpop.f32.mrf.mxu0
    %v3842 = vadd.f32 %v3828, %v3841
    %3843 = vdwg.mxu0
    %3844 = vmatpush.bf16.msra.mxu0 %v3648
    %3845 = vmatpush.bf16.msra.mxu0 %v3645
    %3846 = vmatpush.bf16.msra.mxu0 %v3642
    %3847 = vmatpush.bf16.msra.mxu0 %v3639
    %3848 = vmatpush.bf16.msra.mxu0 %v3636
    %3849 = vmatpush.bf16.msra.mxu0 %v3633
    %3850 = vmatpush.bf16.msra.mxu0 %v3630
    %3851 = vmatpush.bf16.msra.mxu0 %v3627
    %3852 = vmatmul.bf16.gmra.mxu0 %v3097
    %v3853 = vpop.f32.mrf.mxu0
    %v3854 = vadd.f32 %v3840, %v3853
    %v3855 = vpop.f32.mrf.mxu0
    %v3856 = vadd.f32 %v3842, %v3855
    %3857 = vdwg.mxu0
    %3858 = vmatpush.bf16.msra.mxu0 %v3577
    %3859 = vmatpush.bf16.msra.mxu0 %v3574
    %3860 = vmatpush.bf16.msra.mxu0 %v3571
    %3861 = vmatpush.bf16.msra.mxu0 %v3568
    %3862 = vmatpush.bf16.msra.mxu0 %v3565
    %3863 = vmatpush.bf16.msra.mxu0 %v3562
    %3864 = vmatpush.bf16.msra.mxu0 %v3559
    %3865 = vmatpush.bf16.msra.mxu0 %v3556
    %3866 = vmatmul.bf16.gmra.mxu0 %v3094
    %v3867 = vpop.f32.mrf.mxu0
    %v3868 = vadd.f32 %v3230, %v3867
    %v3869 = vpop.f32.mrf.mxu0
    %v3870 = vadd.f32 %v3230, %v3869
    %3871 = vdwg.mxu0
    %3872 = vmatpush.bf16.msra.mxu0 %v3601
    %3873 = vmatpush.bf16.msra.mxu0 %v3598
    %3874 = vmatpush.bf16.msra.mxu0 %v3595
    %3875 = vmatpush.bf16.msra.mxu0 %v3592
    %3876 = vmatpush.bf16.msra.mxu0 %v3589
    %3877 = vmatpush.bf16.msra.mxu0 %v3586
    %3878 = vmatpush.bf16.msra.mxu0 %v3583
    %3879 = vmatpush.bf16.msra.mxu0 %v3580
    %3880 = vmatmul.bf16.gmra.mxu0 %v3095
    %v3881 = vpop.f32.mrf.mxu0
    %v3882 = vadd.f32 %v3868, %v3881
    %v3883 = vpop.f32.mrf.mxu0
    %v3884 = vadd.f32 %v3870, %v3883
    %3885 = vdwg.mxu0
    %3886 = vmatpush.bf16.msra.mxu0 %v3625
    %3887 = vmatpush.bf16.msra.mxu0 %v3622
    %3888 = vmatpush.bf16.msra.mxu0 %v3619
    %3889 = vmatpush.bf16.msra.mxu0 %v3616
    %3890 = vmatpush.bf16.msra.mxu0 %v3613
    %3891 = vmatpush.bf16.msra.mxu0 %v3610
    %3892 = vmatpush.bf16.msra.mxu0 %v3607
    %3893 = vmatpush.bf16.msra.mxu0 %v3604
    %3894 = vmatmul.bf16.gmra.mxu0 %v3096
    %v3895 = vpop.f32.mrf.mxu0
    %v3896 = vadd.f32 %v3882, %v3895
    %v3897 = vpop.f32.mrf.mxu0
    %v3898 = vadd.f32 %v3884, %v3897
    %3899 = vdwg.mxu0
    %3900 = vmatpush.bf16.msra.mxu0 %v3649
    %3901 = vmatpush.bf16.msra.mxu0 %v3646
    %3902 = vmatpush.bf16.msra.mxu0 %v3643
    %3903 = vmatpush.bf16.msra.mxu0 %v3640
    %3904 = vmatpush.bf16.msra.mxu0 %v3637
    %3905 = vmatpush.bf16.msra.mxu0 %v3634
    %3906 = vmatpush.bf16.msra.mxu0 %v3631
    %3907 = vmatpush.bf16.msra.mxu0 %v3628
    %3908 = vmatmul.bf16.gmra.mxu0 %v3097
    %v3909 = vpop.f32.mrf.mxu0
    %v3910 = vadd.f32 %v3896, %v3909
    %v3911 = vpop.f32.mrf.mxu0
    %v3912 = vadd.f32 %v3898, %v3911
    %3913 = vdwg.mxu0
    %v3914 = vmax.f32 %v3798, 0.0
    %v3915 = vmax.f32 %v3854, 0.0
    %v3916 = vmax.f32 %v3910, 0.0
    %v3917 = vmax.f32 %v3800, 0.0
    %v3918 = vmax.f32 %v3856, 0.0
    %v3919 = vmax.f32 %v3912, 0.0
    %v3920 = vpack.c.bf16 %v3917, %v3914
    %v3921 = vpack.c.bf16 %v3918, %v3915
    %v3922 = vpack.c.bf16 %v3919, %v3916
    %v3923 = vld [vmem:[#allocation7] sm:$0xff]
    %v3924 = vld [vmem:[#allocation7 + $0x8] sm:$0xff]
    %v3925 = vld [vmem:[#allocation7 + $0x10] sm:$0xff]
    %v3926 = vld [vmem:[#allocation7 + $0x18] sm:$0xff]
    %v3927 = vld [vmem:[#allocation7 + $0x20] sm:$0xff]
    %v3928 = vld [vmem:[#allocation7 + $0x28] sm:$0xff]
    %v3929 = vld [vmem:[#allocation7 + $0x30] sm:$0xff]
    %v3930 = vld [vmem:[#allocation7 + $0x38] sm:$0xff]
    %v3931 = vld [vmem:[#allocation7 + $0x40] sm:$0xff]
    %v3932 = vld [vmem:[#allocation7 + $0x48] sm:$0xff]
    %v3933 = vld [vmem:[#allocation7 + $0x50] sm:$0xff]
    %v3934 = vld [vmem:[#allocation7 + $0x58] sm:$0xff]
    %v3935 = vld [vmem:[#allocation7 + $0x60] sm:$0xff]
    %v3936 = vld [vmem:[#allocation7 + $0x68] sm:$0xff]
    %v3937 = vld [vmem:[#allocation7 + $0x70] sm:$0xff]
    %v3938 = vld [vmem:[#allocation7 + $0x78] sm:$0xff]
    %v3939 = vld [vmem:[#allocation7 + $0x80] sm:$0xff]
    %v3940 = vld [vmem:[#allocation7 + $0x88] sm:$0xff]
    %v3941 = vld [vmem:[#allocation7 + $0x90] sm:$0xff]
    %v3942 = vld [vmem:[#allocation7 + $0x98] sm:$0xff]
    %v3943 = vld [vmem:[#allocation7 + $0xa0] sm:$0xff]
    %v3944 = vld [vmem:[#allocation7 + $0xa8] sm:$0xff]
    %v3945 = vld [vmem:[#allocation7 + $0xb0] sm:$0xff]
    %v3946 = vld [vmem:[#allocation7 + $0xb8] sm:$0xff]
    %v3947 = vld [vmem:[#allocation7 + $0xc0] sm:$0xff]
    %v3948 = vld [vmem:[#allocation7 + $0xc8] sm:$0xff]
    %v3949 = vld [vmem:[#allocation7 + $0xd0] sm:$0xff]
    %v3950 = vld [vmem:[#allocation7 + $0xd8] sm:$0xff]
    %v3951 = vld [vmem:[#allocation7 + $0xe0] sm:$0xff]
    %v3952 = vld [vmem:[#allocation7 + $0xe8] sm:$0xff]
    %v3953 = vld [vmem:[#allocation7 + $0xf0] sm:$0xff]
    %v3954 = vld [vmem:[#allocation7 + $0xf8] sm:$0xff]
    %v3955 = vld [vmem:[#allocation7 + $0x100] sm:$0xff]
    %v3956 = vld [vmem:[#allocation7 + $0x108] sm:$0xff]
    %v3957 = vld [vmem:[#allocation7 + $0x110] sm:$0xff]
    %v3958 = vld [vmem:[#allocation7 + $0x118] sm:$0xff]
    %v3959 = vld [vmem:[#allocation7 + $0x120] sm:$0xff]
    %v3960 = vld [vmem:[#allocation7 + $0x128] sm:$0xff]
    %v3961 = vld [vmem:[#allocation7 + $0x130] sm:$0xff]
    %v3962 = vld [vmem:[#allocation7 + $0x138] sm:$0xff]
    %v3963 = vld [vmem:[#allocation7 + $0x140] sm:$0xff]
    %v3964 = vld [vmem:[#allocation7 + $0x148] sm:$0xff]
    %v3965 = vld [vmem:[#allocation7 + $0x150] sm:$0xff]
    %v3966 = vld [vmem:[#allocation7 + $0x158] sm:$0xff]
    %v3967 = vld [vmem:[#allocation7 + $0x160] sm:$0xff]
    %v3968 = vld [vmem:[#allocation7 + $0x168] sm:$0xff]
    %v3969 = vld [vmem:[#allocation7 + $0x170] sm:$0xff]
    %v3970 = vld [vmem:[#allocation7 + $0x178] sm:$0xff]
    %v3971 = vld [vmem:[#allocation7 + $0x180] sm:$0xff]
    %v3972 = vld [vmem:[#allocation7 + $0x188] sm:$0xff]
    %v3973 = vld [vmem:[#allocation7 + $0x190] sm:$0xff]
    %v3974 = vld [vmem:[#allocation7 + $0x198] sm:$0xff]
    %v3975 = vld [vmem:[#allocation7 + $0x1a0] sm:$0xff]
    %v3976 = vld [vmem:[#allocation7 + $0x1a8] sm:$0xff]
    %v3977 = vld [vmem:[#allocation7 + $0x1b0] sm:$0xff]
    %v3978 = vld [vmem:[#allocation7 + $0x1b8] sm:$0xff]
    %v3979 = vld [vmem:[#allocation7 + $0x1c0] sm:$0xff]
    %v3980 = vld [vmem:[#allocation7 + $0x1c8] sm:$0xff]
    %v3981 = vld [vmem:[#allocation7 + $0x1d0] sm:$0xff]
    %v3982 = vld [vmem:[#allocation7 + $0x1d8] sm:$0xff]
    %v3983 = vld [vmem:[#allocation7 + $0x1e0] sm:$0xff]
    %v3984 = vld [vmem:[#allocation7 + $0x1e8] sm:$0xff]
    %v4047 = vunpack.c.l.b16 %v3923
    %v4048 = vunpack.c.h.b16 %v3923
    %v4049 = vunpack.c.l.b16 %v3924
    %v4050 = vunpack.c.h.b16 %v3924
    %v4051 = vunpack.c.l.b16 %v3925
    %v4052 = vunpack.c.h.b16 %v3925
    %v4053 = vunpack.c.l.b16 %v3926
    %v4054 = vunpack.c.h.b16 %v3926
    %v4055 = vunpack.c.l.b16 %v3927
    %v4056 = vunpack.c.h.b16 %v3927
    %v4057 = vunpack.c.l.b16 %v3928
    %v4058 = vunpack.c.h.b16 %v3928
    %v4059 = vunpack.c.l.b16 %v3929
    %v4060 = vunpack.c.h.b16 %v3929
    %v4061 = vunpack.c.l.b16 %v3930
    %v4062 = vunpack.c.h.b16 %v3930
    %v4063 = vunpack.c.l.b16 %v3931
    %v4064 = vunpack.c.h.b16 %v3931
    %v4065 = vunpack.c.l.b16 %v3932
    %v4066 = vunpack.c.h.b16 %v3932
    %v4067 = vunpack.c.l.b16 %v3933
    %v4068 = vunpack.c.h.b16 %v3933
    %v4069 = vunpack.c.l.b16 %v3934
    %v4070 = vunpack.c.h.b16 %v3934
    %v4071 = vunpack.c.l.b16 %v3935
    %v4072 = vunpack.c.h.b16 %v3935
    %v4073 = vunpack.c.l.b16 %v3936
    %v4074 = vunpack.c.h.b16 %v3936
    %v4075 = vunpack.c.l.b16 %v3937
    %v4076 = vunpack.c.h.b16 %v3937
    %v4077 = vunpack.c.l.b16 %v3938
    %v4078 = vunpack.c.h.b16 %v3938
    %v4079 = vunpack.c.l.b16 %v3939
    %v4080 = vunpack.c.h.b16 %v3939
    %v4081 = vunpack.c.l.b16 %v3940
    %v4082 = vunpack.c.h.b16 %v3940
    %v4083 = vunpack.c.l.b16 %v3941
    %v4084 = vunpack.c.h.b16 %v3941
    %v4085 = vunpack.c.l.b16 %v3942
    %v4086 = vunpack.c.h.b16 %v3942
    %v4087 = vunpack.c.l.b16 %v3943
    %v4088 = vunpack.c.h.b16 %v3943
    %v4089 = vunpack.c.l.b16 %v3944
    %v4090 = vunpack.c.h.b16 %v3944
    %v4091 = vunpack.c.l.b16 %v3945
    %v4092 = vunpack.c.h.b16 %v3945
    %v4093 = vunpack.c.l.b16 %v3946
    %v4094 = vunpack.c.h.b16 %v3946
    %v4095 = vunpack.c.l.b16 %v3947
    %v4096 = vunpack.c.h.b16 %v3947
    %v4097 = vunpack.c.l.b16 %v3948
    %v4098 = vunpack.c.h.b16 %v3948
    %v4099 = vunpack.c.l.b16 %v3949
    %v4100 = vunpack.c.h.b16 %v3949
    %v4101 = vunpack.c.l.b16 %v3950
    %v4102 = vunpack.c.h.b16 %v3950
    %v4103 = vunpack.c.l.b16 %v3951
    %v4104 = vunpack.c.h.b16 %v3951
    %v4105 = vunpack.c.l.b16 %v3952
    %v4106 = vunpack.c.h.b16 %v3952
    %v4107 = vunpack.c.l.b16 %v3953
    %v4108 = vunpack.c.h.b16 %v3953
    %v4109 = vunpack.c.l.b16 %v3954
    %v4110 = vunpack.c.h.b16 %v3954
    %v4111 = vunpack.c.l.b16 %v3955
    %v4112 = vunpack.c.h.b16 %v3955
    %v4113 = vunpack.c.l.b16 %v3956
    %v4114 = vunpack.c.h.b16 %v3956
    %v4115 = vunpack.c.l.b16 %v3957
    %v4116 = vunpack.c.h.b16 %v3957
    %v4117 = vunpack.c.l.b16 %v3958
    %v4118 = vunpack.c.h.b16 %v3958
    %v4119 = vunpack.c.l.b16 %v3959
    %v4120 = vunpack.c.h.b16 %v3959
    %v4121 = vunpack.c.l.b16 %v3960
    %v4122 = vunpack.c.h.b16 %v3960
    %v4123 = vunpack.c.l.b16 %v3961
    %v4124 = vunpack.c.h.b16 %v3961
    %v4125 = vunpack.c.l.b16 %v3962
    %v4126 = vunpack.c.h.b16 %v3962
    %v4127 = vunpack.c.l.b16 %v3963
    %v4128 = vunpack.c.h.b16 %v3963
    %v4129 = vunpack.c.l.b16 %v3964
    %v4130 = vunpack.c.h.b16 %v3964
    %v4131 = vunpack.c.l.b16 %v3965
    %v4132 = vunpack.c.h.b16 %v3965
    %v4133 = vunpack.c.l.b16 %v3966
    %v4134 = vunpack.c.h.b16 %v3966
    %v4135 = vunpack.c.l.b16 %v3967
    %v4136 = vunpack.c.h.b16 %v3967
    %v4137 = vunpack.c.l.b16 %v3968
    %v4138 = vunpack.c.h.b16 %v3968
    %v4139 = vunpack.c.l.b16 %v3969
    %v4140 = vunpack.c.h.b16 %v3969
    %v4141 = vunpack.c.l.b16 %v3970
    %v4142 = vunpack.c.h.b16 %v3970
    %v4143 = vunpack.c.l.b16 %v3971
    %v4144 = vunpack.c.h.b16 %v3971
    %v4145 = vunpack.c.l.b16 %v3972
    %v4146 = vunpack.c.h.b16 %v3972
    %v4147 = vunpack.c.l.b16 %v3973
    %v4148 = vunpack.c.h.b16 %v3973
    %v4149 = vunpack.c.l.b16 %v3974
    %v4150 = vunpack.c.h.b16 %v3974
    %v4151 = vunpack.c.l.b16 %v3975
    %v4152 = vunpack.c.h.b16 %v3975
    %v4153 = vunpack.c.l.b16 %v3976
    %v4154 = vunpack.c.h.b16 %v3976
    %v4155 = vunpack.c.l.b16 %v3977
    %v4156 = vunpack.c.h.b16 %v3977
    %v4157 = vunpack.c.l.b16 %v3978
    %v4158 = vunpack.c.h.b16 %v3978
    %v4159 = vunpack.c.l.b16 %v3979
    %v4160 = vunpack.c.h.b16 %v3979
    %v4161 = vunpack.c.l.b16 %v3980
    %v4162 = vunpack.c.h.b16 %v3980
    %v4163 = vunpack.c.l.b16 %v3981
    %v4164 = vunpack.c.h.b16 %v3981
    %v4165 = vunpack.c.l.b16 %v3982
    %v4166 = vunpack.c.h.b16 %v3982
    %v4167 = vunpack.c.l.b16 %v3983
    %v4168 = vunpack.c.h.b16 %v3983
    %v4169 = vunpack.c.l.b16 %v3984
    %v4170 = vunpack.c.h.b16 %v3984
    %v4171 = vpack.c.b16 %v4051, %v4047
    %v4172 = vpack.c.b16 %v4052, %v4048
    %v4173 = vpack.c.b16 %v4053, %v4049
    %v4174 = vpack.c.b16 %v4054, %v4050
    %v4175 = vpack.c.b16 %v4059, %v4055
    %v4176 = vpack.c.b16 %v4060, %v4056
    %v4177 = vpack.c.b16 %v4061, %v4057
    %v4178 = vpack.c.b16 %v4062, %v4058
    %v4179 = vpack.c.b16 %v4067, %v4063
    %v4180 = vpack.c.b16 %v4068, %v4064
    %v4181 = vpack.c.b16 %v4069, %v4065
    %v4182 = vpack.c.b16 %v4070, %v4066
    %v4183 = vpack.c.b16 %v4075, %v4071
    %v4184 = vpack.c.b16 %v4076, %v4072
    %v4185 = vpack.c.b16 %v4077, %v4073
    %v4186 = vpack.c.b16 %v4078, %v4074
    %v4187 = vpack.c.b16 %v4083, %v4079
    %v4188 = vpack.c.b16 %v4084, %v4080
    %v4189 = vpack.c.b16 %v4085, %v4081
    %v4190 = vpack.c.b16 %v4086, %v4082
    %v4191 = vpack.c.b16 %v4091, %v4087
    %v4192 = vpack.c.b16 %v4092, %v4088
    %v4193 = vpack.c.b16 %v4093, %v4089
    %v4194 = vpack.c.b16 %v4094, %v4090
    %v4195 = vpack.c.b16 %v4099, %v4095
    %v4196 = vpack.c.b16 %v4100, %v4096
    %v4197 = vpack.c.b16 %v4101, %v4097
    %v4198 = vpack.c.b16 %v4102, %v4098
    %v4199 = vpack.c.b16 %v4107, %v4103
    %v4200 = vpack.c.b16 %v4108, %v4104
    %v4201 = vpack.c.b16 %v4109, %v4105
    %v4202 = vpack.c.b16 %v4110, %v4106
    %v4203 = vpack.c.b16 %v4115, %v4111
    %v4204 = vpack.c.b16 %v4116, %v4112
    %v4205 = vpack.c.b16 %v4117, %v4113
    %v4206 = vpack.c.b16 %v4118, %v4114
    %v4207 = vpack.c.b16 %v4123, %v4119
    %v4208 = vpack.c.b16 %v4124, %v4120
    %v4209 = vpack.c.b16 %v4125, %v4121
    %v4210 = vpack.c.b16 %v4126, %v4122
    %v4211 = vpack.c.b16 %v4131, %v4127
    %v4212 = vpack.c.b16 %v4132, %v4128
    %v4213 = vpack.c.b16 %v4133, %v4129
    %v4214 = vpack.c.b16 %v4134, %v4130
    %v4215 = vpack.c.b16 %v4139, %v4135
    %v4216 = vpack.c.b16 %v4140, %v4136
    %v4217 = vpack.c.b16 %v4141, %v4137
    %v4218 = vpack.c.b16 %v4142, %v4138
    %v4219 = vpack.c.b16 %v4147, %v4143
    %v4220 = vpack.c.b16 %v4148, %v4144
    %v4221 = vpack.c.b16 %v4149, %v4145
    %v4222 = vpack.c.b16 %v4150, %v4146
    %v4223 = vpack.c.b16 %v4155, %v4151
    %v4224 = vpack.c.b16 %v4156, %v4152
    %v4225 = vpack.c.b16 %v4157, %v4153
    %v4226 = vpack.c.b16 %v4158, %v4154
    %v4227 = vpack.c.b16 %v4163, %v4159
    %v4228 = vpack.c.b16 %v4164, %v4160
    %v4229 = vpack.c.b16 %v4165, %v4161
    %v4230 = vpack.c.b16 %v4166, %v4162
    %v4231 = vpack.c.b16 %v4167, %v4167
    %v4232 = vpack.c.b16 %v4168, %v4168
    %v4233 = vpack.c.b16 %v4169, %v4169
    %v4234 = vpack.c.b16 %v4170, %v4170
    %v4296 = vsel %vm933, %v4231, 0
    %v4299 = vsel %vm933, %v4232, 0
    %v4302 = vsel %vm933, %v4233, 0
    %v4305 = vsel %vm933, %v4234, 0
    %4307 = vmatpush.bf16.msra.mxu0 %v4199
    %4308 = vmatpush.bf16.msra.mxu0 %v4195
    %4309 = vmatpush.bf16.msra.mxu0 %v4191
    %4310 = vmatpush.bf16.msra.mxu0 %v4187
    %4311 = vmatpush.bf16.msra.mxu0 %v4183
    %4312 = vmatpush.bf16.msra.mxu0 %v4179
    %4313 = vmatpush.bf16.msra.mxu0 %v4175
    %4314 = vmatpush.bf16.msra.mxu0 %v4171
    %4315 = vmatmul.bf16.gmra.mxu0 %v545
    %v4316 = vpop.f32.mrf.mxu0
    %v4317 = vadd.f32 0.0, %v4316
    %v4318 = vpop.f32.mrf.mxu0
    %v4319 = vadd.f32 0.0, %v4318
    %4320 = vdwg.mxu0
    %4321 = vmatpush.bf16.msra.mxu0 %v4296
    %4322 = vmatpush.bf16.msra.mxu0 %v4227
    %4323 = vmatpush.bf16.msra.mxu0 %v4223
    %4324 = vmatpush.bf16.msra.mxu0 %v4219
    %4325 = vmatpush.bf16.msra.mxu0 %v4215
    %4326 = vmatpush.bf16.msra.mxu0 %v4211
    %4327 = vmatpush.bf16.msra.mxu0 %v4207
    %4328 = vmatpush.bf16.msra.mxu0 %v4203
    %4329 = vmatmul.bf16.gmra.mxu0 %v931
    %v4330 = vpop.f32.mrf.mxu0
    %v4331 = vadd.f32 %v4317, %v4330
    %v4332 = vpop.f32.mrf.mxu0
    %v4333 = vadd.f32 %v4319, %v4332
    %4334 = vdwg.mxu0
    %4335 = vmatpush.bf16.msra.mxu0 %v4200
    %4336 = vmatpush.bf16.msra.mxu0 %v4196
    %4337 = vmatpush.bf16.msra.mxu0 %v4192
    %4338 = vmatpush.bf16.msra.mxu0 %v4188
    %4339 = vmatpush.bf16.msra.mxu0 %v4184
    %4340 = vmatpush.bf16.msra.mxu0 %v4180
    %4341 = vmatpush.bf16.msra.mxu0 %v4176
    %4342 = vmatpush.bf16.msra.mxu0 %v4172
    %4343 = vmatmul.bf16.gmra.mxu0 %v545
    %v4344 = vpop.f32.mrf.mxu0
    %v4345 = vadd.f32 0.0, %v4344
    %v4346 = vpop.f32.mrf.mxu0
    %v4347 = vadd.f32 0.0, %v4346
    %4348 = vdwg.mxu0
    %4349 = vmatpush.bf16.msra.mxu0 %v4299
    %4350 = vmatpush.bf16.msra.mxu0 %v4228
    %4351 = vmatpush.bf16.msra.mxu0 %v4224
    %4352 = vmatpush.bf16.msra.mxu0 %v4220
    %4353 = vmatpush.bf16.msra.mxu0 %v4216
    %4354 = vmatpush.bf16.msra.mxu0 %v4212
    %4355 = vmatpush.bf16.msra.mxu0 %v4208
    %4356 = vmatpush.bf16.msra.mxu0 %v4204
    %4357 = vmatmul.bf16.gmra.mxu0 %v931
    %v4358 = vpop.f32.mrf.mxu0
    %v4359 = vadd.f32 %v4345, %v4358
    %v4360 = vpop.f32.mrf.mxu0
    %v4361 = vadd.f32 %v4347, %v4360
    %4362 = vdwg.mxu0
    %4363 = vmatpush.bf16.msra.mxu0 %v4201
    %4364 = vmatpush.bf16.msra.mxu0 %v4197
    %4365 = vmatpush.bf16.msra.mxu0 %v4193
    %4366 = vmatpush.bf16.msra.mxu0 %v4189
    %4367 = vmatpush.bf16.msra.mxu0 %v4185
    %4368 = vmatpush.bf16.msra.mxu0 %v4181
    %4369 = vmatpush.bf16.msra.mxu0 %v4177
    %4370 = vmatpush.bf16.msra.mxu0 %v4173
    %4371 = vmatmul.bf16.gmra.mxu0 %v545
    %v4372 = vpop.f32.mrf.mxu0
    %v4373 = vadd.f32 0.0, %v4372
    %v4374 = vpop.f32.mrf.mxu0
    %v4375 = vadd.f32 0.0, %v4374
    %4376 = vdwg.mxu0
    %4377 = vmatpush.bf16.msra.mxu0 %v4302
    %4378 = vmatpush.bf16.msra.mxu0 %v4229
    %4379 = vmatpush.bf16.msra.mxu0 %v4225
    %4380 = vmatpush.bf16.msra.mxu0 %v4221
    %4381 = vmatpush.bf16.msra.mxu0 %v4217
    %4382 = vmatpush.bf16.msra.mxu0 %v4213
    %4383 = vmatpush.bf16.msra.mxu0 %v4209
    %4384 = vmatpush.bf16.msra.mxu0 %v4205
    %4385 = vmatmul.bf16.gmra.mxu0 %v931
    %v4386 = vpop.f32.mrf.mxu0
    %v4387 = vadd.f32 %v4373, %v4386
    %v4388 = vpop.f32.mrf.mxu0
    %v4389 = vadd.f32 %v4375, %v4388
    %4390 = vdwg.mxu0
    %4391 = vmatpush.bf16.msra.mxu0 %v4202
    %4392 = vmatpush.bf16.msra.mxu0 %v4198
    %4393 = vmatpush.bf16.msra.mxu0 %v4194
    %4394 = vmatpush.bf16.msra.mxu0 %v4190
    %4395 = vmatpush.bf16.msra.mxu0 %v4186
    %4396 = vmatpush.bf16.msra.mxu0 %v4182
    %4397 = vmatpush.bf16.msra.mxu0 %v4178
    %4398 = vmatpush.bf16.msra.mxu0 %v4174
    %4399 = vmatmul.bf16.gmra.mxu0 %v545
    %v4400 = vpop.f32.mrf.mxu0
    %v4401 = vadd.f32 0.0, %v4400
    %v4402 = vpop.f32.mrf.mxu0
    %v4403 = vadd.f32 0.0, %v4402
    %4404 = vdwg.mxu0
    %4405 = vmatpush.bf16.msra.mxu0 %v4305
    %4406 = vmatpush.bf16.msra.mxu0 %v4230
    %4407 = vmatpush.bf16.msra.mxu0 %v4226
    %4408 = vmatpush.bf16.msra.mxu0 %v4222
    %4409 = vmatpush.bf16.msra.mxu0 %v4218
    %4410 = vmatpush.bf16.msra.mxu0 %v4214
    %4411 = vmatpush.bf16.msra.mxu0 %v4210
    %4412 = vmatpush.bf16.msra.mxu0 %v4206
    %4413 = vmatmul.bf16.gmra.mxu0 %v931
    %v4414 = vpop.f32.mrf.mxu0
    %v4415 = vadd.f32 %v4401, %v4414
    %v4416 = vpop.f32.mrf.mxu0
    %v4417 = vadd.f32 %v4403, %v4416
    %4418 = vdwg.mxu0
    %v4419 = vld [vmem:[#allocation6] sm:$0xff]
    %v4420 = vld [vmem:[#allocation6 + $0x8] sm:$0xff]
    %v4421 = vld [vmem:[#allocation6 + $0x10] sm:$0xff]
    %v4422 = vld [vmem:[#allocation6 + $0x18] sm:$0xff]
    %v4423 = vld [vmem:[#allocation6 + $0x20] sm:$0xff]
    %v4424 = vld [vmem:[#allocation6 + $0x28] sm:$0xff]
    %v4425 = vld [vmem:[#allocation6 + $0x30] sm:$0xff]
    %v4426 = vld [vmem:[#allocation6 + $0x38] sm:$0xff]
    %v4427 = vld [vmem:[#allocation6 + $0x40] sm:$0xff]
    %v4428 = vld [vmem:[#allocation6 + $0x48] sm:$0xff]
    %v4429 = vld [vmem:[#allocation6 + $0x50] sm:$0xff]
    %v4430 = vld [vmem:[#allocation6 + $0x58] sm:$0xff]
    %v4431 = vld [vmem:[#allocation6 + $0x60] sm:$0xff]
    %v4432 = vld [vmem:[#allocation6 + $0x68] sm:$0xff]
    %v4433 = vld [vmem:[#allocation6 + $0x70] sm:$0xff]
    %v4434 = vld [vmem:[#allocation6 + $0x78] sm:$0xff]
    %v4435 = vld [vmem:[#allocation6 + $0x80] sm:$0xff]
    %v4436 = vld [vmem:[#allocation6 + $0x88] sm:$0xff]
    %v4437 = vld [vmem:[#allocation6 + $0x90] sm:$0xff]
    %v4438 = vld [vmem:[#allocation6 + $0x98] sm:$0xff]
    %v4439 = vld [vmem:[#allocation6 + $0xa0] sm:$0xff]
    %v4440 = vld [vmem:[#allocation6 + $0xa8] sm:$0xff]
    %v4441 = vld [vmem:[#allocation6 + $0xb0] sm:$0xff]
    %v4442 = vld [vmem:[#allocation6 + $0xb8] sm:$0xff]
    %v4443 = vld [vmem:[#allocation6 + $0xc0] sm:$0xff]
    %v4444 = vld [vmem:[#allocation6 + $0xc8] sm:$0xff]
    %v4445 = vld [vmem:[#allocation6 + $0xd0] sm:$0xff]
    %v4446 = vld [vmem:[#allocation6 + $0xd8] sm:$0xff]
    %v4447 = vld [vmem:[#allocation6 + $0xe0] sm:$0xff]
    %v4448 = vld [vmem:[#allocation6 + $0xe8] sm:$0xff]
    %v4449 = vld [vmem:[#allocation6 + $0xf0] sm:$0xff]
    %v4450 = vld [vmem:[#allocation6 + $0xf8] sm:$0xff]
    %v4451 = vld [vmem:[#allocation6 + $0x100] sm:$0xff]
    %v4452 = vld [vmem:[#allocation6 + $0x108] sm:$0xff]
    %v4453 = vld [vmem:[#allocation6 + $0x110] sm:$0xff]
    %v4454 = vld [vmem:[#allocation6 + $0x118] sm:$0xff]
    %v4455 = vld [vmem:[#allocation6 + $0x120] sm:$0xff]
    %v4456 = vld [vmem:[#allocation6 + $0x128] sm:$0xff]
    %v4457 = vld [vmem:[#allocation6 + $0x130] sm:$0xff]
    %v4458 = vld [vmem:[#allocation6 + $0x138] sm:$0xff]
    %v4459 = vld [vmem:[#allocation6 + $0x140] sm:$0xff]
    %v4460 = vld [vmem:[#allocation6 + $0x148] sm:$0xff]
    %v4461 = vld [vmem:[#allocation6 + $0x150] sm:$0xff]
    %v4462 = vld [vmem:[#allocation6 + $0x158] sm:$0xff]
    %v4463 = vld [vmem:[#allocation6 + $0x160] sm:$0xff]
    %v4464 = vld [vmem:[#allocation6 + $0x168] sm:$0xff]
    %v4465 = vld [vmem:[#allocation6 + $0x170] sm:$0xff]
    %v4466 = vld [vmem:[#allocation6 + $0x178] sm:$0xff]
    %v4467 = vld [vmem:[#allocation6 + $0x180] sm:$0xff]
    %v4468 = vld [vmem:[#allocation6 + $0x188] sm:$0xff]
    %v4469 = vld [vmem:[#allocation6 + $0x190] sm:$0xff]
    %v4470 = vld [vmem:[#allocation6 + $0x198] sm:$0xff]
    %v4471 = vld [vmem:[#allocation6 + $0x1a0] sm:$0xff]
    %v4472 = vld [vmem:[#allocation6 + $0x1a8] sm:$0xff]
    %v4473 = vld [vmem:[#allocation6 + $0x1b0] sm:$0xff]
    %v4474 = vld [vmem:[#allocation6 + $0x1b8] sm:$0xff]
    %v4475 = vld [vmem:[#allocation6 + $0x1c0] sm:$0xff]
    %v4476 = vld [vmem:[#allocation6 + $0x1c8] sm:$0xff]
    %v4477 = vld [vmem:[#allocation6 + $0x1d0] sm:$0xff]
    %v4478 = vld [vmem:[#allocation6 + $0x1d8] sm:$0xff]
    %v4479 = vld [vmem:[#allocation6 + $0x1e0] sm:$0xff]
    %v4480 = vld [vmem:[#allocation6 + $0x1e8] sm:$0xff]
    %v4481 = vld [vmem:[#allocation6 + $0x1f0] sm:$0xff]
    %v4482 = vld [vmem:[#allocation6 + $0x1f8] sm:$0xff]
    %v4483 = vld [vmem:[#allocation6 + $0x200] sm:$0xff]
    %v4484 = vld [vmem:[#allocation6 + $0x208] sm:$0xff]
    %v4485 = vld [vmem:[#allocation6 + $0x210] sm:$0x77]
    %v4486 = vld [vmem:[#allocation6 + $0x218] sm:$0x77]
    %v4555 = vunpack.c.l.b16 %v4419
    %v4556 = vunpack.c.h.b16 %v4419
    %v4557 = vunpack.c.l.b16 %v4420
    %v4558 = vunpack.c.h.b16 %v4420
    %v4559 = vunpack.c.l.b16 %v4421
    %v4560 = vunpack.c.h.b16 %v4421
    %v4561 = vunpack.c.l.b16 %v4422
    %v4562 = vunpack.c.h.b16 %v4422
    %v4563 = vunpack.c.l.b16 %v4423
    %v4564 = vunpack.c.h.b16 %v4423
    %v4565 = vunpack.c.l.b16 %v4424
    %v4566 = vunpack.c.h.b16 %v4424
    %v4567 = vunpack.c.l.b16 %v4425
    %v4568 = vunpack.c.h.b16 %v4425
    %v4569 = vunpack.c.l.b16 %v4426
    %v4570 = vunpack.c.h.b16 %v4426
    %v4571 = vunpack.c.l.b16 %v4427
    %v4572 = vunpack.c.h.b16 %v4427
    %v4573 = vunpack.c.l.b16 %v4428
    %v4574 = vunpack.c.h.b16 %v4428
    %v4575 = vunpack.c.l.b16 %v4429
    %v4576 = vunpack.c.h.b16 %v4429
    %v4577 = vunpack.c.l.b16 %v4430
    %v4578 = vunpack.c.h.b16 %v4430
    %v4579 = vunpack.c.l.b16 %v4431
    %v4580 = vunpack.c.h.b16 %v4431
    %v4581 = vunpack.c.l.b16 %v4432
    %v4582 = vunpack.c.h.b16 %v4432
    %v4583 = vunpack.c.l.b16 %v4433
    %v4584 = vunpack.c.h.b16 %v4433
    %v4585 = vunpack.c.l.b16 %v4434
    %v4586 = vunpack.c.h.b16 %v4434
    %v4587 = vunpack.c.l.b16 %v4435
    %v4588 = vunpack.c.h.b16 %v4435
    %v4589 = vunpack.c.l.b16 %v4436
    %v4590 = vunpack.c.h.b16 %v4436
    %v4591 = vunpack.c.l.b16 %v4437
    %v4592 = vunpack.c.h.b16 %v4437
    %v4593 = vunpack.c.l.b16 %v4438
    %v4594 = vunpack.c.h.b16 %v4438
    %v4595 = vunpack.c.l.b16 %v4439
    %v4596 = vunpack.c.h.b16 %v4439
    %v4597 = vunpack.c.l.b16 %v4440
    %v4598 = vunpack.c.h.b16 %v4440
    %v4599 = vunpack.c.l.b16 %v4441
    %v4600 = vunpack.c.h.b16 %v4441
    %v4601 = vunpack.c.l.b16 %v4442
    %v4602 = vunpack.c.h.b16 %v4442
    %v4603 = vunpack.c.l.b16 %v4443
    %v4604 = vunpack.c.h.b16 %v4443
    %v4605 = vunpack.c.l.b16 %v4444
    %v4606 = vunpack.c.h.b16 %v4444
    %v4607 = vunpack.c.l.b16 %v4445
    %v4608 = vunpack.c.h.b16 %v4445
    %v4609 = vunpack.c.l.b16 %v4446
    %v4610 = vunpack.c.h.b16 %v4446
    %v4611 = vunpack.c.l.b16 %v4447
    %v4612 = vunpack.c.h.b16 %v4447
    %v4613 = vunpack.c.l.b16 %v4448
    %v4614 = vunpack.c.h.b16 %v4448
    %v4615 = vunpack.c.l.b16 %v4449
    %v4616 = vunpack.c.h.b16 %v4449
    %v4617 = vunpack.c.l.b16 %v4450
    %v4618 = vunpack.c.h.b16 %v4450
    %v4619 = vunpack.c.l.b16 %v4451
    %v4620 = vunpack.c.h.b16 %v4451
    %v4621 = vunpack.c.l.b16 %v4452
    %v4622 = vunpack.c.h.b16 %v4452
    %v4623 = vunpack.c.l.b16 %v4453
    %v4624 = vunpack.c.h.b16 %v4453
    %v4625 = vunpack.c.l.b16 %v4454
    %v4626 = vunpack.c.h.b16 %v4454
    %v4627 = vunpack.c.l.b16 %v4455
    %v4628 = vunpack.c.h.b16 %v4455
    %v4629 = vunpack.c.l.b16 %v4456
    %v4630 = vunpack.c.h.b16 %v4456
    %v4631 = vunpack.c.l.b16 %v4457
    %v4632 = vunpack.c.h.b16 %v4457
    %v4633 = vunpack.c.l.b16 %v4458
    %v4634 = vunpack.c.h.b16 %v4458
    %v4635 = vunpack.c.l.b16 %v4459
    %v4636 = vunpack.c.h.b16 %v4459
    %v4637 = vunpack.c.l.b16 %v4460
    %v4638 = vunpack.c.h.b16 %v4460
    %v4639 = vunpack.c.l.b16 %v4461
    %v4640 = vunpack.c.h.b16 %v4461
    %v4641 = vunpack.c.l.b16 %v4462
    %v4642 = vunpack.c.h.b16 %v4462
    %v4643 = vunpack.c.l.b16 %v4463
    %v4644 = vunpack.c.h.b16 %v4463
    %v4645 = vunpack.c.l.b16 %v4464
    %v4646 = vunpack.c.h.b16 %v4464
    %v4647 = vunpack.c.l.b16 %v4465
    %v4648 = vunpack.c.h.b16 %v4465
    %v4649 = vunpack.c.l.b16 %v4466
    %v4650 = vunpack.c.h.b16 %v4466
    %v4651 = vunpack.c.l.b16 %v4467
    %v4652 = vunpack.c.h.b16 %v4467
    %v4653 = vunpack.c.l.b16 %v4468
    %v4654 = vunpack.c.h.b16 %v4468
    %v4655 = vunpack.c.l.b16 %v4469
    %v4656 = vunpack.c.h.b16 %v4469
    %v4657 = vunpack.c.l.b16 %v4470
    %v4658 = vunpack.c.h.b16 %v4470
    %v4659 = vunpack.c.l.b16 %v4471
    %v4660 = vunpack.c.h.b16 %v4471
    %v4661 = vunpack.c.l.b16 %v4472
    %v4662 = vunpack.c.h.b16 %v4472
    %v4663 = vunpack.c.l.b16 %v4473
    %v4664 = vunpack.c.h.b16 %v4473
    %v4665 = vunpack.c.l.b16 %v4474
    %v4666 = vunpack.c.h.b16 %v4474
    %v4667 = vunpack.c.l.b16 %v4475
    %v4668 = vunpack.c.h.b16 %v4475
    %v4669 = vunpack.c.l.b16 %v4476
    %v4670 = vunpack.c.h.b16 %v4476
    %v4671 = vunpack.c.l.b16 %v4477
    %v4672 = vunpack.c.h.b16 %v4477
    %v4673 = vunpack.c.l.b16 %v4478
    %v4674 = vunpack.c.h.b16 %v4478
    %v4675 = vunpack.c.l.b16 %v4479
    %v4676 = vunpack.c.h.b16 %v4479
    %v4677 = vunpack.c.l.b16 %v4480
    %v4678 = vunpack.c.h.b16 %v4480
    %v4679 = vunpack.c.l.b16 %v4481
    %v4680 = vunpack.c.h.b16 %v4481
    %v4681 = vunpack.c.l.b16 %v4482
    %v4682 = vunpack.c.h.b16 %v4482
    %v4683 = vunpack.c.l.b16 %v4483
    %v4684 = vunpack.c.h.b16 %v4483
    %v4685 = vunpack.c.l.b16 %v4484
    %v4686 = vunpack.c.h.b16 %v4484
    %v4687 = vunpack.c.l.b16 %v4485
    %v4688 = vunpack.c.h.b16 %v4485
    %v4689 = vunpack.c.l.b16 %v4486
    %v4690 = vunpack.c.h.b16 %v4486
    %v4691 = vpack.c.b16 %v4559, %v4555
    %v4692 = vpack.c.b16 %v4560, %v4556
    %v4693 = vpack.c.b16 %v4561, %v4557
    %v4694 = vpack.c.b16 %v4562, %v4558
    %v4695 = vpack.c.b16 %v4567, %v4563
    %v4696 = vpack.c.b16 %v4568, %v4564
    %v4697 = vpack.c.b16 %v4569, %v4565
    %v4698 = vpack.c.b16 %v4570, %v4566
    %v4699 = vpack.c.b16 %v4575, %v4571
    %v4700 = vpack.c.b16 %v4576, %v4572
    %v4701 = vpack.c.b16 %v4577, %v4573
    %v4702 = vpack.c.b16 %v4578, %v4574
    %v4703 = vpack.c.b16 %v4583, %v4579
    %v4704 = vpack.c.b16 %v4584, %v4580
    %v4705 = vpack.c.b16 %v4585, %v4581
    %v4706 = vpack.c.b16 %v4586, %v4582
    %v4707 = vpack.c.b16 %v4591, %v4587
    %v4708 = vpack.c.b16 %v4592, %v4588
    %v4709 = vpack.c.b16 %v4593, %v4589
    %v4710 = vpack.c.b16 %v4594, %v4590
    %v4711 = vpack.c.b16 %v4599, %v4595
    %v4712 = vpack.c.b16 %v4600, %v4596
    %v4713 = vpack.c.b16 %v4601, %v4597
    %v4714 = vpack.c.b16 %v4602, %v4598
    %v4715 = vpack.c.b16 %v4607, %v4603
    %v4716 = vpack.c.b16 %v4608, %v4604
    %v4717 = vpack.c.b16 %v4609, %v4605
    %v4718 = vpack.c.b16 %v4610, %v4606
    %v4719 = vpack.c.b16 %v4615, %v4611
    %v4720 = vpack.c.b16 %v4616, %v4612
    %v4721 = vpack.c.b16 %v4617, %v4613
    %v4722 = vpack.c.b16 %v4618, %v4614
    %v4723 = vpack.c.b16 %v4623, %v4619
    %v4724 = vpack.c.b16 %v4624, %v4620
    %v4725 = vpack.c.b16 %v4625, %v4621
    %v4726 = vpack.c.b16 %v4626, %v4622
    %v4727 = vpack.c.b16 %v4631, %v4627
    %v4728 = vpack.c.b16 %v4632, %v4628
    %v4729 = vpack.c.b16 %v4633, %v4629
    %v4730 = vpack.c.b16 %v4634, %v4630
    %v4731 = vpack.c.b16 %v4639, %v4635
    %v4732 = vpack.c.b16 %v4640, %v4636
    %v4733 = vpack.c.b16 %v4641, %v4637
    %v4734 = vpack.c.b16 %v4642, %v4638
    %v4735 = vpack.c.b16 %v4647, %v4643
    %v4736 = vpack.c.b16 %v4648, %v4644
    %v4737 = vpack.c.b16 %v4649, %v4645
    %v4738 = vpack.c.b16 %v4650, %v4646
    %v4739 = vpack.c.b16 %v4655, %v4651
    %v4740 = vpack.c.b16 %v4656, %v4652
    %v4741 = vpack.c.b16 %v4657, %v4653
    %v4742 = vpack.c.b16 %v4658, %v4654
    %v4743 = vpack.c.b16 %v4663, %v4659
    %v4744 = vpack.c.b16 %v4664, %v4660
    %v4745 = vpack.c.b16 %v4665, %v4661
    %v4746 = vpack.c.b16 %v4666, %v4662
    %v4747 = vpack.c.b16 %v4671, %v4667
    %v4748 = vpack.c.b16 %v4672, %v4668
    %v4749 = vpack.c.b16 %v4673, %v4669
    %v4750 = vpack.c.b16 %v4674, %v4670
    %v4751 = vpack.c.b16 %v4679, %v4675
    %v4752 = vpack.c.b16 %v4680, %v4676
    %v4753 = vpack.c.b16 %v4681, %v4677
    %v4754 = vpack.c.b16 %v4682, %v4678
    %v4755 = vpack.c.b16 %v4687, %v4683
    %v4756 = vpack.c.b16 %v4688, %v4684
    %v4757 = vpack.c.b16 %v4689, %v4685
    %v4758 = vpack.c.b16 %v4690, %v4686
    %vm4823 = vcmask 105472
    %v4825 = vsel %vm4823, %v3922, 0
    %vm4827 = vcmask 1045504
    %vm4828 = vcmask 1046528
    %v4829 = vsel %vm4827, 4294967295, 65535
    %v4830 = vsel %vm4828, %v4829, 0
    %v4832 = vand.u32 %v4755, %v4830
    %v4835 = vand.u32 %v4756, %v4830
    %v4838 = vand.u32 %v4757, %v4830
    %v4841 = vand.u32 %v4758, %v4830
    %4843 = vmatpush.bf16.msra.mxu0 %v4719
    %4844 = vmatpush.bf16.msra.mxu0 %v4715
    %4845 = vmatpush.bf16.msra.mxu0 %v4711
    %4846 = vmatpush.bf16.msra.mxu0 %v4707
    %4847 = vmatpush.bf16.msra.mxu0 %v4703
    %4848 = vmatpush.bf16.msra.mxu0 %v4699
    %4849 = vmatpush.bf16.msra.mxu0 %v4695
    %4850 = vmatpush.bf16.msra.mxu0 %v4691
    %4851 = vmatmul.bf16.gmra.mxu0 %v3920
    %v4852 = vpop.f32.mrf.mxu0
    %v4853 = vadd.f32 %v4331, %v4852
    %v4854 = vpop.f32.mrf.mxu0
    %v4855 = vadd.f32 %v4333, %v4854
    %4856 = vdwg.mxu0
    %4857 = vmatpush.bf16.msra.mxu0 %v4751
    %4858 = vmatpush.bf16.msra.mxu0 %v4747
    %4859 = vmatpush.bf16.msra.mxu0 %v4743
    %4860 = vmatpush.bf16.msra.mxu0 %v4739
    %4861 = vmatpush.bf16.msra.mxu0 %v4735
    %4862 = vmatpush.bf16.msra.mxu0 %v4731
    %4863 = vmatpush.bf16.msra.mxu0 %v4727
    %4864 = vmatpush.bf16.msra.mxu0 %v4723
    %4865 = vmatmul.bf16.gmra.mxu0 %v3921
    %v4866 = vpop.f32.mrf.mxu0
    %v4867 = vadd.f32 %v4853, %v4866
    %v4868 = vpop.f32.mrf.mxu0
    %v4869 = vadd.f32 %v4855, %v4868
    %4870 = vdwg.mxu0
    %4871 = vmatpush.bf16.msra.mxu0 0
    %4872 = vmatpush.bf16.msra.mxu0 0
    %4873 = vmatpush.bf16.msra.mxu0 0
    %4874 = vmatpush.bf16.msra.mxu0 0
    %4875 = vmatpush.bf16.msra.mxu0 0
    %4876 = vmatpush.bf16.msra.mxu0 0
    %4877 = vmatpush.bf16.msra.mxu0 0
    %4878 = vmatpush.bf16.msra.mxu0 %v4832
    %4879 = vmatmul.bf16.gmra.mxu0 %v4825
    %v4880 = vpop.f32.mrf.mxu0
    %v4881 = vadd.f32 %v4867, %v4880
    %v4882 = vpop.f32.mrf.mxu0
    %v4883 = vadd.f32 %v4869, %v4882
    %4884 = vdwg.mxu0
    %4885 = vmatpush.bf16.msra.mxu0 %v4720
    %4886 = vmatpush.bf16.msra.mxu0 %v4716
    %4887 = vmatpush.bf16.msra.mxu0 %v4712
    %4888 = vmatpush.bf16.msra.mxu0 %v4708
    %4889 = vmatpush.bf16.msra.mxu0 %v4704
    %4890 = vmatpush.bf16.msra.mxu0 %v4700
    %4891 = vmatpush.bf16.msra.mxu0 %v4696
    %4892 = vmatpush.bf16.msra.mxu0 %v4692
    %4893 = vmatmul.bf16.gmra.mxu0 %v3920
    %v4894 = vpop.f32.mrf.mxu0
    %v4895 = vadd.f32 %v4359, %v4894
    %v4896 = vpop.f32.mrf.mxu0
    %v4897 = vadd.f32 %v4361, %v4896
    %4898 = vdwg.mxu0
    %4899 = vmatpush.bf16.msra.mxu0 %v4752
    %4900 = vmatpush.bf16.msra.mxu0 %v4748
    %4901 = vmatpush.bf16.msra.mxu0 %v4744
    %4902 = vmatpush.bf16.msra.mxu0 %v4740
    %4903 = vmatpush.bf16.msra.mxu0 %v4736
    %4904 = vmatpush.bf16.msra.mxu0 %v4732
    %4905 = vmatpush.bf16.msra.mxu0 %v4728
    %4906 = vmatpush.bf16.msra.mxu0 %v4724
    %4907 = vmatmul.bf16.gmra.mxu0 %v3921
    %v4908 = vpop.f32.mrf.mxu0
    %v4909 = vadd.f32 %v4895, %v4908
    %v4910 = vpop.f32.mrf.mxu0
    %v4911 = vadd.f32 %v4897, %v4910
    %4912 = vdwg.mxu0
    %4913 = vmatpush.bf16.msra.mxu0 0
    %4914 = vmatpush.bf16.msra.mxu0 0
    %4915 = vmatpush.bf16.msra.mxu0 0
    %4916 = vmatpush.bf16.msra.mxu0 0
    %4917 = vmatpush.bf16.msra.mxu0 0
    %4918 = vmatpush.bf16.msra.mxu0 0
    %4919 = vmatpush.bf16.msra.mxu0 0
    %4920 = vmatpush.bf16.msra.mxu0 %v4835
    %4921 = vmatmul.bf16.gmra.mxu0 %v4825
    %v4922 = vpop.f32.mrf.mxu0
    %v4923 = vadd.f32 %v4909, %v4922
    %v4924 = vpop.f32.mrf.mxu0
    %v4925 = vadd.f32 %v4911, %v4924
    %4926 = vdwg.mxu0
    %4927 = vmatpush.bf16.msra.mxu0 %v4721
    %4928 = vmatpush.bf16.msra.mxu0 %v4717
    %4929 = vmatpush.bf16.msra.mxu0 %v4713
    %4930 = vmatpush.bf16.msra.mxu0 %v4709
    %4931 = vmatpush.bf16.msra.mxu0 %v4705
    %4932 = vmatpush.bf16.msra.mxu0 %v4701
    %4933 = vmatpush.bf16.msra.mxu0 %v4697
    %4934 = vmatpush.bf16.msra.mxu0 %v4693
    %4935 = vmatmul.bf16.gmra.mxu0 %v3920
    %v4936 = vpop.f32.mrf.mxu0
    %v4937 = vadd.f32 %v4387, %v4936
    %v4938 = vpop.f32.mrf.mxu0
    %v4939 = vadd.f32 %v4389, %v4938
    %4940 = vdwg.mxu0
    %4941 = vmatpush.bf16.msra.mxu0 %v4753
    %4942 = vmatpush.bf16.msra.mxu0 %v4749
    %4943 = vmatpush.bf16.msra.mxu0 %v4745
    %4944 = vmatpush.bf16.msra.mxu0 %v4741
    %4945 = vmatpush.bf16.msra.mxu0 %v4737
    %4946 = vmatpush.bf16.msra.mxu0 %v4733
    %4947 = vmatpush.bf16.msra.mxu0 %v4729
    %4948 = vmatpush.bf16.msra.mxu0 %v4725
    %4949 = vmatmul.bf16.gmra.mxu0 %v3921
    %v4950 = vpop.f32.mrf.mxu0
    %v4951 = vadd.f32 %v4937, %v4950
    %v4952 = vpop.f32.mrf.mxu0
    %v4953 = vadd.f32 %v4939, %v4952
    %4954 = vdwg.mxu0
    %4955 = vmatpush.bf16.msra.mxu0 0
    %4956 = vmatpush.bf16.msra.mxu0 0
    %4957 = vmatpush.bf16.msra.mxu0 0
    %4958 = vmatpush.bf16.msra.mxu0 0
    %4959 = vmatpush.bf16.msra.mxu0 0
    %4960 = vmatpush.bf16.msra.mxu0 0
    %4961 = vmatpush.bf16.msra.mxu0 0
    %4962 = vmatpush.bf16.msra.mxu0 %v4838
    %4963 = vmatmul.bf16.gmra.mxu0 %v4825
    %v4964 = vpop.f32.mrf.mxu0
    %v4965 = vadd.f32 %v4951, %v4964
    %v4966 = vpop.f32.mrf.mxu0
    %v4967 = vadd.f32 %v4953, %v4966
    %4968 = vdwg.mxu0
    %4969 = vmatpush.bf16.msra.mxu0 %v4722
    %4970 = vmatpush.bf16.msra.mxu0 %v4718
    %4971 = vmatpush.bf16.msra.mxu0 %v4714
    %4972 = vmatpush.bf16.msra.mxu0 %v4710
    %4973 = vmatpush.bf16.msra.mxu0 %v4706
    %4974 = vmatpush.bf16.msra.mxu0 %v4702
    %4975 = vmatpush.bf16.msra.mxu0 %v4698
    %4976 = vmatpush.bf16.msra.mxu0 %v4694
    %4977 = vmatmul.bf16.gmra.mxu0 %v3920
    %v4978 = vpop.f32.mrf.mxu0
    %v4979 = vadd.f32 %v4415, %v4978
    %v4980 = vpop.f32.mrf.mxu0
    %v4981 = vadd.f32 %v4417, %v4980
    %4982 = vdwg.mxu0
    %4983 = vmatpush.bf16.msra.mxu0 %v4754
    %4984 = vmatpush.bf16.msra.mxu0 %v4750
    %4985 = vmatpush.bf16.msra.mxu0 %v4746
    %4986 = vmatpush.bf16.msra.mxu0 %v4742
    %4987 = vmatpush.bf16.msra.mxu0 %v4738
    %4988 = vmatpush.bf16.msra.mxu0 %v4734
    %4989 = vmatpush.bf16.msra.mxu0 %v4730
    %4990 = vmatpush.bf16.msra.mxu0 %v4726
    %4991 = vmatmul.bf16.gmra.mxu0 %v3921
    %v4992 = vpop.f32.mrf.mxu0
    %v4993 = vadd.f32 %v4979, %v4992
    %v4994 = vpop.f32.mrf.mxu0
    %v4995 = vadd.f32 %v4981, %v4994
    %4996 = vdwg.mxu0
    %4997 = vmatpush.bf16.msra.mxu0 0
    %4998 = vmatpush.bf16.msra.mxu0 0
    %4999 = vmatpush.bf16.msra.mxu0 0
    %5000 = vmatpush.bf16.msra.mxu0 0
    %5001 = vmatpush.bf16.msra.mxu0 0
    %5002 = vmatpush.bf16.msra.mxu0 0
    %5003 = vmatpush.bf16.msra.mxu0 0
    %5004 = vmatpush.bf16.msra.mxu0 %v4841
    %5005 = vmatmul.bf16.gmra.mxu0 %v4825
    %v5006 = vpop.f32.mrf.mxu0
    %v5007 = vadd.f32 %v4993, %v5006
    %v5008 = vpop.f32.mrf.mxu0
    %v5009 = vadd.f32 %v4995, %v5008
    %5010 = vdwg.mxu0
    %v5011 = vld [vmem:[%s14] sm:$0xf]
    %v5013 = vperm.slane %v5011, 0
    %v5014 = vperm.slane %v5011, 1
    %v5015 = vperm.slane %v5011, 2
    %v5016 = vperm.slane %v5011, 3
    %v5021 = vadd.f32 %v4881, %v5013
    %v5022 = vadd.f32 %v4923, %v5014
    %v5023 = vadd.f32 %v4965, %v5015
    %v5024 = vadd.f32 %v5007, %v5016
    %v5025 = vadd.f32 %v4883, %v5013
    %v5026 = vadd.f32 %v4925, %v5014
    %v5027 = vadd.f32 %v4967, %v5015
    %v5028 = vadd.f32 %v5009, %v5016
    %v5029 = vmax.f32 %v5021, 0.0
    %v5030 = vmax.f32 %v5022, 0.0
    %v5031 = vmax.f32 %v5023, 0.0
    %v5032 = vmax.f32 %v5024, 0.0
    %v5033 = vmax.f32 %v5025, 0.0
    %v5034 = vmax.f32 %v5026, 0.0
    %v5035 = vmax.f32 %v5027, 0.0
    %v5036 = vmax.f32 %v5028, 0.0
    %v5037 = vpack.c.bf16 %v5033, %v5029
    %v5038 = vpack.c.bf16 %v5034, %v5030
    %v5039 = vpack.c.bf16 %v5035, %v5031
    %v5040 = vpack.c.bf16 %v5036, %v5032
    %v5041 = vld [vmem:[#allocation9] sm:$0xff]
    %v5042 = vld [vmem:[#allocation9 + $0x8] sm:$0xff]
    %v5043 = vld [vmem:[#allocation9 + $0x10] sm:$0xff]
    %v5044 = vld [vmem:[#allocation9 + $0x18] sm:$0xff]
    %v5045 = vld [vmem:[#allocation9 + $0x20] sm:$0xff]
    %v5046 = vld [vmem:[#allocation9 + $0x28] sm:$0xff]
    %v5047 = vld [vmem:[#allocation9 + $0x30] sm:$0xff]
    %v5048 = vld [vmem:[#allocation9 + $0x38] sm:$0xff]
    %v5049 = vld [vmem:[#allocation9 + $0x40] sm:$0xff]
    %v5050 = vld [vmem:[#allocation9 + $0x48] sm:$0xff]
    %v5051 = vld [vmem:[#allocation9 + $0x50] sm:$0xff]
    %v5052 = vld [vmem:[#allocation9 + $0x58] sm:$0xff]
    %v5053 = vld [vmem:[#allocation9 + $0x60] sm:$0xff]
    %v5054 = vld [vmem:[#allocation9 + $0x68] sm:$0xff]
    %v5055 = vld [vmem:[#allocation9 + $0x70] sm:$0xff]
    %v5056 = vld [vmem:[#allocation9 + $0x78] sm:$0xff]
    %v5057 = vld [vmem:[#allocation9 + $0x80] sm:$0xff]
    %v5058 = vld [vmem:[#allocation9 + $0x88] sm:$0xff]
    %v5059 = vld [vmem:[#allocation9 + $0x90] sm:$0xff]
    %v5060 = vld [vmem:[#allocation9 + $0x98] sm:$0xff]
    %v5061 = vld [vmem:[#allocation9 + $0xa0] sm:$0xff]
    %v5062 = vld [vmem:[#allocation9 + $0xa8] sm:$0xff]
    %v5063 = vld [vmem:[#allocation9 + $0xb0] sm:$0xff]
    %v5064 = vld [vmem:[#allocation9 + $0xb8] sm:$0xff]
    %v5065 = vld [vmem:[#allocation9 + $0xc0] sm:$0xff]
    %v5066 = vld [vmem:[#allocation9 + $0xc8] sm:$0xff]
    %v5067 = vld [vmem:[#allocation9 + $0xd0] sm:$0xff]
    %v5068 = vld [vmem:[#allocation9 + $0xd8] sm:$0xff]
    %v5069 = vld [vmem:[#allocation9 + $0xe0] sm:$0xff]
    %v5070 = vld [vmem:[#allocation9 + $0xe8] sm:$0xff]
    %v5071 = vld [vmem:[#allocation9 + $0xf0] sm:$0xff]
    %v5072 = vld [vmem:[#allocation9 + $0xf8] sm:$0xff]
    %v5073 = vld [vmem:[#allocation9 + $0x100] sm:$0xff]
    %v5074 = vld [vmem:[#allocation9 + $0x108] sm:$0xff]
    %v5075 = vld [vmem:[#allocation9 + $0x110] sm:$0xff]
    %v5076 = vld [vmem:[#allocation9 + $0x118] sm:$0xff]
    %v5077 = vld [vmem:[#allocation9 + $0x120] sm:$0xff]
    %v5078 = vld [vmem:[#allocation9 + $0x128] sm:$0xff]
    %v5079 = vld [vmem:[#allocation9 + $0x130] sm:$0xff]
    %v5080 = vld [vmem:[#allocation9 + $0x138] sm:$0xff]
    %v5081 = vld [vmem:[#allocation9 + $0x140] sm:$0xff]
    %v5082 = vld [vmem:[#allocation9 + $0x148] sm:$0xff]
    %v5083 = vld [vmem:[#allocation9 + $0x150] sm:$0xff]
    %v5084 = vld [vmem:[#allocation9 + $0x158] sm:$0xff]
    %v5085 = vld [vmem:[#allocation9 + $0x160] sm:$0xff]
    %v5086 = vld [vmem:[#allocation9 + $0x168] sm:$0xff]
    %v5087 = vld [vmem:[#allocation9 + $0x170] sm:$0xff]
    %v5088 = vld [vmem:[#allocation9 + $0x178] sm:$0xff]
    %v5089 = vld [vmem:[#allocation9 + $0x180] sm:$0xff]
    %v5090 = vld [vmem:[#allocation9 + $0x188] sm:$0xff]
    %v5091 = vld [vmem:[#allocation9 + $0x190] sm:$0xff]
    %v5092 = vld [vmem:[#allocation9 + $0x198] sm:$0xff]
    %v5093 = vld [vmem:[#allocation9 + $0x1a0] sm:$0xff]
    %v5094 = vld [vmem:[#allocation9 + $0x1a8] sm:$0xff]
    %v5095 = vld [vmem:[#allocation9 + $0x1b0] sm:$0xff]
    %v5096 = vld [vmem:[#allocation9 + $0x1b8] sm:$0xff]
    %v5097 = vld [vmem:[#allocation9 + $0x1c0] sm:$0xff]
    %v5098 = vld [vmem:[#allocation9 + $0x1c8] sm:$0xff]
    %v5099 = vld [vmem:[#allocation9 + $0x1d0] sm:$0xff]
    %v5100 = vld [vmem:[#allocation9 + $0x1d8] sm:$0xff]
    %v5101 = vld [vmem:[#allocation9 + $0x1e0] sm:$0xff]
    %v5102 = vld [vmem:[#allocation9 + $0x1e8] sm:$0xff]
    %v5103 = vld [vmem:[#allocation9 + $0x1f0] sm:$0xff]
    %v5104 = vld [vmem:[#allocation9 + $0x1f8] sm:$0xff]
    %v5105 = vld [vmem:[#allocation9 + $0x200] sm:$0xff]
    %v5106 = vld [vmem:[#allocation9 + $0x208] sm:$0xff]
    %v5107 = vld [vmem:[#allocation9 + $0x210] sm:$0xff]
    %v5108 = vld [vmem:[#allocation9 + $0x218] sm:$0xff]
    %v5109 = vld [vmem:[#allocation9 + $0x220] sm:$0xff]
    %v5110 = vld [vmem:[#allocation9 + $0x228] sm:$0xff]
    %v5111 = vld [vmem:[#allocation9 + $0x230] sm:$0xff]
    %v5112 = vld [vmem:[#allocation9 + $0x238] sm:$0xff]
    %v5113 = vld [vmem:[#allocation9 + $0x240] sm:$0xff]
    %v5114 = vld [vmem:[#allocation9 + $0x248] sm:$0xff]
    %v5115 = vld [vmem:[#allocation9 + $0x250] sm:$0xff]
    %v5116 = vld [vmem:[#allocation9 + $0x258] sm:$0xff]
    %v5117 = vld [vmem:[#allocation9 + $0x260] sm:$0xff]
    %v5118 = vld [vmem:[#allocation9 + $0x268] sm:$0xff]
    %v5119 = vld [vmem:[#allocation9 + $0x270] sm:$0xff]
    %v5120 = vld [vmem:[#allocation9 + $0x278] sm:$0xff]
    %v5121 = vld [vmem:[#allocation9 + $0x280] sm:$0xff]
    %v5122 = vld [vmem:[#allocation9 + $0x288] sm:$0xff]
    %v5123 = vld [vmem:[#allocation9 + $0x290] sm:$0xff]
    %v5124 = vld [vmem:[#allocation9 + $0x298] sm:$0xff]
    %v5125 = vld [vmem:[#allocation9 + $0x2a0] sm:$0xff]
    %v5126 = vld [vmem:[#allocation9 + $0x2a8] sm:$0xff]
    %v5127 = vld [vmem:[#allocation9 + $0x2b0] sm:$0xff]
    %v5128 = vld [vmem:[#allocation9 + $0x2b8] sm:$0xff]
    %v5129 = vld [vmem:[#allocation9 + $0x2c0] sm:$0xff]
    %v5130 = vld [vmem:[#allocation9 + $0x2c8] sm:$0xff]
    %v5131 = vld [vmem:[#allocation9 + $0x2d0] sm:$0xff]
    %v5132 = vld [vmem:[#allocation9 + $0x2d8] sm:$0xff]
    %v5133 = vld [vmem:[#allocation9 + $0x2e0] sm:$0xff]
    %v5134 = vld [vmem:[#allocation9 + $0x2e8] sm:$0xff]
    %v5135 = vld [vmem:[#allocation9 + $0x2f0] sm:$0xff]
    %v5136 = vld [vmem:[#allocation9 + $0x2f8] sm:$0xff]
    %v5137 = vld [vmem:[#allocation9 + $0x300] sm:$0xff]
    %v5138 = vld [vmem:[#allocation9 + $0x308] sm:$0xff]
    %v5139 = vld [vmem:[#allocation9 + $0x310] sm:$0xff]
    %v5140 = vld [vmem:[#allocation9 + $0x318] sm:$0xff]
    %v5141 = vld [vmem:[#allocation9 + $0x320] sm:$0xff]
    %v5142 = vld [vmem:[#allocation9 + $0x328] sm:$0xff]
    %v5143 = vld [vmem:[#allocation9 + $0x330] sm:$0xff]
    %v5144 = vld [vmem:[#allocation9 + $0x338] sm:$0xff]
    %v5145 = vld [vmem:[#allocation9 + $0x340] sm:$0xff]
    %v5146 = vld [vmem:[#allocation9 + $0x348] sm:$0xff]
    %v5147 = vld [vmem:[#allocation9 + $0x350] sm:$0xff]
    %v5148 = vld [vmem:[#allocation9 + $0x358] sm:$0xff]
    %v5149 = vld [vmem:[#allocation9 + $0x360] sm:$0xff]
    %v5150 = vld [vmem:[#allocation9 + $0x368] sm:$0xff]
    %v5151 = vld [vmem:[#allocation9 + $0x370] sm:$0xff]
    %v5152 = vld [vmem:[#allocation9 + $0x378] sm:$0xff]
    %v5153 = vld [vmem:[#allocation9 + $0x380] sm:$0xff]
    %v5154 = vld [vmem:[#allocation9 + $0x388] sm:$0xff]
    %v5155 = vld [vmem:[#allocation9 + $0x390] sm:$0xff]
    %v5156 = vld [vmem:[#allocation9 + $0x398] sm:$0xff]
    %v5157 = vld [vmem:[#allocation9 + $0x3a0] sm:$0xff]
    %v5158 = vld [vmem:[#allocation9 + $0x3a8] sm:$0xff]
    %v5159 = vld [vmem:[#allocation9 + $0x3b0] sm:$0xff]
    %v5160 = vld [vmem:[#allocation9 + $0x3b8] sm:$0xff]
    %v5161 = vld [vmem:[#allocation9 + $0x3c0] sm:$0xff]
    %v5162 = vld [vmem:[#allocation9 + $0x3c8] sm:$0xff]
    %v5163 = vld [vmem:[#allocation9 + $0x3d0] sm:$0xff]
    %v5164 = vld [vmem:[#allocation9 + $0x3d8] sm:$0xff]
    %v5165 = vld [vmem:[#allocation9 + $0x3e0] sm:$0xff]
    %v5166 = vld [vmem:[#allocation9 + $0x3e8] sm:$0xff]
    %v5167 = vld [vmem:[#allocation9 + $0x3f0] sm:$0xff]
    %v5168 = vld [vmem:[#allocation9 + $0x3f8] sm:$0xff]
    %v5169 = vld [vmem:[%s16] sm:$0xf]
    %v5171 = vperm.slane %v5169, 0
    %v5172 = vperm.slane %v5169, 1
    %v5173 = vperm.slane %v5169, 2
    %v5174 = vperm.slane %v5169, 3
    %v5307 = vunpack.c.l.b16 %v5041
    %v5308 = vunpack.c.h.b16 %v5041
    %v5309 = vunpack.c.l.b16 %v5042
    %v5310 = vunpack.c.h.b16 %v5042
    %v5311 = vunpack.c.l.b16 %v5043
    %v5312 = vunpack.c.h.b16 %v5043
    %v5313 = vunpack.c.l.b16 %v5044
    %v5314 = vunpack.c.h.b16 %v5044
    %v5315 = vunpack.c.l.b16 %v5045
    %v5316 = vunpack.c.h.b16 %v5045
    %v5317 = vunpack.c.l.b16 %v5046
    %v5318 = vunpack.c.h.b16 %v5046
    %v5319 = vunpack.c.l.b16 %v5047
    %v5320 = vunpack.c.h.b16 %v5047
    %v5321 = vunpack.c.l.b16 %v5048
    %v5322 = vunpack.c.h.b16 %v5048
    %v5323 = vunpack.c.l.b16 %v5049
    %v5324 = vunpack.c.h.b16 %v5049
    %v5325 = vunpack.c.l.b16 %v5050
    %v5326 = vunpack.c.h.b16 %v5050
    %v5327 = vunpack.c.l.b16 %v5051
    %v5328 = vunpack.c.h.b16 %v5051
    %v5329 = vunpack.c.l.b16 %v5052
    %v5330 = vunpack.c.h.b16 %v5052
    %v5331 = vunpack.c.l.b16 %v5053
    %v5332 = vunpack.c.h.b16 %v5053
    %v5333 = vunpack.c.l.b16 %v5054
    %v5334 = vunpack.c.h.b16 %v5054
    %v5335 = vunpack.c.l.b16 %v5055
    %v5336 = vunpack.c.h.b16 %v5055
    %v5337 = vunpack.c.l.b16 %v5056
    %v5338 = vunpack.c.h.b16 %v5056
    %v5339 = vunpack.c.l.b16 %v5057
    %v5340 = vunpack.c.h.b16 %v5057
    %v5341 = vunpack.c.l.b16 %v5058
    %v5342 = vunpack.c.h.b16 %v5058
    %v5343 = vunpack.c.l.b16 %v5059
    %v5344 = vunpack.c.h.b16 %v5059
    %v5345 = vunpack.c.l.b16 %v5060
    %v5346 = vunpack.c.h.b16 %v5060
    %v5347 = vunpack.c.l.b16 %v5061
    %v5348 = vunpack.c.h.b16 %v5061
    %v5349 = vunpack.c.l.b16 %v5062
    %v5350 = vunpack.c.h.b16 %v5062
    %v5351 = vunpack.c.l.b16 %v5063
    %v5352 = vunpack.c.h.b16 %v5063
    %v5353 = vunpack.c.l.b16 %v5064
    %v5354 = vunpack.c.h.b16 %v5064
    %v5355 = vunpack.c.l.b16 %v5065
    %v5356 = vunpack.c.h.b16 %v5065
    %v5357 = vunpack.c.l.b16 %v5066
    %v5358 = vunpack.c.h.b16 %v5066
    %v5359 = vunpack.c.l.b16 %v5067
    %v5360 = vunpack.c.h.b16 %v5067
    %v5361 = vunpack.c.l.b16 %v5068
    %v5362 = vunpack.c.h.b16 %v5068
    %v5363 = vunpack.c.l.b16 %v5069
    %v5364 = vunpack.c.h.b16 %v5069
    %v5365 = vunpack.c.l.b16 %v5070
    %v5366 = vunpack.c.h.b16 %v5070
    %v5367 = vunpack.c.l.b16 %v5071
    %v5368 = vunpack.c.h.b16 %v5071
    %v5369 = vunpack.c.l.b16 %v5072
    %v5370 = vunpack.c.h.b16 %v5072
    %v5371 = vunpack.c.l.b16 %v5073
    %v5372 = vunpack.c.h.b16 %v5073
    %v5373 = vunpack.c.l.b16 %v5074
    %v5374 = vunpack.c.h.b16 %v5074
    %v5375 = vunpack.c.l.b16 %v5075
    %v5376 = vunpack.c.h.b16 %v5075
    %v5377 = vunpack.c.l.b16 %v5076
    %v5378 = vunpack.c.h.b16 %v5076
    %v5379 = vunpack.c.l.b16 %v5077
    %v5380 = vunpack.c.h.b16 %v5077
    %v5381 = vunpack.c.l.b16 %v5078
    %v5382 = vunpack.c.h.b16 %v5078
    %v5383 = vunpack.c.l.b16 %v5079
    %v5384 = vunpack.c.h.b16 %v5079
    %v5385 = vunpack.c.l.b16 %v5080
    %v5386 = vunpack.c.h.b16 %v5080
    %v5387 = vunpack.c.l.b16 %v5081
    %v5388 = vunpack.c.h.b16 %v5081
    %v5389 = vunpack.c.l.b16 %v5082
    %v5390 = vunpack.c.h.b16 %v5082
    %v5391 = vunpack.c.l.b16 %v5083
    %v5392 = vunpack.c.h.b16 %v5083
    %v5393 = vunpack.c.l.b16 %v5084
    %v5394 = vunpack.c.h.b16 %v5084
    %v5395 = vunpack.c.l.b16 %v5085
    %v5396 = vunpack.c.h.b16 %v5085
    %v5397 = vunpack.c.l.b16 %v5086
    %v5398 = vunpack.c.h.b16 %v5086
    %v5399 = vunpack.c.l.b16 %v5087
    %v5400 = vunpack.c.h.b16 %v5087
    %v5401 = vunpack.c.l.b16 %v5088
    %v5402 = vunpack.c.h.b16 %v5088
    %v5403 = vunpack.c.l.b16 %v5089
    %v5404 = vunpack.c.h.b16 %v5089
    %v5405 = vunpack.c.l.b16 %v5090
    %v5406 = vunpack.c.h.b16 %v5090
    %v5407 = vunpack.c.l.b16 %v5091
    %v5408 = vunpack.c.h.b16 %v5091
    %v5409 = vunpack.c.l.b16 %v5092
    %v5410 = vunpack.c.h.b16 %v5092
    %v5411 = vunpack.c.l.b16 %v5093
    %v5412 = vunpack.c.h.b16 %v5093
    %v5413 = vunpack.c.l.b16 %v5094
    %v5414 = vunpack.c.h.b16 %v5094
    %v5415 = vunpack.c.l.b16 %v5095
    %v5416 = vunpack.c.h.b16 %v5095
    %v5417 = vunpack.c.l.b16 %v5096
    %v5418 = vunpack.c.h.b16 %v5096
    %v5419 = vunpack.c.l.b16 %v5097
    %v5420 = vunpack.c.h.b16 %v5097
    %v5421 = vunpack.c.l.b16 %v5098
    %v5422 = vunpack.c.h.b16 %v5098
    %v5423 = vunpack.c.l.b16 %v5099
    %v5424 = vunpack.c.h.b16 %v5099
    %v5425 = vunpack.c.l.b16 %v5100
    %v5426 = vunpack.c.h.b16 %v5100
    %v5427 = vunpack.c.l.b16 %v5101
    %v5428 = vunpack.c.h.b16 %v5101
    %v5429 = vunpack.c.l.b16 %v5102
    %v5430 = vunpack.c.h.b16 %v5102
    %v5431 = vunpack.c.l.b16 %v5103
    %v5432 = vunpack.c.h.b16 %v5103
    %v5433 = vunpack.c.l.b16 %v5104
    %v5434 = vunpack.c.h.b16 %v5104
    %v5435 = vunpack.c.l.b16 %v5105
    %v5436 = vunpack.c.h.b16 %v5105
    %v5437 = vunpack.c.l.b16 %v5106
    %v5438 = vunpack.c.h.b16 %v5106
    %v5439 = vunpack.c.l.b16 %v5107
    %v5440 = vunpack.c.h.b16 %v5107
    %v5441 = vunpack.c.l.b16 %v5108
    %v5442 = vunpack.c.h.b16 %v5108
    %v5443 = vunpack.c.l.b16 %v5109
    %v5444 = vunpack.c.h.b16 %v5109
    %v5445 = vunpack.c.l.b16 %v5110
    %v5446 = vunpack.c.h.b16 %v5110
    %v5447 = vunpack.c.l.b16 %v5111
    %v5448 = vunpack.c.h.b16 %v5111
    %v5449 = vunpack.c.l.b16 %v5112
    %v5450 = vunpack.c.h.b16 %v5112
    %v5451 = vunpack.c.l.b16 %v5113
    %v5452 = vunpack.c.h.b16 %v5113
    %v5453 = vunpack.c.l.b16 %v5114
    %v5454 = vunpack.c.h.b16 %v5114
    %v5455 = vunpack.c.l.b16 %v5115
    %v5456 = vunpack.c.h.b16 %v5115
    %v5457 = vunpack.c.l.b16 %v5116
    %v5458 = vunpack.c.h.b16 %v5116
    %v5459 = vunpack.c.l.b16 %v5117
    %v5460 = vunpack.c.h.b16 %v5117
    %v5461 = vunpack.c.l.b16 %v5118
    %v5462 = vunpack.c.h.b16 %v5118
    %v5463 = vunpack.c.l.b16 %v5119
    %v5464 = vunpack.c.h.b16 %v5119
    %v5465 = vunpack.c.l.b16 %v5120
    %v5466 = vunpack.c.h.b16 %v5120
    %v5467 = vunpack.c.l.b16 %v5121
    %v5468 = vunpack.c.h.b16 %v5121
    %v5469 = vunpack.c.l.b16 %v5122
    %v5470 = vunpack.c.h.b16 %v5122
    %v5471 = vunpack.c.l.b16 %v5123
    %v5472 = vunpack.c.h.b16 %v5123
    %v5473 = vunpack.c.l.b16 %v5124
    %v5474 = vunpack.c.h.b16 %v5124
    %v5475 = vunpack.c.l.b16 %v5125
    %v5476 = vunpack.c.h.b16 %v5125
    %v5477 = vunpack.c.l.b16 %v5126
    %v5478 = vunpack.c.h.b16 %v5126
    %v5479 = vunpack.c.l.b16 %v5127
    %v5480 = vunpack.c.h.b16 %v5127
    %v5481 = vunpack.c.l.b16 %v5128
    %v5482 = vunpack.c.h.b16 %v5128
    %v5483 = vunpack.c.l.b16 %v5129
    %v5484 = vunpack.c.h.b16 %v5129
    %v5485 = vunpack.c.l.b16 %v5130
    %v5486 = vunpack.c.h.b16 %v5130
    %v5487 = vunpack.c.l.b16 %v5131
    %v5488 = vunpack.c.h.b16 %v5131
    %v5489 = vunpack.c.l.b16 %v5132
    %v5490 = vunpack.c.h.b16 %v5132
    %v5491 = vunpack.c.l.b16 %v5133
    %v5492 = vunpack.c.h.b16 %v5133
    %v5493 = vunpack.c.l.b16 %v5134
    %v5494 = vunpack.c.h.b16 %v5134
    %v5495 = vunpack.c.l.b16 %v5135
    %v5496 = vunpack.c.h.b16 %v5135
    %v5497 = vunpack.c.l.b16 %v5136
    %v5498 = vunpack.c.h.b16 %v5136
    %v5499 = vunpack.c.l.b16 %v5137
    %v5500 = vunpack.c.h.b16 %v5137
    %v5501 = vunpack.c.l.b16 %v5138
    %v5502 = vunpack.c.h.b16 %v5138
    %v5503 = vunpack.c.l.b16 %v5139
    %v5504 = vunpack.c.h.b16 %v5139
    %v5505 = vunpack.c.l.b16 %v5140
    %v5506 = vunpack.c.h.b16 %v5140
    %v5507 = vunpack.c.l.b16 %v5141
    %v5508 = vunpack.c.h.b16 %v5141
    %v5509 = vunpack.c.l.b16 %v5142
    %v5510 = vunpack.c.h.b16 %v5142
    %v5511 = vunpack.c.l.b16 %v5143
    %v5512 = vunpack.c.h.b16 %v5143
    %v5513 = vunpack.c.l.b16 %v5144
    %v5514 = vunpack.c.h.b16 %v5144
    %v5515 = vunpack.c.l.b16 %v5145
    %v5516 = vunpack.c.h.b16 %v5145
    %v5517 = vunpack.c.l.b16 %v5146
    %v5518 = vunpack.c.h.b16 %v5146
    %v5519 = vunpack.c.l.b16 %v5147
    %v5520 = vunpack.c.h.b16 %v5147
    %v5521 = vunpack.c.l.b16 %v5148
    %v5522 = vunpack.c.h.b16 %v5148
    %v5523 = vunpack.c.l.b16 %v5149
    %v5524 = vunpack.c.h.b16 %v5149
    %v5525 = vunpack.c.l.b16 %v5150
    %v5526 = vunpack.c.h.b16 %v5150
    %v5527 = vunpack.c.l.b16 %v5151
    %v5528 = vunpack.c.h.b16 %v5151
    %v5529 = vunpack.c.l.b16 %v5152
    %v5530 = vunpack.c.h.b16 %v5152
    %v5531 = vunpack.c.l.b16 %v5153
    %v5532 = vunpack.c.h.b16 %v5153
    %v5533 = vunpack.c.l.b16 %v5154
    %v5534 = vunpack.c.h.b16 %v5154
    %v5535 = vunpack.c.l.b16 %v5155
    %v5536 = vunpack.c.h.b16 %v5155
    %v5537 = vunpack.c.l.b16 %v5156
    %v5538 = vunpack.c.h.b16 %v5156
    %v5539 = vunpack.c.l.b16 %v5157
    %v5540 = vunpack.c.h.b16 %v5157
    %v5541 = vunpack.c.l.b16 %v5158
    %v5542 = vunpack.c.h.b16 %v5158
    %v5543 = vunpack.c.l.b16 %v5159
    %v5544 = vunpack.c.h.b16 %v5159
    %v5545 = vunpack.c.l.b16 %v5160
    %v5546 = vunpack.c.h.b16 %v5160
    %v5547 = vunpack.c.l.b16 %v5161
    %v5548 = vunpack.c.h.b16 %v5161
    %v5549 = vunpack.c.l.b16 %v5162
    %v5550 = vunpack.c.h.b16 %v5162
    %v5551 = vunpack.c.l.b16 %v5163
    %v5552 = vunpack.c.h.b16 %v5163
    %v5553 = vunpack.c.l.b16 %v5164
    %v5554 = vunpack.c.h.b16 %v5164
    %v5555 = vunpack.c.l.b16 %v5165
    %v5556 = vunpack.c.h.b16 %v5165
    %v5557 = vunpack.c.l.b16 %v5166
    %v5558 = vunpack.c.h.b16 %v5166
    %v5559 = vunpack.c.l.b16 %v5167
    %v5560 = vunpack.c.h.b16 %v5167
    %v5561 = vunpack.c.l.b16 %v5168
    %v5562 = vunpack.c.h.b16 %v5168
    %v5563 = vpack.c.b16 %v5311, %v5307
    %v5564 = vpack.c.b16 %v5312, %v5308
    %v5565 = vpack.c.b16 %v5313, %v5309
    %v5566 = vpack.c.b16 %v5314, %v5310
    %v5567 = vpack.c.b16 %v5319, %v5315
    %v5568 = vpack.c.b16 %v5320, %v5316
    %v5569 = vpack.c.b16 %v5321, %v5317
    %v5570 = vpack.c.b16 %v5322, %v5318
    %v5571 = vpack.c.b16 %v5327, %v5323
    %v5572 = vpack.c.b16 %v5328, %v5324
    %v5573 = vpack.c.b16 %v5329, %v5325
    %v5574 = vpack.c.b16 %v5330, %v5326
    %v5575 = vpack.c.b16 %v5335, %v5331
    %v5576 = vpack.c.b16 %v5336, %v5332
    %v5577 = vpack.c.b16 %v5337, %v5333
    %v5578 = vpack.c.b16 %v5338, %v5334
    %v5579 = vpack.c.b16 %v5343, %v5339
    %v5580 = vpack.c.b16 %v5344, %v5340
    %v5581 = vpack.c.b16 %v5345, %v5341
    %v5582 = vpack.c.b16 %v5346, %v5342
    %v5583 = vpack.c.b16 %v5351, %v5347
    %v5584 = vpack.c.b16 %v5352, %v5348
    %v5585 = vpack.c.b16 %v5353, %v5349
    %v5586 = vpack.c.b16 %v5354, %v5350
    %v5587 = vpack.c.b16 %v5359, %v5355
    %v5588 = vpack.c.b16 %v5360, %v5356
    %v5589 = vpack.c.b16 %v5361, %v5357
    %v5590 = vpack.c.b16 %v5362, %v5358
    %v5591 = vpack.c.b16 %v5367, %v5363
    %v5592 = vpack.c.b16 %v5368, %v5364
    %v5593 = vpack.c.b16 %v5369, %v5365
    %v5594 = vpack.c.b16 %v5370, %v5366
    %v5595 = vpack.c.b16 %v5375, %v5371
    %v5596 = vpack.c.b16 %v5376, %v5372
    %v5597 = vpack.c.b16 %v5377, %v5373
    %v5598 = vpack.c.b16 %v5378, %v5374
    %v5599 = vpack.c.b16 %v5383, %v5379
    %v5600 = vpack.c.b16 %v5384, %v5380
    %v5601 = vpack.c.b16 %v5385, %v5381
    %v5602 = vpack.c.b16 %v5386, %v5382
    %v5603 = vpack.c.b16 %v5391, %v5387
    %v5604 = vpack.c.b16 %v5392, %v5388
    %v5605 = vpack.c.b16 %v5393, %v5389
    %v5606 = vpack.c.b16 %v5394, %v5390
    %v5607 = vpack.c.b16 %v5399, %v5395
    %v5608 = vpack.c.b16 %v5400, %v5396
    %v5609 = vpack.c.b16 %v5401, %v5397
    %v5610 = vpack.c.b16 %v5402, %v5398
    %v5611 = vpack.c.b16 %v5407, %v5403
    %v5612 = vpack.c.b16 %v5408, %v5404
    %v5613 = vpack.c.b16 %v5409, %v5405
    %v5614 = vpack.c.b16 %v5410, %v5406
    %v5615 = vpack.c.b16 %v5415, %v5411
    %v5616 = vpack.c.b16 %v5416, %v5412
    %v5617 = vpack.c.b16 %v5417, %v5413
    %v5618 = vpack.c.b16 %v5418, %v5414
    %v5619 = vpack.c.b16 %v5423, %v5419
    %v5620 = vpack.c.b16 %v5424, %v5420
    %v5621 = vpack.c.b16 %v5425, %v5421
    %v5622 = vpack.c.b16 %v5426, %v5422
    %v5623 = vpack.c.b16 %v5431, %v5427
    %v5624 = vpack.c.b16 %v5432, %v5428
    %v5625 = vpack.c.b16 %v5433, %v5429
    %v5626 = vpack.c.b16 %v5434, %v5430
    %v5627 = vpack.c.b16 %v5439, %v5435
    %v5628 = vpack.c.b16 %v5440, %v5436
    %v5629 = vpack.c.b16 %v5441, %v5437
    %v5630 = vpack.c.b16 %v5442, %v5438
    %v5631 = vpack.c.b16 %v5447, %v5443
    %v5632 = vpack.c.b16 %v5448, %v5444
    %v5633 = vpack.c.b16 %v5449, %v5445
    %v5634 = vpack.c.b16 %v5450, %v5446
    %v5635 = vpack.c.b16 %v5455, %v5451
    %v5636 = vpack.c.b16 %v5456, %v5452
    %v5637 = vpack.c.b16 %v5457, %v5453
    %v5638 = vpack.c.b16 %v5458, %v5454
    %v5639 = vpack.c.b16 %v5463, %v5459
    %v5640 = vpack.c.b16 %v5464, %v5460
    %v5641 = vpack.c.b16 %v5465, %v5461
    %v5642 = vpack.c.b16 %v5466, %v5462
    %v5643 = vpack.c.b16 %v5471, %v5467
    %v5644 = vpack.c.b16 %v5472, %v5468
    %v5645 = vpack.c.b16 %v5473, %v5469
    %v5646 = vpack.c.b16 %v5474, %v5470
    %v5647 = vpack.c.b16 %v5479, %v5475
    %v5648 = vpack.c.b16 %v5480, %v5476
    %v5649 = vpack.c.b16 %v5481, %v5477
    %v5650 = vpack.c.b16 %v5482, %v5478
    %v5651 = vpack.c.b16 %v5487, %v5483
    %v5652 = vpack.c.b16 %v5488, %v5484
    %v5653 = vpack.c.b16 %v5489, %v5485
    %v5654 = vpack.c.b16 %v5490, %v5486
    %v5655 = vpack.c.b16 %v5495, %v5491
    %v5656 = vpack.c.b16 %v5496, %v5492
    %v5657 = vpack.c.b16 %v5497, %v5493
    %v5658 = vpack.c.b16 %v5498, %v5494
    %v5659 = vpack.c.b16 %v5503, %v5499
    %v5660 = vpack.c.b16 %v5504, %v5500
    %v5661 = vpack.c.b16 %v5505, %v5501
    %v5662 = vpack.c.b16 %v5506, %v5502
    %v5663 = vpack.c.b16 %v5511, %v5507
    %v5664 = vpack.c.b16 %v5512, %v5508
    %v5665 = vpack.c.b16 %v5513, %v5509
    %v5666 = vpack.c.b16 %v5514, %v5510
    %v5667 = vpack.c.b16 %v5519, %v5515
    %v5668 = vpack.c.b16 %v5520, %v5516
    %v5669 = vpack.c.b16 %v5521, %v5517
    %v5670 = vpack.c.b16 %v5522, %v5518
    %v5671 = vpack.c.b16 %v5527, %v5523
    %v5672 = vpack.c.b16 %v5528, %v5524
    %v5673 = vpack.c.b16 %v5529, %v5525
    %v5674 = vpack.c.b16 %v5530, %v5526
    %v5675 = vpack.c.b16 %v5535, %v5531
    %v5676 = vpack.c.b16 %v5536, %v5532
    %v5677 = vpack.c.b16 %v5537, %v5533
    %v5678 = vpack.c.b16 %v5538, %v5534
    %v5679 = vpack.c.b16 %v5543, %v5539
    %v5680 = vpack.c.b16 %v5544, %v5540
    %v5681 = vpack.c.b16 %v5545, %v5541
    %v5682 = vpack.c.b16 %v5546, %v5542
    %v5683 = vpack.c.b16 %v5551, %v5547
    %v5684 = vpack.c.b16 %v5552, %v5548
    %v5685 = vpack.c.b16 %v5553, %v5549
    %v5686 = vpack.c.b16 %v5554, %v5550
    %v5687 = vpack.c.b16 %v5559, %v5555
    %v5688 = vpack.c.b16 %v5560, %v5556
    %v5689 = vpack.c.b16 %v5561, %v5557
    %v5690 = vpack.c.b16 %v5562, %v5558
    %5819 = vmatpush.bf16.msra.mxu0 %v5591
    %5820 = vmatpush.bf16.msra.mxu0 %v5587
    %5821 = vmatpush.bf16.msra.mxu0 %v5583
    %5822 = vmatpush.bf16.msra.mxu0 %v5579
    %5823 = vmatpush.bf16.msra.mxu0 %v5575
    %5824 = vmatpush.bf16.msra.mxu0 %v5571
    %5825 = vmatpush.bf16.msra.mxu0 %v5567
    %5826 = vmatpush.bf16.msra.mxu0 %v5563
    %5827 = vmatmul.bf16.gmra.mxu0 %v5037
    %v5828 = vpop.f32.mrf.mxu0
    %v5829 = vadd.f32 %v5171, %v5828
    %v5830 = vpop.f32.mrf.mxu0
    %v5831 = vadd.f32 %v5171, %v5830
    %5832 = vdwg.mxu0
    %5833 = vmatpush.bf16.msra.mxu0 %v5623
    %5834 = vmatpush.bf16.msra.mxu0 %v5619
    %5835 = vmatpush.bf16.msra.mxu0 %v5615
    %5836 = vmatpush.bf16.msra.mxu0 %v5611
    %5837 = vmatpush.bf16.msra.mxu0 %v5607
    %5838 = vmatpush.bf16.msra.mxu0 %v5603
    %5839 = vmatpush.bf16.msra.mxu0 %v5599
    %5840 = vmatpush.bf16.msra.mxu0 %v5595
    %5841 = vmatmul.bf16.gmra.mxu0 %v5038
    %v5842 = vpop.f32.mrf.mxu0
    %v5843 = vadd.f32 %v5829, %v5842
    %v5844 = vpop.f32.mrf.mxu0
    %v5845 = vadd.f32 %v5831, %v5844
    %5846 = vdwg.mxu0
    %5847 = vmatpush.bf16.msra.mxu0 %v5655
    %5848 = vmatpush.bf16.msra.mxu0 %v5651
    %5849 = vmatpush.bf16.msra.mxu0 %v5647
    %5850 = vmatpush.bf16.msra.mxu0 %v5643
    %5851 = vmatpush.bf16.msra.mxu0 %v5639
    %5852 = vmatpush.bf16.msra.mxu0 %v5635
    %5853 = vmatpush.bf16.msra.mxu0 %v5631
    %5854 = vmatpush.bf16.msra.mxu0 %v5627
    %5855 = vmatmul.bf16.gmra.mxu0 %v5039
    %v5856 = vpop.f32.mrf.mxu0
    %v5857 = vadd.f32 %v5843, %v5856
    %v5858 = vpop.f32.mrf.mxu0
    %v5859 = vadd.f32 %v5845, %v5858
    %5860 = vdwg.mxu0
    %5861 = vmatpush.bf16.msra.mxu0 %v5687
    %5862 = vmatpush.bf16.msra.mxu0 %v5683
    %5863 = vmatpush.bf16.msra.mxu0 %v5679
    %5864 = vmatpush.bf16.msra.mxu0 %v5675
    %5865 = vmatpush.bf16.msra.mxu0 %v5671
    %5866 = vmatpush.bf16.msra.mxu0 %v5667
    %5867 = vmatpush.bf16.msra.mxu0 %v5663
    %5868 = vmatpush.bf16.msra.mxu0 %v5659
    %5869 = vmatmul.bf16.gmra.mxu0 %v5040
    %v5870 = vpop.f32.mrf.mxu0
    %v5871 = vadd.f32 %v5857, %v5870
    %v5872 = vpop.f32.mrf.mxu0
    %v5873 = vadd.f32 %v5859, %v5872
    %5874 = vdwg.mxu0
    %5875 = vmatpush.bf16.msra.mxu0 %v5592
    %5876 = vmatpush.bf16.msra.mxu0 %v5588
    %5877 = vmatpush.bf16.msra.mxu0 %v5584
    %5878 = vmatpush.bf16.msra.mxu0 %v5580
    %5879 = vmatpush.bf16.msra.mxu0 %v5576
    %5880 = vmatpush.bf16.msra.mxu0 %v5572
    %5881 = vmatpush.bf16.msra.mxu0 %v5568
    %5882 = vmatpush.bf16.msra.mxu0 %v5564
    %5883 = vmatmul.bf16.gmra.mxu0 %v5037
    %v5884 = vpop.f32.mrf.mxu0
    %v5885 = vadd.f32 %v5172, %v5884
    %v5886 = vpop.f32.mrf.mxu0
    %v5887 = vadd.f32 %v5172, %v5886
    %5888 = vdwg.mxu0
    %5889 = vmatpush.bf16.msra.mxu0 %v5624
    %5890 = vmatpush.bf16.msra.mxu0 %v5620
    %5891 = vmatpush.bf16.msra.mxu0 %v5616
    %5892 = vmatpush.bf16.msra.mxu0 %v5612
    %5893 = vmatpush.bf16.msra.mxu0 %v5608
    %5894 = vmatpush.bf16.msra.mxu0 %v5604
    %5895 = vmatpush.bf16.msra.mxu0 %v5600
    %5896 = vmatpush.bf16.msra.mxu0 %v5596
    %5897 = vmatmul.bf16.gmra.mxu0 %v5038
    %v5898 = vpop.f32.mrf.mxu0
    %v5899 = vadd.f32 %v5885, %v5898
    %v5900 = vpop.f32.mrf.mxu0
    %v5901 = vadd.f32 %v5887, %v5900
    %5902 = vdwg.mxu0
    %5903 = vmatpush.bf16.msra.mxu0 %v5656
    %5904 = vmatpush.bf16.msra.mxu0 %v5652
    %5905 = vmatpush.bf16.msra.mxu0 %v5648
    %5906 = vmatpush.bf16.msra.mxu0 %v5644
    %5907 = vmatpush.bf16.msra.mxu0 %v5640
    %5908 = vmatpush.bf16.msra.mxu0 %v5636
    %5909 = vmatpush.bf16.msra.mxu0 %v5632
    %5910 = vmatpush.bf16.msra.mxu0 %v5628
    %5911 = vmatmul.bf16.gmra.mxu0 %v5039
    %v5912 = vpop.f32.mrf.mxu0
    %v5913 = vadd.f32 %v5899, %v5912
    %v5914 = vpop.f32.mrf.mxu0
    %v5915 = vadd.f32 %v5901, %v5914
    %5916 = vdwg.mxu0
    %5917 = vmatpush.bf16.msra.mxu0 %v5688
    %5918 = vmatpush.bf16.msra.mxu0 %v5684
    %5919 = vmatpush.bf16.msra.mxu0 %v5680
    %5920 = vmatpush.bf16.msra.mxu0 %v5676
    %5921 = vmatpush.bf16.msra.mxu0 %v5672
    %5922 = vmatpush.bf16.msra.mxu0 %v5668
    %5923 = vmatpush.bf16.msra.mxu0 %v5664
    %5924 = vmatpush.bf16.msra.mxu0 %v5660
    %5925 = vmatmul.bf16.gmra.mxu0 %v5040
    %v5926 = vpop.f32.mrf.mxu0
    %v5927 = vadd.f32 %v5913, %v5926
    %v5928 = vpop.f32.mrf.mxu0
    %v5929 = vadd.f32 %v5915, %v5928
    %5930 = vdwg.mxu0
    %5931 = vmatpush.bf16.msra.mxu0 %v5593
    %5932 = vmatpush.bf16.msra.mxu0 %v5589
    %5933 = vmatpush.bf16.msra.mxu0 %v5585
    %5934 = vmatpush.bf16.msra.mxu0 %v5581
    %5935 = vmatpush.bf16.msra.mxu0 %v5577
    %5936 = vmatpush.bf16.msra.mxu0 %v5573
    %5937 = vmatpush.bf16.msra.mxu0 %v5569
    %5938 = vmatpush.bf16.msra.mxu0 %v5565
    %5939 = vmatmul.bf16.gmra.mxu0 %v5037
    %v5940 = vpop.f32.mrf.mxu0
    %v5941 = vadd.f32 %v5173, %v5940
    %v5942 = vpop.f32.mrf.mxu0
    %v5943 = vadd.f32 %v5173, %v5942
    %5944 = vdwg.mxu0
    %5945 = vmatpush.bf16.msra.mxu0 %v5625
    %5946 = vmatpush.bf16.msra.mxu0 %v5621
    %5947 = vmatpush.bf16.msra.mxu0 %v5617
    %5948 = vmatpush.bf16.msra.mxu0 %v5613
    %5949 = vmatpush.bf16.msra.mxu0 %v5609
    %5950 = vmatpush.bf16.msra.mxu0 %v5605
    %5951 = vmatpush.bf16.msra.mxu0 %v5601
    %5952 = vmatpush.bf16.msra.mxu0 %v5597
    %5953 = vmatmul.bf16.gmra.mxu0 %v5038
    %v5954 = vpop.f32.mrf.mxu0
    %v5955 = vadd.f32 %v5941, %v5954
    %v5956 = vpop.f32.mrf.mxu0
    %v5957 = vadd.f32 %v5943, %v5956
    %5958 = vdwg.mxu0
    %5959 = vmatpush.bf16.msra.mxu0 %v5657
    %5960 = vmatpush.bf16.msra.mxu0 %v5653
    %5961 = vmatpush.bf16.msra.mxu0 %v5649
    %5962 = vmatpush.bf16.msra.mxu0 %v5645
    %5963 = vmatpush.bf16.msra.mxu0 %v5641
    %5964 = vmatpush.bf16.msra.mxu0 %v5637
    %5965 = vmatpush.bf16.msra.mxu0 %v5633
    %5966 = vmatpush.bf16.msra.mxu0 %v5629
    %5967 = vmatmul.bf16.gmra.mxu0 %v5039
    %v5968 = vpop.f32.mrf.mxu0
    %v5969 = vadd.f32 %v5955, %v5968
    %v5970 = vpop.f32.mrf.mxu0
    %v5971 = vadd.f32 %v5957, %v5970
    %5972 = vdwg.mxu0
    %5973 = vmatpush.bf16.msra.mxu0 %v5689
    %5974 = vmatpush.bf16.msra.mxu0 %v5685
    %5975 = vmatpush.bf16.msra.mxu0 %v5681
    %5976 = vmatpush.bf16.msra.mxu0 %v5677
    %5977 = vmatpush.bf16.msra.mxu0 %v5673
    %5978 = vmatpush.bf16.msra.mxu0 %v5669
    %5979 = vmatpush.bf16.msra.mxu0 %v5665
    %5980 = vmatpush.bf16.msra.mxu0 %v5661
    %5981 = vmatmul.bf16.gmra.mxu0 %v5040
    %v5982 = vpop.f32.mrf.mxu0
    %v5983 = vadd.f32 %v5969, %v5982
    %v5984 = vpop.f32.mrf.mxu0
    %v5985 = vadd.f32 %v5971, %v5984
    %5986 = vdwg.mxu0
    %5987 = vmatpush.bf16.msra.mxu0 %v5594
    %5988 = vmatpush.bf16.msra.mxu0 %v5590
    %5989 = vmatpush.bf16.msra.mxu0 %v5586
    %5990 = vmatpush.bf16.msra.mxu0 %v5582
    %5991 = vmatpush.bf16.msra.mxu0 %v5578
    %5992 = vmatpush.bf16.msra.mxu0 %v5574
    %5993 = vmatpush.bf16.msra.mxu0 %v5570
    %5994 = vmatpush.bf16.msra.mxu0 %v5566
    %5995 = vmatmul.bf16.gmra.mxu0 %v5037
    %v5996 = vpop.f32.mrf.mxu0
    %v5997 = vadd.f32 %v5174, %v5996
    %v5998 = vpop.f32.mrf.mxu0
    %v5999 = vadd.f32 %v5174, %v5998
    %6000 = vdwg.mxu0
    %6001 = vmatpush.bf16.msra.mxu0 %v5626
    %6002 = vmatpush.bf16.msra.mxu0 %v5622
    %6003 = vmatpush.bf16.msra.mxu0 %v5618
    %6004 = vmatpush.bf16.msra.mxu0 %v5614
    %6005 = vmatpush.bf16.msra.mxu0 %v5610
    %6006 = vmatpush.bf16.msra.mxu0 %v5606
    %6007 = vmatpush.bf16.msra.mxu0 %v5602
    %6008 = vmatpush.bf16.msra.mxu0 %v5598
    %6009 = vmatmul.bf16.gmra.mxu0 %v5038
    %v6010 = vpop.f32.mrf.mxu0
    %v6011 = vadd.f32 %v5997, %v6010
    %v6012 = vpop.f32.mrf.mxu0
    %v6013 = vadd.f32 %v5999, %v6012
    %6014 = vdwg.mxu0
    %6015 = vmatpush.bf16.msra.mxu0 %v5658
    %6016 = vmatpush.bf16.msra.mxu0 %v5654
    %6017 = vmatpush.bf16.msra.mxu0 %v5650
    %6018 = vmatpush.bf16.msra.mxu0 %v5646
    %6019 = vmatpush.bf16.msra.mxu0 %v5642
    %6020 = vmatpush.bf16.msra.mxu0 %v5638
    %6021 = vmatpush.bf16.msra.mxu0 %v5634
    %6022 = vmatpush.bf16.msra.mxu0 %v5630
    %6023 = vmatmul.bf16.gmra.mxu0 %v5039
    %v6024 = vpop.f32.mrf.mxu0
    %v6025 = vadd.f32 %v6011, %v6024
    %v6026 = vpop.f32.mrf.mxu0
    %v6027 = vadd.f32 %v6013, %v6026
    %6028 = vdwg.mxu0
    %6029 = vmatpush.bf16.msra.mxu0 %v5690
    %6030 = vmatpush.bf16.msra.mxu0 %v5686
    %6031 = vmatpush.bf16.msra.mxu0 %v5682
    %6032 = vmatpush.bf16.msra.mxu0 %v5678
    %6033 = vmatpush.bf16.msra.mxu0 %v5674
    %6034 = vmatpush.bf16.msra.mxu0 %v5670
    %6035 = vmatpush.bf16.msra.mxu0 %v5666
    %6036 = vmatpush.bf16.msra.mxu0 %v5662
    %6037 = vmatmul.bf16.gmra.mxu0 %v5040
    %v6038 = vpop.f32.mrf.mxu0
    %v6039 = vadd.f32 %v6025, %v6038
    %v6040 = vpop.f32.mrf.mxu0
    %v6041 = vadd.f32 %v6027, %v6040
    %6042 = vdwg.mxu0
    %v6043 = vmax.f32 %v5871, 0.0
    %v6044 = vmax.f32 %v5927, 0.0
    %v6045 = vmax.f32 %v5983, 0.0
    %v6046 = vmax.f32 %v6039, 0.0
    %v6047 = vmax.f32 %v5873, 0.0
    %v6048 = vmax.f32 %v5929, 0.0
    %v6049 = vmax.f32 %v5985, 0.0
    %v6050 = vmax.f32 %v6041, 0.0
    %v6051 = vpack.c.bf16 %v6047, %v6043
    %v6052 = vpack.c.bf16 %v6048, %v6044
    %v6053 = vpack.c.bf16 %v6049, %v6045
    %v6054 = vpack.c.bf16 %v6050, %v6046
    %v6055 = vld [vmem:[#allocation10] sm:$0xff]
    %v6056 = vld [vmem:[#allocation10 + $0x8] sm:$0xff]
    %v6057 = vld [vmem:[#allocation10 + $0x10] sm:$0xff]
    %v6058 = vld [vmem:[#allocation10 + $0x18] sm:$0xff]
    %v6059 = vld [vmem:[#allocation10 + $0x20] sm:$0xff]
    %v6060 = vld [vmem:[#allocation10 + $0x28] sm:$0xff]
    %v6061 = vld [vmem:[#allocation10 + $0x30] sm:$0xff]
    %v6062 = vld [vmem:[#allocation10 + $0x38] sm:$0xff]
    %v6063 = vld [vmem:[#allocation10 + $0x40] sm:$0xff]
    %v6064 = vld [vmem:[#allocation10 + $0x48] sm:$0xff]
    %v6065 = vld [vmem:[#allocation10 + $0x50] sm:$0xff]
    %v6066 = vld [vmem:[#allocation10 + $0x58] sm:$0xff]
    %v6067 = vld [vmem:[#allocation10 + $0x60] sm:$0xff]
    %v6068 = vld [vmem:[#allocation10 + $0x68] sm:$0xff]
    %v6069 = vld [vmem:[#allocation10 + $0x70] sm:$0xff]
    %v6070 = vld [vmem:[#allocation10 + $0x78] sm:$0xff]
    %v6071 = vld [vmem:[#allocation10 + $0x80] sm:$0xff]
    %v6072 = vld [vmem:[#allocation10 + $0x88] sm:$0xff]
    %v6073 = vld [vmem:[#allocation10 + $0x90] sm:$0xff]
    %v6074 = vld [vmem:[#allocation10 + $0x98] sm:$0xff]
    %v6075 = vld [vmem:[#allocation10 + $0xa0] sm:$0xff]
    %v6076 = vld [vmem:[#allocation10 + $0xa8] sm:$0xff]
    %v6077 = vld [vmem:[#allocation10 + $0xb0] sm:$0xff]
    %v6078 = vld [vmem:[#allocation10 + $0xb8] sm:$0xff]
    %v6079 = vld [vmem:[#allocation10 + $0xc0] sm:$0xff]
    %v6080 = vld [vmem:[#allocation10 + $0xc8] sm:$0xff]
    %v6081 = vld [vmem:[#allocation10 + $0xd0] sm:$0xff]
    %v6082 = vld [vmem:[#allocation10 + $0xd8] sm:$0xff]
    %v6083 = vld [vmem:[#allocation10 + $0xe0] sm:$0xff]
    %v6084 = vld [vmem:[#allocation10 + $0xe8] sm:$0xff]
    %v6085 = vld [vmem:[#allocation10 + $0xf0] sm:$0xff]
    %v6086 = vld [vmem:[#allocation10 + $0xf8] sm:$0xff]
    %v6087 = vld [vmem:[#allocation10 + $0x100] sm:$0xff]
    %v6088 = vld [vmem:[#allocation10 + $0x108] sm:$0xff]
    %v6089 = vld [vmem:[#allocation10 + $0x110] sm:$0xff]
    %v6090 = vld [vmem:[#allocation10 + $0x118] sm:$0xff]
    %v6091 = vld [vmem:[#allocation10 + $0x120] sm:$0xff]
    %v6092 = vld [vmem:[#allocation10 + $0x128] sm:$0xff]
    %v6093 = vld [vmem:[#allocation10 + $0x130] sm:$0xff]
    %v6094 = vld [vmem:[#allocation10 + $0x138] sm:$0xff]
    %v6095 = vld [vmem:[#allocation10 + $0x140] sm:$0xff]
    %v6096 = vld [vmem:[#allocation10 + $0x148] sm:$0xff]
    %v6097 = vld [vmem:[#allocation10 + $0x150] sm:$0xff]
    %v6098 = vld [vmem:[#allocation10 + $0x158] sm:$0xff]
    %v6099 = vld [vmem:[#allocation10 + $0x160] sm:$0xff]
    %v6100 = vld [vmem:[#allocation10 + $0x168] sm:$0xff]
    %v6101 = vld [vmem:[#allocation10 + $0x170] sm:$0xff]
    %v6102 = vld [vmem:[#allocation10 + $0x178] sm:$0xff]
    %v6103 = vld [vmem:[#allocation10 + $0x180] sm:$0xff]
    %v6104 = vld [vmem:[#allocation10 + $0x188] sm:$0xff]
    %v6105 = vld [vmem:[#allocation10 + $0x190] sm:$0xff]
    %v6106 = vld [vmem:[#allocation10 + $0x198] sm:$0xff]
    %v6107 = vld [vmem:[#allocation10 + $0x1a0] sm:$0xff]
    %v6108 = vld [vmem:[#allocation10 + $0x1a8] sm:$0xff]
    %v6109 = vld [vmem:[#allocation10 + $0x1b0] sm:$0xff]
    %v6110 = vld [vmem:[#allocation10 + $0x1b8] sm:$0xff]
    %v6111 = vld [vmem:[#allocation10 + $0x1c0] sm:$0xff]
    %v6112 = vld [vmem:[#allocation10 + $0x1c8] sm:$0xff]
    %v6113 = vld [vmem:[#allocation10 + $0x1d0] sm:$0xff]
    %v6114 = vld [vmem:[#allocation10 + $0x1d8] sm:$0xff]
    %v6115 = vld [vmem:[#allocation10 + $0x1e0] sm:$0xff]
    %v6116 = vld [vmem:[#allocation10 + $0x1e8] sm:$0xff]
    %v6117 = vld [vmem:[#allocation10 + $0x1f0] sm:$0xff]
    %v6118 = vld [vmem:[#allocation10 + $0x1f8] sm:$0xff]
    %v6119 = vld [vmem:[#allocation10 + $0x200] sm:$0xff]
    %v6120 = vld [vmem:[#allocation10 + $0x208] sm:$0xff]
    %v6121 = vld [vmem:[#allocation10 + $0x210] sm:$0xff]
    %v6122 = vld [vmem:[#allocation10 + $0x218] sm:$0xff]
    %v6123 = vld [vmem:[#allocation10 + $0x220] sm:$0xff]
    %v6124 = vld [vmem:[#allocation10 + $0x228] sm:$0xff]
    %v6125 = vld [vmem:[#allocation10 + $0x230] sm:$0xff]
    %v6126 = vld [vmem:[#allocation10 + $0x238] sm:$0xff]
    %v6127 = vld [vmem:[#allocation10 + $0x240] sm:$0xff]
    %v6128 = vld [vmem:[#allocation10 + $0x248] sm:$0xff]
    %v6129 = vld [vmem:[#allocation10 + $0x250] sm:$0xff]
    %v6130 = vld [vmem:[#allocation10 + $0x258] sm:$0xff]
    %v6131 = vld [vmem:[#allocation10 + $0x260] sm:$0xff]
    %v6132 = vld [vmem:[#allocation10 + $0x268] sm:$0xff]
    %v6133 = vld [vmem:[#allocation10 + $0x270] sm:$0xff]
    %v6134 = vld [vmem:[#allocation10 + $0x278] sm:$0xff]
    %v6135 = vld [vmem:[#allocation10 + $0x280] sm:$0xff]
    %v6136 = vld [vmem:[#allocation10 + $0x288] sm:$0xff]
    %v6137 = vld [vmem:[#allocation10 + $0x290] sm:$0xff]
    %v6138 = vld [vmem:[#allocation10 + $0x298] sm:$0xff]
    %v6139 = vld [vmem:[#allocation10 + $0x2a0] sm:$0xff]
    %v6140 = vld [vmem:[#allocation10 + $0x2a8] sm:$0xff]
    %v6141 = vld [vmem:[#allocation10 + $0x2b0] sm:$0xff]
    %v6142 = vld [vmem:[#allocation10 + $0x2b8] sm:$0xff]
    %v6143 = vld [vmem:[#allocation10 + $0x2c0] sm:$0xff]
    %v6144 = vld [vmem:[#allocation10 + $0x2c8] sm:$0xff]
    %v6145 = vld [vmem:[#allocation10 + $0x2d0] sm:$0xff]
    %v6146 = vld [vmem:[#allocation10 + $0x2d8] sm:$0xff]
    %v6147 = vld [vmem:[#allocation10 + $0x2e0] sm:$0xff]
    %v6148 = vld [vmem:[#allocation10 + $0x2e8] sm:$0xff]
    %v6149 = vld [vmem:[#allocation10 + $0x2f0] sm:$0xff]
    %v6150 = vld [vmem:[#allocation10 + $0x2f8] sm:$0xff]
    %v6151 = vld [vmem:[#allocation10 + $0x300] sm:$0xff]
    %v6152 = vld [vmem:[#allocation10 + $0x308] sm:$0xff]
    %v6153 = vld [vmem:[#allocation10 + $0x310] sm:$0xff]
    %v6154 = vld [vmem:[#allocation10 + $0x318] sm:$0xff]
    %v6155 = vld [vmem:[#allocation10 + $0x320] sm:$0xff]
    %v6156 = vld [vmem:[#allocation10 + $0x328] sm:$0xff]
    %v6157 = vld [vmem:[#allocation10 + $0x330] sm:$0xff]
    %v6158 = vld [vmem:[#allocation10 + $0x338] sm:$0xff]
    %v6159 = vld [vmem:[#allocation10 + $0x340] sm:$0xff]
    %v6160 = vld [vmem:[#allocation10 + $0x348] sm:$0xff]
    %v6161 = vld [vmem:[#allocation10 + $0x350] sm:$0xff]
    %v6162 = vld [vmem:[#allocation10 + $0x358] sm:$0xff]
    %v6163 = vld [vmem:[#allocation10 + $0x360] sm:$0xff]
    %v6164 = vld [vmem:[#allocation10 + $0x368] sm:$0xff]
    %v6165 = vld [vmem:[#allocation10 + $0x370] sm:$0xff]
    %v6166 = vld [vmem:[#allocation10 + $0x378] sm:$0xff]
    %v6167 = vld [vmem:[#allocation10 + $0x380] sm:$0xff]
    %v6168 = vld [vmem:[#allocation10 + $0x388] sm:$0xff]
    %v6169 = vld [vmem:[#allocation10 + $0x390] sm:$0xff]
    %v6170 = vld [vmem:[#allocation10 + $0x398] sm:$0xff]
    %v6171 = vld [vmem:[#allocation10 + $0x3a0] sm:$0xff]
    %v6172 = vld [vmem:[#allocation10 + $0x3a8] sm:$0xff]
    %v6173 = vld [vmem:[#allocation10 + $0x3b0] sm:$0xff]
    %v6174 = vld [vmem:[#allocation10 + $0x3b8] sm:$0xff]
    %v6175 = vld [vmem:[#allocation10 + $0x3c0] sm:$0xff]
    %v6176 = vld [vmem:[#allocation10 + $0x3c8] sm:$0xff]
    %v6177 = vld [vmem:[#allocation10 + $0x3d0] sm:$0xff]
    %v6178 = vld [vmem:[#allocation10 + $0x3d8] sm:$0xff]
    %v6179 = vld [vmem:[#allocation10 + $0x3e0] sm:$0xff]
    %v6180 = vld [vmem:[#allocation10 + $0x3e8] sm:$0xff]
    %v6181 = vld [vmem:[#allocation10 + $0x3f0] sm:$0xff]
    %v6182 = vld [vmem:[#allocation10 + $0x3f8] sm:$0xff]
    %v6183 = vld [vmem:[%s18] sm:$0xf]
    %v6185 = vperm.slane %v6183, 0
    %v6186 = vperm.slane %v6183, 1
    %v6187 = vperm.slane %v6183, 2
    %v6188 = vperm.slane %v6183, 3
    %v6321 = vunpack.c.l.b16 %v6055
    %v6322 = vunpack.c.h.b16 %v6055
    %v6323 = vunpack.c.l.b16 %v6056
    %v6324 = vunpack.c.h.b16 %v6056
    %v6325 = vunpack.c.l.b16 %v6057
    %v6326 = vunpack.c.h.b16 %v6057
    %v6327 = vunpack.c.l.b16 %v6058
    %v6328 = vunpack.c.h.b16 %v6058
    %v6329 = vunpack.c.l.b16 %v6059
    %v6330 = vunpack.c.h.b16 %v6059
    %v6331 = vunpack.c.l.b16 %v6060
    %v6332 = vunpack.c.h.b16 %v6060
    %v6333 = vunpack.c.l.b16 %v6061
    %v6334 = vunpack.c.h.b16 %v6061
    %v6335 = vunpack.c.l.b16 %v6062
    %v6336 = vunpack.c.h.b16 %v6062
    %v6337 = vunpack.c.l.b16 %v6063
    %v6338 = vunpack.c.h.b16 %v6063
    %v6339 = vunpack.c.l.b16 %v6064
    %v6340 = vunpack.c.h.b16 %v6064
    %v6341 = vunpack.c.l.b16 %v6065
    %v6342 = vunpack.c.h.b16 %v6065
    %v6343 = vunpack.c.l.b16 %v6066
    %v6344 = vunpack.c.h.b16 %v6066
    %v6345 = vunpack.c.l.b16 %v6067
    %v6346 = vunpack.c.h.b16 %v6067
    %v6347 = vunpack.c.l.b16 %v6068
    %v6348 = vunpack.c.h.b16 %v6068
    %v6349 = vunpack.c.l.b16 %v6069
    %v6350 = vunpack.c.h.b16 %v6069
    %v6351 = vunpack.c.l.b16 %v6070
    %v6352 = vunpack.c.h.b16 %v6070
    %v6353 = vunpack.c.l.b16 %v6071
    %v6354 = vunpack.c.h.b16 %v6071
    %v6355 = vunpack.c.l.b16 %v6072
    %v6356 = vunpack.c.h.b16 %v6072
    %v6357 = vunpack.c.l.b16 %v6073
    %v6358 = vunpack.c.h.b16 %v6073
    %v6359 = vunpack.c.l.b16 %v6074
    %v6360 = vunpack.c.h.b16 %v6074
    %v6361 = vunpack.c.l.b16 %v6075
    %v6362 = vunpack.c.h.b16 %v6075
    %v6363 = vunpack.c.l.b16 %v6076
    %v6364 = vunpack.c.h.b16 %v6076
    %v6365 = vunpack.c.l.b16 %v6077
    %v6366 = vunpack.c.h.b16 %v6077
    %v6367 = vunpack.c.l.b16 %v6078
    %v6368 = vunpack.c.h.b16 %v6078
    %v6369 = vunpack.c.l.b16 %v6079
    %v6370 = vunpack.c.h.b16 %v6079
    %v6371 = vunpack.c.l.b16 %v6080
    %v6372 = vunpack.c.h.b16 %v6080
    %v6373 = vunpack.c.l.b16 %v6081
    %v6374 = vunpack.c.h.b16 %v6081
    %v6375 = vunpack.c.l.b16 %v6082
    %v6376 = vunpack.c.h.b16 %v6082
    %v6377 = vunpack.c.l.b16 %v6083
    %v6378 = vunpack.c.h.b16 %v6083
    %v6379 = vunpack.c.l.b16 %v6084
    %v6380 = vunpack.c.h.b16 %v6084
    %v6381 = vunpack.c.l.b16 %v6085
    %v6382 = vunpack.c.h.b16 %v6085
    %v6383 = vunpack.c.l.b16 %v6086
    %v6384 = vunpack.c.h.b16 %v6086
    %v6385 = vunpack.c.l.b16 %v6087
    %v6386 = vunpack.c.h.b16 %v6087
    %v6387 = vunpack.c.l.b16 %v6088
    %v6388 = vunpack.c.h.b16 %v6088
    %v6389 = vunpack.c.l.b16 %v6089
    %v6390 = vunpack.c.h.b16 %v6089
    %v6391 = vunpack.c.l.b16 %v6090
    %v6392 = vunpack.c.h.b16 %v6090
    %v6393 = vunpack.c.l.b16 %v6091
    %v6394 = vunpack.c.h.b16 %v6091
    %v6395 = vunpack.c.l.b16 %v6092
    %v6396 = vunpack.c.h.b16 %v6092
    %v6397 = vunpack.c.l.b16 %v6093
    %v6398 = vunpack.c.h.b16 %v6093
    %v6399 = vunpack.c.l.b16 %v6094
    %v6400 = vunpack.c.h.b16 %v6094
    %v6401 = vunpack.c.l.b16 %v6095
    %v6402 = vunpack.c.h.b16 %v6095
    %v6403 = vunpack.c.l.b16 %v6096
    %v6404 = vunpack.c.h.b16 %v6096
    %v6405 = vunpack.c.l.b16 %v6097
    %v6406 = vunpack.c.h.b16 %v6097
    %v6407 = vunpack.c.l.b16 %v6098
    %v6408 = vunpack.c.h.b16 %v6098
    %v6409 = vunpack.c.l.b16 %v6099
    %v6410 = vunpack.c.h.b16 %v6099
    %v6411 = vunpack.c.l.b16 %v6100
    %v6412 = vunpack.c.h.b16 %v6100
    %v6413 = vunpack.c.l.b16 %v6101
    %v6414 = vunpack.c.h.b16 %v6101
    %v6415 = vunpack.c.l.b16 %v6102
    %v6416 = vunpack.c.h.b16 %v6102
    %v6417 = vunpack.c.l.b16 %v6103
    %v6418 = vunpack.c.h.b16 %v6103
    %v6419 = vunpack.c.l.b16 %v6104
    %v6420 = vunpack.c.h.b16 %v6104
    %v6421 = vunpack.c.l.b16 %v6105
    %v6422 = vunpack.c.h.b16 %v6105
    %v6423 = vunpack.c.l.b16 %v6106
    %v6424 = vunpack.c.h.b16 %v6106
    %v6425 = vunpack.c.l.b16 %v6107
    %v6426 = vunpack.c.h.b16 %v6107
    %v6427 = vunpack.c.l.b16 %v6108
    %v6428 = vunpack.c.h.b16 %v6108
    %v6429 = vunpack.c.l.b16 %v6109
    %v6430 = vunpack.c.h.b16 %v6109
    %v6431 = vunpack.c.l.b16 %v6110
    %v6432 = vunpack.c.h.b16 %v6110
    %v6433 = vunpack.c.l.b16 %v6111
    %v6434 = vunpack.c.h.b16 %v6111
    %v6435 = vunpack.c.l.b16 %v6112
    %v6436 = vunpack.c.h.b16 %v6112
    %v6437 = vunpack.c.l.b16 %v6113
    %v6438 = vunpack.c.h.b16 %v6113
    %v6439 = vunpack.c.l.b16 %v6114
    %v6440 = vunpack.c.h.b16 %v6114
    %v6441 = vunpack.c.l.b16 %v6115
    %v6442 = vunpack.c.h.b16 %v6115
    %v6443 = vunpack.c.l.b16 %v6116
    %v6444 = vunpack.c.h.b16 %v6116
    %v6445 = vunpack.c.l.b16 %v6117
    %v6446 = vunpack.c.h.b16 %v6117
    %v6447 = vunpack.c.l.b16 %v6118
    %v6448 = vunpack.c.h.b16 %v6118
    %v6449 = vunpack.c.l.b16 %v6119
    %v6450 = vunpack.c.h.b16 %v6119
    %v6451 = vunpack.c.l.b16 %v6120
    %v6452 = vunpack.c.h.b16 %v6120
    %v6453 = vunpack.c.l.b16 %v6121
    %v6454 = vunpack.c.h.b16 %v6121
    %v6455 = vunpack.c.l.b16 %v6122
    %v6456 = vunpack.c.h.b16 %v6122
    %v6457 = vunpack.c.l.b16 %v6123
    %v6458 = vunpack.c.h.b16 %v6123
    %v6459 = vunpack.c.l.b16 %v6124
    %v6460 = vunpack.c.h.b16 %v6124
    %v6461 = vunpack.c.l.b16 %v6125
    %v6462 = vunpack.c.h.b16 %v6125
    %v6463 = vunpack.c.l.b16 %v6126
    %v6464 = vunpack.c.h.b16 %v6126
    %v6465 = vunpack.c.l.b16 %v6127
    %v6466 = vunpack.c.h.b16 %v6127
    %v6467 = vunpack.c.l.b16 %v6128
    %v6468 = vunpack.c.h.b16 %v6128
    %v6469 = vunpack.c.l.b16 %v6129
    %v6470 = vunpack.c.h.b16 %v6129
    %v6471 = vunpack.c.l.b16 %v6130
    %v6472 = vunpack.c.h.b16 %v6130
    %v6473 = vunpack.c.l.b16 %v6131
    %v6474 = vunpack.c.h.b16 %v6131
    %v6475 = vunpack.c.l.b16 %v6132
    %v6476 = vunpack.c.h.b16 %v6132
    %v6477 = vunpack.c.l.b16 %v6133
    %v6478 = vunpack.c.h.b16 %v6133
    %v6479 = vunpack.c.l.b16 %v6134
    %v6480 = vunpack.c.h.b16 %v6134
    %v6481 = vunpack.c.l.b16 %v6135
    %v6482 = vunpack.c.h.b16 %v6135
    %v6483 = vunpack.c.l.b16 %v6136
    %v6484 = vunpack.c.h.b16 %v6136
    %v6485 = vunpack.c.l.b16 %v6137
    %v6486 = vunpack.c.h.b16 %v6137
    %v6487 = vunpack.c.l.b16 %v6138
    %v6488 = vunpack.c.h.b16 %v6138
    %v6489 = vunpack.c.l.b16 %v6139
    %v6490 = vunpack.c.h.b16 %v6139
    %v6491 = vunpack.c.l.b16 %v6140
    %v6492 = vunpack.c.h.b16 %v6140
    %v6493 = vunpack.c.l.b16 %v6141
    %v6494 = vunpack.c.h.b16 %v6141
    %v6495 = vunpack.c.l.b16 %v6142
    %v6496 = vunpack.c.h.b16 %v6142
    %v6497 = vunpack.c.l.b16 %v6143
    %v6498 = vunpack.c.h.b16 %v6143
    %v6499 = vunpack.c.l.b16 %v6144
    %v6500 = vunpack.c.h.b16 %v6144
    %v6501 = vunpack.c.l.b16 %v6145
    %v6502 = vunpack.c.h.b16 %v6145
    %v6503 = vunpack.c.l.b16 %v6146
    %v6504 = vunpack.c.h.b16 %v6146
    %v6505 = vunpack.c.l.b16 %v6147
    %v6506 = vunpack.c.h.b16 %v6147
    %v6507 = vunpack.c.l.b16 %v6148
    %v6508 = vunpack.c.h.b16 %v6148
    %v6509 = vunpack.c.l.b16 %v6149
    %v6510 = vunpack.c.h.b16 %v6149
    %v6511 = vunpack.c.l.b16 %v6150
    %v6512 = vunpack.c.h.b16 %v6150
    %v6513 = vunpack.c.l.b16 %v6151
    %v6514 = vunpack.c.h.b16 %v6151
    %v6515 = vunpack.c.l.b16 %v6152
    %v6516 = vunpack.c.h.b16 %v6152
    %v6517 = vunpack.c.l.b16 %v6153
    %v6518 = vunpack.c.h.b16 %v6153
    %v6519 = vunpack.c.l.b16 %v6154
    %v6520 = vunpack.c.h.b16 %v6154
    %v6521 = vunpack.c.l.b16 %v6155
    %v6522 = vunpack.c.h.b16 %v6155
    %v6523 = vunpack.c.l.b16 %v6156
    %v6524 = vunpack.c.h.b16 %v6156
    %v6525 = vunpack.c.l.b16 %v6157
    %v6526 = vunpack.c.h.b16 %v6157
    %v6527 = vunpack.c.l.b16 %v6158
    %v6528 = vunpack.c.h.b16 %v6158
    %v6529 = vunpack.c.l.b16 %v6159
    %v6530 = vunpack.c.h.b16 %v6159
    %v6531 = vunpack.c.l.b16 %v6160
    %v6532 = vunpack.c.h.b16 %v6160
    %v6533 = vunpack.c.l.b16 %v6161
    %v6534 = vunpack.c.h.b16 %v6161
    %v6535 = vunpack.c.l.b16 %v6162
    %v6536 = vunpack.c.h.b16 %v6162
    %v6537 = vunpack.c.l.b16 %v6163
    %v6538 = vunpack.c.h.b16 %v6163
    %v6539 = vunpack.c.l.b16 %v6164
    %v6540 = vunpack.c.h.b16 %v6164
    %v6541 = vunpack.c.l.b16 %v6165
    %v6542 = vunpack.c.h.b16 %v6165
    %v6543 = vunpack.c.l.b16 %v6166
    %v6544 = vunpack.c.h.b16 %v6166
    %v6545 = vunpack.c.l.b16 %v6167
    %v6546 = vunpack.c.h.b16 %v6167
    %v6547 = vunpack.c.l.b16 %v6168
    %v6548 = vunpack.c.h.b16 %v6168
    %v6549 = vunpack.c.l.b16 %v6169
    %v6550 = vunpack.c.h.b16 %v6169
    %v6551 = vunpack.c.l.b16 %v6170
    %v6552 = vunpack.c.h.b16 %v6170
    %v6553 = vunpack.c.l.b16 %v6171
    %v6554 = vunpack.c.h.b16 %v6171
    %v6555 = vunpack.c.l.b16 %v6172
    %v6556 = vunpack.c.h.b16 %v6172
    %v6557 = vunpack.c.l.b16 %v6173
    %v6558 = vunpack.c.h.b16 %v6173
    %v6559 = vunpack.c.l.b16 %v6174
    %v6560 = vunpack.c.h.b16 %v6174
    %v6561 = vunpack.c.l.b16 %v6175
    %v6562 = vunpack.c.h.b16 %v6175
    %v6563 = vunpack.c.l.b16 %v6176
    %v6564 = vunpack.c.h.b16 %v6176
    %v6565 = vunpack.c.l.b16 %v6177
    %v6566 = vunpack.c.h.b16 %v6177
    %v6567 = vunpack.c.l.b16 %v6178
    %v6568 = vunpack.c.h.b16 %v6178
    %v6569 = vunpack.c.l.b16 %v6179
    %v6570 = vunpack.c.h.b16 %v6179
    %v6571 = vunpack.c.l.b16 %v6180
    %v6572 = vunpack.c.h.b16 %v6180
    %v6573 = vunpack.c.l.b16 %v6181
    %v6574 = vunpack.c.h.b16 %v6181
    %v6575 = vunpack.c.l.b16 %v6182
    %v6576 = vunpack.c.h.b16 %v6182
    %v6577 = vpack.c.b16 %v6325, %v6321
    %v6578 = vpack.c.b16 %v6326, %v6322
    %v6579 = vpack.c.b16 %v6327, %v6323
    %v6580 = vpack.c.b16 %v6328, %v6324
    %v6581 = vpack.c.b16 %v6333, %v6329
    %v6582 = vpack.c.b16 %v6334, %v6330
    %v6583 = vpack.c.b16 %v6335, %v6331
    %v6584 = vpack.c.b16 %v6336, %v6332
    %v6585 = vpack.c.b16 %v6341, %v6337
    %v6586 = vpack.c.b16 %v6342, %v6338
    %v6587 = vpack.c.b16 %v6343, %v6339
    %v6588 = vpack.c.b16 %v6344, %v6340
    %v6589 = vpack.c.b16 %v6349, %v6345
    %v6590 = vpack.c.b16 %v6350, %v6346
    %v6591 = vpack.c.b16 %v6351, %v6347
    %v6592 = vpack.c.b16 %v6352, %v6348
    %v6593 = vpack.c.b16 %v6357, %v6353
    %v6594 = vpack.c.b16 %v6358, %v6354
    %v6595 = vpack.c.b16 %v6359, %v6355
    %v6596 = vpack.c.b16 %v6360, %v6356
    %v6597 = vpack.c.b16 %v6365, %v6361
    %v6598 = vpack.c.b16 %v6366, %v6362
    %v6599 = vpack.c.b16 %v6367, %v6363
    %v6600 = vpack.c.b16 %v6368, %v6364
    %v6601 = vpack.c.b16 %v6373, %v6369
    %v6602 = vpack.c.b16 %v6374, %v6370
    %v6603 = vpack.c.b16 %v6375, %v6371
    %v6604 = vpack.c.b16 %v6376, %v6372
    %v6605 = vpack.c.b16 %v6381, %v6377
    %v6606 = vpack.c.b16 %v6382, %v6378
    %v6607 = vpack.c.b16 %v6383, %v6379
    %v6608 = vpack.c.b16 %v6384, %v6380
    %v6609 = vpack.c.b16 %v6389, %v6385
    %v6610 = vpack.c.b16 %v6390, %v6386
    %v6611 = vpack.c.b16 %v6391, %v6387
    %v6612 = vpack.c.b16 %v6392, %v6388
    %v6613 = vpack.c.b16 %v6397, %v6393
    %v6614 = vpack.c.b16 %v6398, %v6394
    %v6615 = vpack.c.b16 %v6399, %v6395
    %v6616 = vpack.c.b16 %v6400, %v6396
    %v6617 = vpack.c.b16 %v6405, %v6401
    %v6618 = vpack.c.b16 %v6406, %v6402
    %v6619 = vpack.c.b16 %v6407, %v6403
    %v6620 = vpack.c.b16 %v6408, %v6404
    %v6621 = vpack.c.b16 %v6413, %v6409
    %v6622 = vpack.c.b16 %v6414, %v6410
    %v6623 = vpack.c.b16 %v6415, %v6411
    %v6624 = vpack.c.b16 %v6416, %v6412
    %v6625 = vpack.c.b16 %v6421, %v6417
    %v6626 = vpack.c.b16 %v6422, %v6418
    %v6627 = vpack.c.b16 %v6423, %v6419
    %v6628 = vpack.c.b16 %v6424, %v6420
    %v6629 = vpack.c.b16 %v6429, %v6425
    %v6630 = vpack.c.b16 %v6430, %v6426
    %v6631 = vpack.c.b16 %v6431, %v6427
    %v6632 = vpack.c.b16 %v6432, %v6428
    %v6633 = vpack.c.b16 %v6437, %v6433
    %v6634 = vpack.c.b16 %v6438, %v6434
    %v6635 = vpack.c.b16 %v6439, %v6435
    %v6636 = vpack.c.b16 %v6440, %v6436
    %v6637 = vpack.c.b16 %v6445, %v6441
    %v6638 = vpack.c.b16 %v6446, %v6442
    %v6639 = vpack.c.b16 %v6447, %v6443
    %v6640 = vpack.c.b16 %v6448, %v6444
    %v6641 = vpack.c.b16 %v6453, %v6449
    %v6642 = vpack.c.b16 %v6454, %v6450
    %v6643 = vpack.c.b16 %v6455, %v6451
    %v6644 = vpack.c.b16 %v6456, %v6452
    %v6645 = vpack.c.b16 %v6461, %v6457
    %v6646 = vpack.c.b16 %v6462, %v6458
    %v6647 = vpack.c.b16 %v6463, %v6459
    %v6648 = vpack.c.b16 %v6464, %v6460
    %v6649 = vpack.c.b16 %v6469, %v6465
    %v6650 = vpack.c.b16 %v6470, %v6466
    %v6651 = vpack.c.b16 %v6471, %v6467
    %v6652 = vpack.c.b16 %v6472, %v6468
    %v6653 = vpack.c.b16 %v6477, %v6473
    %v6654 = vpack.c.b16 %v6478, %v6474
    %v6655 = vpack.c.b16 %v6479, %v6475
    %v6656 = vpack.c.b16 %v6480, %v6476
    %v6657 = vpack.c.b16 %v6485, %v6481
    %v6658 = vpack.c.b16 %v6486, %v6482
    %v6659 = vpack.c.b16 %v6487, %v6483
    %v6660 = vpack.c.b16 %v6488, %v6484
    %v6661 = vpack.c.b16 %v6493, %v6489
    %v6662 = vpack.c.b16 %v6494, %v6490
    %v6663 = vpack.c.b16 %v6495, %v6491
    %v6664 = vpack.c.b16 %v6496, %v6492
    %v6665 = vpack.c.b16 %v6501, %v6497
    %v6666 = vpack.c.b16 %v6502, %v6498
    %v6667 = vpack.c.b16 %v6503, %v6499
    %v6668 = vpack.c.b16 %v6504, %v6500
    %v6669 = vpack.c.b16 %v6509, %v6505
    %v6670 = vpack.c.b16 %v6510, %v6506
    %v6671 = vpack.c.b16 %v6511, %v6507
    %v6672 = vpack.c.b16 %v6512, %v6508
    %v6673 = vpack.c.b16 %v6517, %v6513
    %v6674 = vpack.c.b16 %v6518, %v6514
    %v6675 = vpack.c.b16 %v6519, %v6515
    %v6676 = vpack.c.b16 %v6520, %v6516
    %v6677 = vpack.c.b16 %v6525, %v6521
    %v6678 = vpack.c.b16 %v6526, %v6522
    %v6679 = vpack.c.b16 %v6527, %v6523
    %v6680 = vpack.c.b16 %v6528, %v6524
    %v6681 = vpack.c.b16 %v6533, %v6529
    %v6682 = vpack.c.b16 %v6534, %v6530
    %v6683 = vpack.c.b16 %v6535, %v6531
    %v6684 = vpack.c.b16 %v6536, %v6532
    %v6685 = vpack.c.b16 %v6541, %v6537
    %v6686 = vpack.c.b16 %v6542, %v6538
    %v6687 = vpack.c.b16 %v6543, %v6539
    %v6688 = vpack.c.b16 %v6544, %v6540
    %v6689 = vpack.c.b16 %v6549, %v6545
    %v6690 = vpack.c.b16 %v6550, %v6546
    %v6691 = vpack.c.b16 %v6551, %v6547
    %v6692 = vpack.c.b16 %v6552, %v6548
    %v6693 = vpack.c.b16 %v6557, %v6553
    %v6694 = vpack.c.b16 %v6558, %v6554
    %v6695 = vpack.c.b16 %v6559, %v6555
    %v6696 = vpack.c.b16 %v6560, %v6556
    %v6697 = vpack.c.b16 %v6565, %v6561
    %v6698 = vpack.c.b16 %v6566, %v6562
    %v6699 = vpack.c.b16 %v6567, %v6563
    %v6700 = vpack.c.b16 %v6568, %v6564
    %v6701 = vpack.c.b16 %v6573, %v6569
    %v6702 = vpack.c.b16 %v6574, %v6570
    %v6703 = vpack.c.b16 %v6575, %v6571
    %v6704 = vpack.c.b16 %v6576, %v6572
    %6833 = vmatpush.bf16.msra.mxu0 %v6605
    %6834 = vmatpush.bf16.msra.mxu0 %v6601
    %6835 = vmatpush.bf16.msra.mxu0 %v6597
    %6836 = vmatpush.bf16.msra.mxu0 %v6593
    %6837 = vmatpush.bf16.msra.mxu0 %v6589
    %6838 = vmatpush.bf16.msra.mxu0 %v6585
    %6839 = vmatpush.bf16.msra.mxu0 %v6581
    %6840 = vmatpush.bf16.msra.mxu0 %v6577
    %6841 = vmatmul.bf16.gmra.mxu0 %v6051
    %v6842 = vpop.f32.mrf.mxu0
    %v6843 = vadd.f32 %v6185, %v6842
    %v6844 = vpop.f32.mrf.mxu0
    %v6845 = vadd.f32 %v6185, %v6844
    %6846 = vdwg.mxu0
    %6847 = vmatpush.bf16.msra.mxu0 %v6637
    %6848 = vmatpush.bf16.msra.mxu0 %v6633
    %6849 = vmatpush.bf16.msra.mxu0 %v6629
    %6850 = vmatpush.bf16.msra.mxu0 %v6625
    %6851 = vmatpush.bf16.msra.mxu0 %v6621
    %6852 = vmatpush.bf16.msra.mxu0 %v6617
    %6853 = vmatpush.bf16.msra.mxu0 %v6613
    %6854 = vmatpush.bf16.msra.mxu0 %v6609
    %6855 = vmatmul.bf16.gmra.mxu0 %v6052
    %v6856 = vpop.f32.mrf.mxu0
    %v6857 = vadd.f32 %v6843, %v6856
    %v6858 = vpop.f32.mrf.mxu0
    %v6859 = vadd.f32 %v6845, %v6858
    %6860 = vdwg.mxu0
    %6861 = vmatpush.bf16.msra.mxu0 %v6669
    %6862 = vmatpush.bf16.msra.mxu0 %v6665
    %6863 = vmatpush.bf16.msra.mxu0 %v6661
    %6864 = vmatpush.bf16.msra.mxu0 %v6657
    %6865 = vmatpush.bf16.msra.mxu0 %v6653
    %6866 = vmatpush.bf16.msra.mxu0 %v6649
    %6867 = vmatpush.bf16.msra.mxu0 %v6645
    %6868 = vmatpush.bf16.msra.mxu0 %v6641
    %6869 = vmatmul.bf16.gmra.mxu0 %v6053
    %v6870 = vpop.f32.mrf.mxu0
    %v6871 = vadd.f32 %v6857, %v6870
    %v6872 = vpop.f32.mrf.mxu0
    %v6873 = vadd.f32 %v6859, %v6872
    %6874 = vdwg.mxu0
    %6875 = vmatpush.bf16.msra.mxu0 %v6701
    %6876 = vmatpush.bf16.msra.mxu0 %v6697
    %6877 = vmatpush.bf16.msra.mxu0 %v6693
    %6878 = vmatpush.bf16.msra.mxu0 %v6689
    %6879 = vmatpush.bf16.msra.mxu0 %v6685
    %6880 = vmatpush.bf16.msra.mxu0 %v6681
    %6881 = vmatpush.bf16.msra.mxu0 %v6677
    %6882 = vmatpush.bf16.msra.mxu0 %v6673
    %6883 = vmatmul.bf16.gmra.mxu0 %v6054
    %v6884 = vpop.f32.mrf.mxu0
    %v6885 = vadd.f32 %v6871, %v6884
    %v6886 = vpop.f32.mrf.mxu0
    %v6887 = vadd.f32 %v6873, %v6886
    %6888 = vdwg.mxu0
    %6889 = vmatpush.bf16.msra.mxu0 %v6606
    %6890 = vmatpush.bf16.msra.mxu0 %v6602
    %6891 = vmatpush.bf16.msra.mxu0 %v6598
    %6892 = vmatpush.bf16.msra.mxu0 %v6594
    %6893 = vmatpush.bf16.msra.mxu0 %v6590
    %6894 = vmatpush.bf16.msra.mxu0 %v6586
    %6895 = vmatpush.bf16.msra.mxu0 %v6582
    %6896 = vmatpush.bf16.msra.mxu0 %v6578
    %6897 = vmatmul.bf16.gmra.mxu0 %v6051
    %v6898 = vpop.f32.mrf.mxu0
    %v6899 = vadd.f32 %v6186, %v6898
    %v6900 = vpop.f32.mrf.mxu0
    %v6901 = vadd.f32 %v6186, %v6900
    %6902 = vdwg.mxu0
    %6903 = vmatpush.bf16.msra.mxu0 %v6638
    %6904 = vmatpush.bf16.msra.mxu0 %v6634
    %6905 = vmatpush.bf16.msra.mxu0 %v6630
    %6906 = vmatpush.bf16.msra.mxu0 %v6626
    %6907 = vmatpush.bf16.msra.mxu0 %v6622
    %6908 = vmatpush.bf16.msra.mxu0 %v6618
    %6909 = vmatpush.bf16.msra.mxu0 %v6614
    %6910 = vmatpush.bf16.msra.mxu0 %v6610
    %6911 = vmatmul.bf16.gmra.mxu0 %v6052
    %v6912 = vpop.f32.mrf.mxu0
    %v6913 = vadd.f32 %v6899, %v6912
    %v6914 = vpop.f32.mrf.mxu0
    %v6915 = vadd.f32 %v6901, %v6914
    %6916 = vdwg.mxu0
    %6917 = vmatpush.bf16.msra.mxu0 %v6670
    %6918 = vmatpush.bf16.msra.mxu0 %v6666
    %6919 = vmatpush.bf16.msra.mxu0 %v6662
    %6920 = vmatpush.bf16.msra.mxu0 %v6658
    %6921 = vmatpush.bf16.msra.mxu0 %v6654
    %6922 = vmatpush.bf16.msra.mxu0 %v6650
    %6923 = vmatpush.bf16.msra.mxu0 %v6646
    %6924 = vmatpush.bf16.msra.mxu0 %v6642
    %6925 = vmatmul.bf16.gmra.mxu0 %v6053
    %v6926 = vpop.f32.mrf.mxu0
    %v6927 = vadd.f32 %v6913, %v6926
    %v6928 = vpop.f32.mrf.mxu0
    %v6929 = vadd.f32 %v6915, %v6928
    %6930 = vdwg.mxu0
    %6931 = vmatpush.bf16.msra.mxu0 %v6702
    %6932 = vmatpush.bf16.msra.mxu0 %v6698
    %6933 = vmatpush.bf16.msra.mxu0 %v6694
    %6934 = vmatpush.bf16.msra.mxu0 %v6690
    %6935 = vmatpush.bf16.msra.mxu0 %v6686
    %6936 = vmatpush.bf16.msra.mxu0 %v6682
    %6937 = vmatpush.bf16.msra.mxu0 %v6678
    %6938 = vmatpush.bf16.msra.mxu0 %v6674
    %6939 = vmatmul.bf16.gmra.mxu0 %v6054
    %v6940 = vpop.f32.mrf.mxu0
    %v6941 = vadd.f32 %v6927, %v6940
    %v6942 = vpop.f32.mrf.mxu0
    %v6943 = vadd.f32 %v6929, %v6942
    %6944 = vdwg.mxu0
    %6945 = vmatpush.bf16.msra.mxu0 %v6607
    %6946 = vmatpush.bf16.msra.mxu0 %v6603
    %6947 = vmatpush.bf16.msra.mxu0 %v6599
    %6948 = vmatpush.bf16.msra.mxu0 %v6595
    %6949 = vmatpush.bf16.msra.mxu0 %v6591
    %6950 = vmatpush.bf16.msra.mxu0 %v6587
    %6951 = vmatpush.bf16.msra.mxu0 %v6583
    %6952 = vmatpush.bf16.msra.mxu0 %v6579
    %6953 = vmatmul.bf16.gmra.mxu0 %v6051
    %v6954 = vpop.f32.mrf.mxu0
    %v6955 = vadd.f32 %v6187, %v6954
    %v6956 = vpop.f32.mrf.mxu0
    %v6957 = vadd.f32 %v6187, %v6956
    %6958 = vdwg.mxu0
    %6959 = vmatpush.bf16.msra.mxu0 %v6639
    %6960 = vmatpush.bf16.msra.mxu0 %v6635
    %6961 = vmatpush.bf16.msra.mxu0 %v6631
    %6962 = vmatpush.bf16.msra.mxu0 %v6627
    %6963 = vmatpush.bf16.msra.mxu0 %v6623
    %6964 = vmatpush.bf16.msra.mxu0 %v6619
    %6965 = vmatpush.bf16.msra.mxu0 %v6615
    %6966 = vmatpush.bf16.msra.mxu0 %v6611
    %6967 = vmatmul.bf16.gmra.mxu0 %v6052
    %v6968 = vpop.f32.mrf.mxu0
    %v6969 = vadd.f32 %v6955, %v6968
    %v6970 = vpop.f32.mrf.mxu0
    %v6971 = vadd.f32 %v6957, %v6970
    %6972 = vdwg.mxu0
    %6973 = vmatpush.bf16.msra.mxu0 %v6671
    %6974 = vmatpush.bf16.msra.mxu0 %v6667
    %6975 = vmatpush.bf16.msra.mxu0 %v6663
    %6976 = vmatpush.bf16.msra.mxu0 %v6659
    %6977 = vmatpush.bf16.msra.mxu0 %v6655
    %6978 = vmatpush.bf16.msra.mxu0 %v6651
    %6979 = vmatpush.bf16.msra.mxu0 %v6647
    %6980 = vmatpush.bf16.msra.mxu0 %v6643
    %6981 = vmatmul.bf16.gmra.mxu0 %v6053
    %v6982 = vpop.f32.mrf.mxu0
    %v6983 = vadd.f32 %v6969, %v6982
    %v6984 = vpop.f32.mrf.mxu0
    %v6985 = vadd.f32 %v6971, %v6984
    %6986 = vdwg.mxu0
    %6987 = vmatpush.bf16.msra.mxu0 %v6703
    %6988 = vmatpush.bf16.msra.mxu0 %v6699
    %6989 = vmatpush.bf16.msra.mxu0 %v6695
    %6990 = vmatpush.bf16.msra.mxu0 %v6691
    %6991 = vmatpush.bf16.msra.mxu0 %v6687
    %6992 = vmatpush.bf16.msra.mxu0 %v6683
    %6993 = vmatpush.bf16.msra.mxu0 %v6679
    %6994 = vmatpush.bf16.msra.mxu0 %v6675
    %6995 = vmatmul.bf16.gmra.mxu0 %v6054
    %v6996 = vpop.f32.mrf.mxu0
    %v6997 = vadd.f32 %v6983, %v6996
    %v6998 = vpop.f32.mrf.mxu0
    %v6999 = vadd.f32 %v6985, %v6998
    %7000 = vdwg.mxu0
    %7001 = vmatpush.bf16.msra.mxu0 %v6608
    %7002 = vmatpush.bf16.msra.mxu0 %v6604
    %7003 = vmatpush.bf16.msra.mxu0 %v6600
    %7004 = vmatpush.bf16.msra.mxu0 %v6596
    %7005 = vmatpush.bf16.msra.mxu0 %v6592
    %7006 = vmatpush.bf16.msra.mxu0 %v6588
    %7007 = vmatpush.bf16.msra.mxu0 %v6584
    %7008 = vmatpush.bf16.msra.mxu0 %v6580
    %7009 = vmatmul.bf16.gmra.mxu0 %v6051
    %v7010 = vpop.f32.mrf.mxu0
    %v7011 = vadd.f32 %v6188, %v7010
    %v7012 = vpop.f32.mrf.mxu0
    %v7013 = vadd.f32 %v6188, %v7012
    %7014 = vdwg.mxu0
    %7015 = vmatpush.bf16.msra.mxu0 %v6640
    %7016 = vmatpush.bf16.msra.mxu0 %v6636
    %7017 = vmatpush.bf16.msra.mxu0 %v6632
    %7018 = vmatpush.bf16.msra.mxu0 %v6628
    %7019 = vmatpush.bf16.msra.mxu0 %v6624
    %7020 = vmatpush.bf16.msra.mxu0 %v6620
    %7021 = vmatpush.bf16.msra.mxu0 %v6616
    %7022 = vmatpush.bf16.msra.mxu0 %v6612
    %7023 = vmatmul.bf16.gmra.mxu0 %v6052
    %v7024 = vpop.f32.mrf.mxu0
    %v7025 = vadd.f32 %v7011, %v7024
    %v7026 = vpop.f32.mrf.mxu0
    %v7027 = vadd.f32 %v7013, %v7026
    %7028 = vdwg.mxu0
    %7029 = vmatpush.bf16.msra.mxu0 %v6672
    %7030 = vmatpush.bf16.msra.mxu0 %v6668
    %7031 = vmatpush.bf16.msra.mxu0 %v6664
    %7032 = vmatpush.bf16.msra.mxu0 %v6660
    %7033 = vmatpush.bf16.msra.mxu0 %v6656
    %7034 = vmatpush.bf16.msra.mxu0 %v6652
    %7035 = vmatpush.bf16.msra.mxu0 %v6648
    %7036 = vmatpush.bf16.msra.mxu0 %v6644
    %7037 = vmatmul.bf16.gmra.mxu0 %v6053
    %v7038 = vpop.f32.mrf.mxu0
    %v7039 = vadd.f32 %v7025, %v7038
    %v7040 = vpop.f32.mrf.mxu0
    %v7041 = vadd.f32 %v7027, %v7040
    %7042 = vdwg.mxu0
    %7043 = vmatpush.bf16.msra.mxu0 %v6704
    %7044 = vmatpush.bf16.msra.mxu0 %v6700
    %7045 = vmatpush.bf16.msra.mxu0 %v6696
    %7046 = vmatpush.bf16.msra.mxu0 %v6692
    %7047 = vmatpush.bf16.msra.mxu0 %v6688
    %7048 = vmatpush.bf16.msra.mxu0 %v6684
    %7049 = vmatpush.bf16.msra.mxu0 %v6680
    %7050 = vmatpush.bf16.msra.mxu0 %v6676
    %7051 = vmatmul.bf16.gmra.mxu0 %v6054
    %v7052 = vpop.f32.mrf.mxu0
    %v7053 = vadd.f32 %v7039, %v7052
    %v7054 = vpop.f32.mrf.mxu0
    %v7055 = vadd.f32 %v7041, %v7054
    %7056 = vdwg.mxu0
    %v7057 = vmax.f32 %v6885, 0.0
    %v7058 = vmax.f32 %v6941, 0.0
    %v7059 = vmax.f32 %v6997, 0.0
    %v7060 = vmax.f32 %v7053, 0.0
    %v7061 = vmax.f32 %v6887, 0.0
    %v7062 = vmax.f32 %v6943, 0.0
    %v7063 = vmax.f32 %v6999, 0.0
    %v7064 = vmax.f32 %v7055, 0.0
    %v7065 = vpack.c.bf16 %v7061, %v7057
    %v7066 = vpack.c.bf16 %v7062, %v7058
    %v7067 = vpack.c.bf16 %v7063, %v7059
    %v7068 = vpack.c.bf16 %v7064, %v7060
    %v7069 = vld [vmem:[%s19] sm:$0xf]
    %v7070 = vld [vmem:[%s19 + $0x4] sm:$0xf]
    %v7071 = vld [vmem:[%s19 + $0x8] sm:$0xf]
    %v7072 = vld [vmem:[%s19 + $0xc] sm:$0xf]
    %v7073 = vld [vmem:[%s19 + $0x10] sm:$0xf]
    %v7074 = vld [vmem:[%s19 + $0x14] sm:$0xf]
    %v7075 = vld [vmem:[%s19 + $0x18] sm:$0xf]
    %v7076 = vld [vmem:[%s19 + $0x1c] sm:$0xf]
    %v7077 = vld [vmem:[%s19 + $0x20] sm:$0xf]
    %v7078 = vld [vmem:[%s19 + $0x24] sm:$0xf]
    %v7079 = vld [vmem:[%s19 + $0x28] sm:$0xf]
    %v7080 = vld [vmem:[%s19 + $0x2c] sm:$0xf]
    %v7081 = vld [vmem:[%s19 + $0x30] sm:$0xf]
    %v7082 = vld [vmem:[%s19 + $0x34] sm:$0xf]
    %v7083 = vld [vmem:[%s19 + $0x38] sm:$0xf]
    %v7084 = vld [vmem:[%s19 + $0x3c] sm:$0xf]
    %v7085 = vld [vmem:[%s19 + $0x40] sm:$0xf]
    %v7086 = vld [vmem:[%s19 + $0x44] sm:$0xf]
    %v7087 = vld [vmem:[%s19 + $0x48] sm:$0xf]
    %v7088 = vld [vmem:[%s19 + $0x4c] sm:$0xf]
    %v7089 = vld [vmem:[%s19 + $0x50] sm:$0xf]
    %v7090 = vld [vmem:[%s19 + $0x54] sm:$0xf]
    %v7091 = vld [vmem:[%s19 + $0x58] sm:$0xf]
    %v7092 = vld [vmem:[%s19 + $0x5c] sm:$0xf]
    %v7093 = vld [vmem:[%s19 + $0x60] sm:$0xf]
    %v7094 = vld [vmem:[%s19 + $0x64] sm:$0xf]
    %v7095 = vld [vmem:[%s19 + $0x68] sm:$0xf]
    %v7096 = vld [vmem:[%s19 + $0x6c] sm:$0xf]
    %v7097 = vld [vmem:[%s19 + $0x70] sm:$0xf]
    %v7098 = vld [vmem:[%s19 + $0x74] sm:$0xf]
    %v7099 = vld [vmem:[%s19 + $0x78] sm:$0xf]
    %v7100 = vld [vmem:[%s19 + $0x7c] sm:$0xf]
    %v7101 = vld [vmem:[%s19 + $0x80] sm:$0xf]
    %v7102 = vld [vmem:[%s19 + $0x84] sm:$0xf]
    %v7103 = vld [vmem:[%s19 + $0x88] sm:$0xf]
    %v7104 = vld [vmem:[%s19 + $0x8c] sm:$0xf]
    %v7105 = vld [vmem:[%s19 + $0x90] sm:$0xf]
    %v7106 = vld [vmem:[%s19 + $0x94] sm:$0xf]
    %v7107 = vld [vmem:[%s19 + $0x98] sm:$0xf]
    %v7108 = vld [vmem:[%s19 + $0x9c] sm:$0xf]
    %v7109 = vld [vmem:[%s19 + $0xa0] sm:$0xf]
    %v7110 = vld [vmem:[%s19 + $0xa4] sm:$0xf]
    %v7111 = vld [vmem:[%s19 + $0xa8] sm:$0xf]
    %v7112 = vld [vmem:[%s19 + $0xac] sm:$0xf]
    %v7113 = vld [vmem:[%s19 + $0xb0] sm:$0xf]
    %v7114 = vld [vmem:[%s19 + $0xb4] sm:$0xf]
    %v7115 = vld [vmem:[%s19 + $0xb8] sm:$0xf]
    %v7116 = vld [vmem:[%s19 + $0xbc] sm:$0xf]
    %v7117 = vld [vmem:[%s19 + $0xc0] sm:$0xf]
    %v7118 = vld [vmem:[%s19 + $0xc4] sm:$0xf]
    %v7119 = vld [vmem:[%s19 + $0xc8] sm:$0xf]
    %v7120 = vld [vmem:[%s19 + $0xcc] sm:$0xf]
    %v7121 = vld [vmem:[%s19 + $0xd0] sm:$0xf]
    %v7122 = vld [vmem:[%s19 + $0xd4] sm:$0xf]
    %v7123 = vld [vmem:[%s19 + $0xd8] sm:$0xf]
    %v7124 = vld [vmem:[%s19 + $0xdc] sm:$0xf]
    %v7125 = vld [vmem:[%s19 + $0xe0] sm:$0xf]
    %v7126 = vld [vmem:[%s19 + $0xe4] sm:$0xf]
    %v7127 = vld [vmem:[%s19 + $0xe8] sm:$0xf]
    %v7128 = vld [vmem:[%s19 + $0xec] sm:$0xf]
    %v7129 = vld [vmem:[%s19 + $0xf0] sm:$0xf]
    %v7130 = vld [vmem:[%s19 + $0xf4] sm:$0xf]
    %v7131 = vld [vmem:[%s19 + $0xf8] sm:$0xf]
    %v7132 = vld [vmem:[%s19 + $0xfc] sm:$0xf]
    %v7133 = vld [vmem:[%s20] sm:$0x1]
    %v7135 = vperm.slane %v7133, 0
    %v7201 = vunpack.c.l.b16 %v7069
    %v7202 = vunpack.c.l.b16 %v7070
    %v7203 = vunpack.c.l.b16 %v7071
    %v7204 = vunpack.c.l.b16 %v7072
    %v7205 = vunpack.c.l.b16 %v7073
    %v7206 = vunpack.c.l.b16 %v7074
    %v7207 = vunpack.c.l.b16 %v7075
    %v7208 = vunpack.c.l.b16 %v7076
    %v7209 = vunpack.c.l.b16 %v7077
    %v7210 = vunpack.c.l.b16 %v7078
    %v7211 = vunpack.c.l.b16 %v7079
    %v7212 = vunpack.c.l.b16 %v7080
    %v7213 = vunpack.c.l.b16 %v7081
    %v7214 = vunpack.c.l.b16 %v7082
    %v7215 = vunpack.c.l.b16 %v7083
    %v7216 = vunpack.c.l.b16 %v7084
    %v7217 = vunpack.c.l.b16 %v7085
    %v7218 = vunpack.c.l.b16 %v7086
    %v7219 = vunpack.c.l.b16 %v7087
    %v7220 = vunpack.c.l.b16 %v7088
    %v7221 = vunpack.c.l.b16 %v7089
    %v7222 = vunpack.c.l.b16 %v7090
    %v7223 = vunpack.c.l.b16 %v7091
    %v7224 = vunpack.c.l.b16 %v7092
    %v7225 = vunpack.c.l.b16 %v7093
    %v7226 = vunpack.c.l.b16 %v7094
    %v7227 = vunpack.c.l.b16 %v7095
    %v7228 = vunpack.c.l.b16 %v7096
    %v7229 = vunpack.c.l.b16 %v7097
    %v7230 = vunpack.c.l.b16 %v7098
    %v7231 = vunpack.c.l.b16 %v7099
    %v7232 = vunpack.c.l.b16 %v7100
    %v7233 = vunpack.c.l.b16 %v7101
    %v7234 = vunpack.c.l.b16 %v7102
    %v7235 = vunpack.c.l.b16 %v7103
    %v7236 = vunpack.c.l.b16 %v7104
    %v7237 = vunpack.c.l.b16 %v7105
    %v7238 = vunpack.c.l.b16 %v7106
    %v7239 = vunpack.c.l.b16 %v7107
    %v7240 = vunpack.c.l.b16 %v7108
    %v7241 = vunpack.c.l.b16 %v7109
    %v7242 = vunpack.c.l.b16 %v7110
    %v7243 = vunpack.c.l.b16 %v7111
    %v7244 = vunpack.c.l.b16 %v7112
    %v7245 = vunpack.c.l.b16 %v7113
    %v7246 = vunpack.c.l.b16 %v7114
    %v7247 = vunpack.c.l.b16 %v7115
    %v7248 = vunpack.c.l.b16 %v7116
    %v7249 = vunpack.c.l.b16 %v7117
    %v7250 = vunpack.c.l.b16 %v7118
    %v7251 = vunpack.c.l.b16 %v7119
    %v7252 = vunpack.c.l.b16 %v7120
    %v7253 = vunpack.c.l.b16 %v7121
    %v7254 = vunpack.c.l.b16 %v7122
    %v7255 = vunpack.c.l.b16 %v7123
    %v7256 = vunpack.c.l.b16 %v7124
    %v7257 = vunpack.c.l.b16 %v7125
    %v7258 = vunpack.c.l.b16 %v7126
    %v7259 = vunpack.c.l.b16 %v7127
    %v7260 = vunpack.c.l.b16 %v7128
    %v7261 = vunpack.c.l.b16 %v7129
    %v7262 = vunpack.c.l.b16 %v7130
    %v7263 = vunpack.c.l.b16 %v7131
    %v7264 = vunpack.c.l.b16 %v7132
    %v7265 = vpack.c.b16 %v7202, %v7201
    %v7266 = vpack.c.b16 %v7204, %v7203
    %v7267 = vpack.c.b16 %v7206, %v7205
    %v7268 = vpack.c.b16 %v7208, %v7207
    %v7269 = vpack.c.b16 %v7210, %v7209
    %v7270 = vpack.c.b16 %v7212, %v7211
    %v7271 = vpack.c.b16 %v7214, %v7213
    %v7272 = vpack.c.b16 %v7216, %v7215
    %v7273 = vpack.c.b16 %v7218, %v7217
    %v7274 = vpack.c.b16 %v7220, %v7219
    %v7275 = vpack.c.b16 %v7222, %v7221
    %v7276 = vpack.c.b16 %v7224, %v7223
    %v7277 = vpack.c.b16 %v7226, %v7225
    %v7278 = vpack.c.b16 %v7228, %v7227
    %v7279 = vpack.c.b16 %v7230, %v7229
    %v7280 = vpack.c.b16 %v7232, %v7231
    %v7281 = vpack.c.b16 %v7234, %v7233
    %v7282 = vpack.c.b16 %v7236, %v7235
    %v7283 = vpack.c.b16 %v7238, %v7237
    %v7284 = vpack.c.b16 %v7240, %v7239
    %v7285 = vpack.c.b16 %v7242, %v7241
    %v7286 = vpack.c.b16 %v7244, %v7243
    %v7287 = vpack.c.b16 %v7246, %v7245
    %v7288 = vpack.c.b16 %v7248, %v7247
    %v7289 = vpack.c.b16 %v7250, %v7249
    %v7290 = vpack.c.b16 %v7252, %v7251
    %v7291 = vpack.c.b16 %v7254, %v7253
    %v7292 = vpack.c.b16 %v7256, %v7255
    %v7293 = vpack.c.b16 %v7258, %v7257
    %v7294 = vpack.c.b16 %v7260, %v7259
    %v7295 = vpack.c.b16 %v7262, %v7261
    %v7296 = vpack.c.b16 %v7264, %v7263
    %7329 = vmatpush.bf16.msra.mxu0 %v7272
    %7330 = vmatpush.bf16.msra.mxu0 %v7271
    %7331 = vmatpush.bf16.msra.mxu0 %v7270
    %7332 = vmatpush.bf16.msra.mxu0 %v7269
    %7333 = vmatpush.bf16.msra.mxu0 %v7268
    %7334 = vmatpush.bf16.msra.mxu0 %v7267
    %7335 = vmatpush.bf16.msra.mxu0 %v7266
    %7336 = vmatpush.bf16.msra.mxu0 %v7265
    %7337 = vmatmul.bf16.gmra.mxu0 %v7065
    %v7338 = vpop.f32.mrf.mxu0
    %v7339 = vadd.f32 %v7135, %v7338
    %v7340 = vpop.f32.mrf.mxu0
    %v7341 = vadd.f32 %v7135, %v7340
    %7342 = vdwg.mxu0
    %7343 = vmatpush.bf16.msra.mxu0 %v7280
    %7344 = vmatpush.bf16.msra.mxu0 %v7279
    %7345 = vmatpush.bf16.msra.mxu0 %v7278
    %7346 = vmatpush.bf16.msra.mxu0 %v7277
    %7347 = vmatpush.bf16.msra.mxu0 %v7276
    %7348 = vmatpush.bf16.msra.mxu0 %v7275
    %7349 = vmatpush.bf16.msra.mxu0 %v7274
    %7350 = vmatpush.bf16.msra.mxu0 %v7273
    %7351 = vmatmul.bf16.gmra.mxu0 %v7066
    %v7352 = vpop.f32.mrf.mxu0
    %v7353 = vadd.f32 %v7339, %v7352
    %v7354 = vpop.f32.mrf.mxu0
    %v7355 = vadd.f32 %v7341, %v7354
    %7356 = vdwg.mxu0
    %7357 = vmatpush.bf16.msra.mxu0 %v7288
    %7358 = vmatpush.bf16.msra.mxu0 %v7287
    %7359 = vmatpush.bf16.msra.mxu0 %v7286
    %7360 = vmatpush.bf16.msra.mxu0 %v7285
    %7361 = vmatpush.bf16.msra.mxu0 %v7284
    %7362 = vmatpush.bf16.msra.mxu0 %v7283
    %7363 = vmatpush.bf16.msra.mxu0 %v7282
    %7364 = vmatpush.bf16.msra.mxu0 %v7281
    %7365 = vmatmul.bf16.gmra.mxu0 %v7067
    %v7366 = vpop.f32.mrf.mxu0
    %v7367 = vadd.f32 %v7353, %v7366
    %v7368 = vpop.f32.mrf.mxu0
    %v7369 = vadd.f32 %v7355, %v7368
    %7370 = vdwg.mxu0
    %7371 = vmatpush.bf16.msra.mxu0 %v7296
    %7372 = vmatpush.bf16.msra.mxu0 %v7295
    %7373 = vmatpush.bf16.msra.mxu0 %v7294
    %7374 = vmatpush.bf16.msra.mxu0 %v7293
    %7375 = vmatpush.bf16.msra.mxu0 %v7292
    %7376 = vmatpush.bf16.msra.mxu0 %v7291
    %7377 = vmatpush.bf16.msra.mxu0 %v7290
    %7378 = vmatpush.bf16.msra.mxu0 %v7289
    %7379 = vmatmul.bf16.gmra.mxu0 %v7068
    %v7380 = vpop.f32.mrf.mxu0
    %v7381 = vadd.f32 %v7367, %v7380
    %v7382 = vpop.f32.mrf.mxu0
    %v7383 = vadd.f32 %v7369, %v7382
    %7384 = vdwg.mxu0
    %7385 = vst [vmem:[%s21] sm:$0xff] %v7381
    %7386 = vst [vmem:[%s21 + $0x8] sm:$0xff] %v7383
    // Predicated region
    $region110: #{embedding_forward.1} parent=1 // pred_check
      _
    $region111: #{embedding_forward.1} parent=1 // pred_check_branch
      %7388 = sbr.rel (0) target = $region113
    $region112: #{embedding_forward.1} parent=1 // pred_region
      _
    $region113: #{embedding_forward.1} parent=1 // pred_fallthru
      _
    // Predicated region
    $region114: #{embedding_forward.1} parent=1 // pred_check
      _
    $region115: #{embedding_forward.1} parent=1 // pred_check_branch
      %7390 = sbr.rel (0) target = $region117
    $region116: #{embedding_forward.1} parent=1 // pred_region
      _
    $region117: #{embedding_forward.1} parent=1 // pred_fallthru
      _
    %7391 = vsyncpa [#allocation3], 1
    %7392 = vsyncpa [#allocation5], 1
    %7393 = vsyncpa [#allocation8], 1
    %7394 = vsyncpa [#allocation11], 1

</llo_original>
